<compile_context>
chip_gen: v7x
topology: tpu7x:2x2x1
jax: 0.10.0
libtpu: 0.0.40
codegen_flags: <defaults>
</compile_context>

<pallas_src>
import functools

import jax
import jax.numpy as jnp
import numpy as np
from jax.experimental import pallas as pl
from jax.experimental.pallas import tpu as pltpu


# --------------------------------------------------------------------------- #
# Kernel
# --------------------------------------------------------------------------- #
def _ffl_kernel(pred_ref, targ_ref,
                cw_hi_ref, cw_lo_ref, sw_hi_ref, sw_lo_ref,
                bdc_hi_ref, bdc_lo_ref, bds_hi_ref, bds_lo_ref,
                bdcs_hi_ref, bdcs_lo_ref,
                out_ref, *, alpha, log_matrix):
    t_idx = pl.program_id(1)

    @pl.when(t_idx == 0)
    def _():
        out_ref[...] = jnp.zeros_like(out_ref)

    blk_b, h, w = pred_ref.shape
    bh = blk_b * h

    def split(x):
        # f32 -> (bf16 hi, bf16 lo) with x ~= hi + lo
        hi = x.astype(jnp.bfloat16)
        lo = (x - hi.astype(jnp.float32)).astype(jnp.bfloat16)
        return hi, lo

    def mm3(a_hi, a_lo, b_hi, b_lo):
        # ~f32-accurate product from 3 single-pass bf16 MXU matmuls ("bf16_3x"):
        # roughly half the MXU passes of Precision.HIGHEST, ~1e-5 relative error.
        dot = lambda a, b: jnp.dot(a, b, preferred_element_type=jnp.float32)
        return dot(a_hi, b_hi) + dot(a_lo, b_hi) + dot(a_hi, b_lo)

    # DFT linearity: only the pred-target difference needs transforming.
    diff = (pred_ref[...] - targ_ref[...]).reshape(bh, w)       # (B*H, W) f32
    d_hi, d_lo = split(diff)

    # W-side (right) transform of the real difference: A = d @ (Cw - i*Sw) = u - i*v
    u = mm3(d_hi, d_lo, cw_hi_ref[...], cw_lo_ref[...])         # (B*H, W)
    v = mm3(d_hi, d_lo, sw_hi_ref[...], sw_lo_ref[...])         # (B*H, W)

    # H-side (left) transform, complex, Karatsuba (3 matmuls instead of 4),
    # block-diagonal over the B fused slices so the contraction dim is B*H.
    u_hi, u_lo = split(u)
    v_hi, v_lo = split(v)
    uv = u + v
    uv_hi, uv_lo = split(uv)
    t1 = mm3(bdc_hi_ref[...], bdc_lo_ref[...], u_hi, u_lo)      # Ch @ u
    t2 = mm3(bds_hi_ref[...], bds_lo_ref[...], v_hi, v_lo)      # Sh @ v
    t3 = mm3(bdcs_hi_ref[...], bdcs_lo_ref[...], uv_hi, uv_lo)  # (Ch+Sh) @ (u+v)

    f_re = t1 - t2
    f_im = t1 + t2 - t3
    dist = (f_re * f_re + f_im * f_im).reshape(blk_b, h, w)     # |F(pred)-F(target)|^2

    # Spectrum weight matrix (batch_matrix=False path: per-(n, c) slice max).
    wgt = jnp.sqrt(dist)
    if alpha != 1.0:
        wgt = wgt ** alpha
    if log_matrix:
        wgt = jnp.log(wgt + 1.0)
    m = jnp.max(wgt, axis=2, keepdims=True)                     # (B, H, 1)
    m = jnp.max(m, axis=1, keepdims=True)                       # (B, 1, 1) per-slice max
    wgt = wgt * (1.0 / m)                                       # 0*inf -> NaN, zeroed below
    wgt = jnp.where(jnp.isnan(wgt), 0.0, wgt)                   # matches torch nan -> 0
    wgt = jnp.clip(wgt, 0.0, 1.0)

    # Accumulate the weighted distances into the VMEM-resident output block; the
    # cross-lane reduction to a scalar is deferred to the wrapper-side sum.
    out_ref[0] += wgt * dist


# --------------------------------------------------------------------------- #
# Wrapper helpers
# --------------------------------------------------------------------------- #
def _dft_cos_sin(n):
    """Orthonormal DFT cos/sin matrices (float64 numpy)."""
    k = np.arange(n, dtype=np.float64)
    ang = 2.0 * np.pi * np.outer(k, k) / n
    scale = 1.0 / np.sqrt(n)
    return np.cos(ang) * scale, np.sin(ang) * scale


def _split_bf16(m):
    """Split a matrix into bf16 hi/lo halves for 3-pass bf16 matmuls."""
    m32 = jnp.asarray(m, dtype=jnp.float32)
    hi = m32.astype(jnp.bfloat16)
    lo = (m32 - hi.astype(jnp.float32)).astype(jnp.bfloat16)
    return hi, lo


def _pick_block_b(nc, h, w, budget_bytes):
    """Number of (n, c) slices fused per grid step.

    Targets B*H ~ 256 rows (one v6e/v7x MXU tile) so both matmul stages and the
    per-step DMAs are reasonably sized, then shrinks B until the per-step VMEM
    working set fits the budget.
    """
    b = max(1, min(nc, 256 // max(h, 1)))

    def est_bytes(bb):
        bh = bb * h
        data = 2 * 2 * bh * w * 4                    # pred+target blocks, double-buffered f32
        mats = 2 * (4 * w * w + 6 * bh * bh) * 2     # bf16 hi/lo DFT + block-diag mats, dbl-buffered
        outb = 2 * bh * w * 4                        # output accumulator block
        interm = 16 * bh * w * 4                     # matmul intermediates / weights
        return data + mats + outb + interm

    while b > 1 and est_bytes(b) > budget_bytes:
        b -= 1
    return b


# --------------------------------------------------------------------------- #
# Public entry point
# --------------------------------------------------------------------------- #
def focal_freq_loss(pred, target, *, loss_weight=1.0, alpha=1.0,
                    log_matrix=False, avg_spectrum=False, batch_matrix=False):
    """Pallas TPU implementation of FocalFreqLoss.forward (assigned_weight_matrix=None)."""
    # TODO(synk): batch_matrix=True needs a global (two-pass) max over all slices;
    # only the default per-(N, C) normalization is implemented in-kernel.
    assert not batch_matrix, "batch_matrix=True not implemented"

    n, c, h, w = pred.shape
    if avg_spectrum:
        # FFT is linear: minibatch-average of spectra == spectrum of the mean image.
        pred = jnp.mean(pred, axis=0, keepdims=True)
        target = jnp.mean(target, axis=0, keepdims=True)
        n = 1

    nc = n * c
    x = pred.reshape(nc, h, w).astype(jnp.float32)
    y = target.reshape(nc, h, w).astype(jnp.float32)

    # VMEM budget: v7x has 64 MiB physical (32 MiB scoped default), v5e/v6e 128 MiB
    # (16/32 MiB scoped defaults).  Budget ~75% of physical and size B to fit.
    try:
        phys_vmem = int(pltpu.get_tpu_info().vmem_capacity_bytes)
    except Exception:  # conservative fallback that fits every chip generation
        phys_vmem = 64 * 1024 * 1024
    vmem_limit = min(phys_vmem * 3 // 4, 100 * 1024 * 1024)

    blk_b = _pick_block_b(nc, h, w, int(vmem_limit * 0.8))
    bh = blk_b * h

    steps = -(-nc // blk_b)
    par = 2 if steps >= 2 else 1           # leading "parallel" axis: both TCs on v7x
    inner = -(-steps // par)
    nc_pad = par * inner * blk_b
    if nc_pad != nc:
        # Zero padding slices contribute exactly 0 (diff == 0 -> dist == 0, w -> 0).
        pad = jnp.zeros((nc_pad - nc, h, w), jnp.float32)
        x = jnp.concatenate([x, pad], axis=0)
        y = jnp.concatenate([y, pad], axis=0)

    # Orthonormal DFT matrices; the H-side ones are tiled block-diagonally over the
    # B fused slices.  All pre-split into bf16 hi/lo halves in the wrapper.
    cos_w, sin_w = _dft_cos_sin(w)
    cos_h, sin_h = _dft_cos_sin(h)
    eye_b = np.eye(blk_b, dtype=np.float64)
    bd_cos = np.kron(eye_b, cos_h)
    bd_sin = np.kron(eye_b, sin_h)
    bd_cs = bd_cos + bd_sin

    cw_hi, cw_lo = _split_bf16(cos_w)
    sw_hi, sw_lo = _split_bf16(sin_w)
    bdc_hi, bdc_lo = _split_bf16(bd_cos)
    bds_hi, bds_lo = _split_bf16(bd_sin)
    bdcs_hi, bdcs_lo = _split_bf16(bd_cs)

    kernel = functools.partial(_ffl_kernel, alpha=float(alpha),
                               log_matrix=bool(log_matrix))

    def data_map(p, t):
        return (p * inner + t, 0, 0)

    const_map = lambda p, t: (0, 0)

    acc = pl.pallas_call(
        kernel,
        out_shape=jax.ShapeDtypeStruct((par, blk_b, h, w), jnp.float32),
        grid_spec=pltpu.PrefetchScalarGridSpec(
            num_scalar_prefetch=0,
            grid=(par, inner),
            in_specs=[
                pl.BlockSpec((blk_b, h, w), data_map),      # pred slices
                pl.BlockSpec((blk_b, h, w), data_map),      # target slices
                pl.BlockSpec((w, w), const_map),            # cos_w hi
                pl.BlockSpec((w, w), const_map),            # cos_w lo
                pl.BlockSpec((w, w), const_map),            # sin_w hi
                pl.BlockSpec((w, w), const_map),            # sin_w lo
                pl.BlockSpec((bh, bh), const_map),          # block-diag cos_h hi
                pl.BlockSpec((bh, bh), const_map),          # block-diag cos_h lo
                pl.BlockSpec((bh, bh), const_map),          # block-diag sin_h hi
                pl.BlockSpec((bh, bh), const_map),          # block-diag sin_h lo
                pl.BlockSpec((bh, bh), const_map),          # block-diag (cos_h+sin_h) hi
                pl.BlockSpec((bh, bh), const_map),          # block-diag (cos_h+sin_h) lo
            ],
            out_specs=pl.BlockSpec((1, blk_b, h, w), lambda p, t: (p, 0, 0, 0)),
        ),
        compiler_params=pltpu.CompilerParams(
            dimension_semantics=("parallel", "arbitrary"),
            vmem_limit_bytes=int(vmem_limit)),
    )(x, y, cw_hi, cw_lo, sw_hi, sw_lo,
      bdc_hi, bdc_lo, bds_hi, bds_lo, bdcs_hi, bdcs_lo)

    loss = jnp.sum(acc) / jnp.float32(n * c * h * w)
    return loss * jnp.float32(loss_weight)


# --------------------------------------------------------------------------- #
# Reference + test
# --------------------------------------------------------------------------- #
def _reference_loss(pred, target, loss_weight=1.0, alpha=1.0):
    """Pure numpy reference mirroring the PyTorch module (default flags)."""
    pf = np.fft.fft2(np.asarray(pred, np.float64), norm="ortho")
    tf = np.fft.fft2(np.asarray(target, np.float64), norm="ortho")
    dr = pf.real - tf.real
    di = pf.imag - tf.imag
    dist = dr ** 2 + di ** 2
    w = np.sqrt(dist) ** alpha
    m = w.max(axis=-1).max(axis=-1)[:, :, None, None]
    w = w / m
    w = np.nan_to_num(w, nan=0.0)
    w = np.clip(w, 0.0, 1.0)
    return float(np.mean(w * dist) * loss_weight)


if __name__ == "__main__":
    key = jax.random.PRNGKey(0)
    k1, k2 = jax.random.split(key)
    N, C, H, W = 2, 4, 16, 16
    pred = jax.random.normal(k1, (N, C, H, W), dtype=jnp.float32)
    target = jax.random.normal(k2, (N, C, H, W), dtype=jnp.float32)

    loss = focal_freq_loss(pred, target, loss_weight=1.0)
    loss = jax.block_until_ready(loss)

    ref = _reference_loss(np.asarray(pred), np.asarray(target), loss_weight=1.0)
    assert np.isfinite(float(loss))
    assert abs(float(loss) - ref) <= 5e-3 * max(1.0, abs(ref)), (float(loss), ref)

    print("KERNEL_OK")
</pallas_src>

<mosaic_0001>
module attributes {stable_mosaic.version = 11 : i64} {
  func.func @_ffl_kernel(%arg0: i32, %arg1: i32, %arg2: memref<8x16x16xf32, #tpu.memory_space<vmem>>, %arg3: memref<8x16x16xf32, #tpu.memory_space<vmem>>, %arg4: memref<16x16xbf16, #tpu.memory_space<vmem>>, %arg5: memref<16x16xbf16, #tpu.memory_space<vmem>>, %arg6: memref<16x16xbf16, #tpu.memory_space<vmem>>, %arg7: memref<16x16xbf16, #tpu.memory_space<vmem>>, %arg8: memref<128x128xbf16, #tpu.memory_space<vmem>>, %arg9: memref<128x128xbf16, #tpu.memory_space<vmem>>, %arg10: memref<128x128xbf16, #tpu.memory_space<vmem>>, %arg11: memref<128x128xbf16, #tpu.memory_space<vmem>>, %arg12: memref<128x128xbf16, #tpu.memory_space<vmem>>, %arg13: memref<128x128xbf16, #tpu.memory_space<vmem>>, %arg14: memref<1x8x16x16xf32, #tpu.memory_space<vmem>>) attributes {dimension_semantics = [#tpu.dimension_semantics<parallel>, #tpu.dimension_semantics<arbitrary>], iteration_bounds = array<i64: 1, 1>, scalar_prefetch = 0 : i64, scratch_operands = 0 : i64, tpu.core_type = #tpu.core_type<tc>, window_params = [{transform_indices = @transform_0, window_bounds = array<i64: 8, 16, 16>}, {transform_indices = @transform_1, window_bounds = array<i64: 8, 16, 16>}, {pipeline_mode = #tpu.pipeline_mode<synchronous>, transform_indices = @transform_2, window_bounds = array<i64: 16, 16>}, {pipeline_mode = #tpu.pipeline_mode<synchronous>, transform_indices = @transform_3, window_bounds = array<i64: 16, 16>}, {pipeline_mode = #tpu.pipeline_mode<synchronous>, transform_indices = @transform_4, window_bounds = array<i64: 16, 16>}, {pipeline_mode = #tpu.pipeline_mode<synchronous>, transform_indices = @transform_5, window_bounds = array<i64: 16, 16>}, {pipeline_mode = #tpu.pipeline_mode<synchronous>, transform_indices = @transform_6, window_bounds = array<i64: 128, 128>}, {pipeline_mode = #tpu.pipeline_mode<synchronous>, transform_indices = @transform_7, window_bounds = array<i64: 128, 128>}, {pipeline_mode = #tpu.pipeline_mode<synchronous>, transform_indices = @transform_8, window_bounds = array<i64: 128, 128>}, {pipeline_mode = #tpu.pipeline_mode<synchronous>, transform_indices = @transform_9, window_bounds = array<i64: 128, 128>}, {pipeline_mode = #tpu.pipeline_mode<synchronous>, transform_indices = @transform_10, window_bounds = array<i64: 128, 128>}, {pipeline_mode = #tpu.pipeline_mode<synchronous>, transform_indices = @transform_11, window_bounds = array<i64: 128, 128>}, {transform_indices = @transform_12, window_bounds = array<i64: 1, 8, 16, 16>}]} {
    %c0_i32 = arith.constant 0 : i32
    %0 = arith.cmpi eq, %arg1, %c0_i32 : i32
    %1 = arith.extui %0 : i1 to i32
    %c0_i32_0 = arith.constant 0 : i32
    %2 = arith.cmpi ne, %1, %c0_i32_0 : i32
    scf.if %2 {
      %cst_54 = arith.constant 0.000000e+00 : f32
      %89 = vector.broadcast %cst_54 : f32 to vector<1x8x16x16xf32>
      %c0_55 = arith.constant 0 : index
      %c0_56 = arith.constant 0 : index
      %c0_57 = arith.constant 0 : index
      %c0_58 = arith.constant 0 : index
      %90 = vector.load %arg14[%c0_55, %c0_56, %c0_57, %c0_58] : memref<1x8x16x16xf32, #tpu.memory_space<vmem>>, vector<1x8x16x16xf32>
      tpu.vector_store %arg14[%c0_55, %c0_56, %c0_57, %c0_58], %89 {strides = array<i32>} : memref<1x8x16x16xf32, #tpu.memory_space<vmem>>, vector<1x8x16x16xf32>,
    } else {
    }
    %c0 = arith.constant 0 : index
    %c0_1 = arith.constant 0 : index
    %c0_2 = arith.constant 0 : index
    %3 = vector.load %arg2[%c0, %c0_1, %c0_2] : memref<8x16x16xf32, #tpu.memory_space<vmem>>, vector<8x16x16xf32>
    %c0_3 = arith.constant 0 : index
    %c0_4 = arith.constant 0 : index
    %c0_5 = arith.constant 0 : index
    %4 = vector.load %arg3[%c0_3, %c0_4, %c0_5] : memref<8x16x16xf32, #tpu.memory_space<vmem>>, vector<8x16x16xf32>
    %5 = arith.subf %3, %4 : vector<8x16x16xf32>
    %6 = vector.shape_cast %5 : vector<8x16x16xf32> to vector<128x16xf32>
    %7 = arith.truncf %6 : vector<128x16xf32> to vector<128x16xbf16>
    %8 = arith.extf %7 : vector<128x16xbf16> to vector<128x16xf32>
    %9 = arith.subf %6, %8 : vector<128x16xf32>
    %10 = arith.truncf %9 : vector<128x16xf32> to vector<128x16xbf16>
    %c0_6 = arith.constant 0 : index
    %c0_7 = arith.constant 0 : index
    %11 = vector.load %arg4[%c0_6, %c0_7] : memref<16x16xbf16, #tpu.memory_space<vmem>>, vector<16x16xbf16>
    %c0_8 = arith.constant 0 : index
    %c0_9 = arith.constant 0 : index
    %12 = vector.load %arg5[%c0_8, %c0_9] : memref<16x16xbf16, #tpu.memory_space<vmem>>, vector<16x16xbf16>
    %cst = arith.constant dense<0.000000e+00> : vector<128x16xf32>
    %13 = tpu.matmul %7, %11, %cst {dimension_numbers = #tpu.dot_dimension_numbers<[1], [0], [0], [1], [0, 0, 1, 1], [], []>} : vector<128x16xbf16>, vector<16x16xbf16>, vector<128x16xf32> -> vector<128x16xf32>
    %cst_10 = arith.constant dense<0.000000e+00> : vector<128x16xf32>
    %14 = tpu.matmul %10, %11, %cst_10 {dimension_numbers = #tpu.dot_dimension_numbers<[1], [0], [0], [1], [0, 0, 1, 1], [], []>} : vector<128x16xbf16>, vector<16x16xbf16>, vector<128x16xf32> -> vector<128x16xf32>
    %15 = arith.addf %13, %14 : vector<128x16xf32>
    %cst_11 = arith.constant dense<0.000000e+00> : vector<128x16xf32>
    %16 = tpu.matmul %7, %12, %cst_11 {dimension_numbers = #tpu.dot_dimension_numbers<[1], [0], [0], [1], [0, 0, 1, 1], [], []>} : vector<128x16xbf16>, vector<16x16xbf16>, vector<128x16xf32> -> vector<128x16xf32>
    %17 = arith.addf %15, %16 : vector<128x16xf32>
    %c0_12 = arith.constant 0 : index
    %c0_13 = arith.constant 0 : index
    %18 = vector.load %arg6[%c0_12, %c0_13] : memref<16x16xbf16, #tpu.memory_space<vmem>>, vector<16x16xbf16>
    %c0_14 = arith.constant 0 : index
    %c0_15 = arith.constant 0 : index
    %19 = vector.load %arg7[%c0_14, %c0_15] : memref<16x16xbf16, #tpu.memory_space<vmem>>, vector<16x16xbf16>
    %cst_16 = arith.constant dense<0.000000e+00> : vector<128x16xf32>
    %20 = tpu.matmul %7, %18, %cst_16 {dimension_numbers = #tpu.dot_dimension_numbers<[1], [0], [0], [1], [0, 0, 1, 1], [], []>} : vector<128x16xbf16>, vector<16x16xbf16>, vector<128x16xf32> -> vector<128x16xf32>
    %cst_17 = arith.constant dense<0.000000e+00> : vector<128x16xf32>
    %21 = tpu.matmul %10, %18, %cst_17 {dimension_numbers = #tpu.dot_dimension_numbers<[1], [0], [0], [1], [0, 0, 1, 1], [], []>} : vector<128x16xbf16>, vector<16x16xbf16>, vector<128x16xf32> -> vector<128x16xf32>
    %22 = arith.addf %20, %21 : vector<128x16xf32>
    %cst_18 = arith.constant dense<0.000000e+00> : vector<128x16xf32>
    %23 = tpu.matmul %7, %19, %cst_18 {dimension_numbers = #tpu.dot_dimension_numbers<[1], [0], [0], [1], [0, 0, 1, 1], [], []>} : vector<128x16xbf16>, vector<16x16xbf16>, vector<128x16xf32> -> vector<128x16xf32>
    %24 = arith.addf %22, %23 : vector<128x16xf32>
    %25 = arith.truncf %17 : vector<128x16xf32> to vector<128x16xbf16>
    %26 = arith.extf %25 : vector<128x16xbf16> to vector<128x16xf32>
    %27 = arith.subf %17, %26 : vector<128x16xf32>
    %28 = arith.truncf %27 : vector<128x16xf32> to vector<128x16xbf16>
    %29 = arith.truncf %24 : vector<128x16xf32> to vector<128x16xbf16>
    %30 = arith.extf %29 : vector<128x16xbf16> to vector<128x16xf32>
    %31 = arith.subf %24, %30 : vector<128x16xf32>
    %32 = arith.truncf %31 : vector<128x16xf32> to vector<128x16xbf16>
    %33 = arith.addf %17, %24 : vector<128x16xf32>
    %34 = arith.truncf %33 : vector<128x16xf32> to vector<128x16xbf16>
    %35 = arith.extf %34 : vector<128x16xbf16> to vector<128x16xf32>
    %36 = arith.subf %33, %35 : vector<128x16xf32>
    %37 = arith.truncf %36 : vector<128x16xf32> to vector<128x16xbf16>
    %c0_19 = arith.constant 0 : index
    %c0_20 = arith.constant 0 : index
    %38 = vector.load %arg8[%c0_19, %c0_20] : memref<128x128xbf16, #tpu.memory_space<vmem>>, vector<128x128xbf16>
    %c0_21 = arith.constant 0 : index
    %c0_22 = arith.constant 0 : index
    %39 = vector.load %arg9[%c0_21, %c0_22] : memref<128x128xbf16, #tpu.memory_space<vmem>>, vector<128x128xbf16>
    %cst_23 = arith.constant dense<0.000000e+00> : vector<128x16xf32>
    %40 = tpu.matmul %38, %25, %cst_23 {dimension_numbers = #tpu.dot_dimension_numbers<[1], [0], [0], [1], [0, 0, 1, 1], [], []>} : vector<128x128xbf16>, vector<128x16xbf16>, vector<128x16xf32> -> vector<128x16xf32>
    %cst_24 = arith.constant dense<0.000000e+00> : vector<128x16xf32>
    %41 = tpu.matmul %39, %25, %cst_24 {dimension_numbers = #tpu.dot_dimension_numbers<[1], [0], [0], [1], [0, 0, 1, 1], [], []>} : vector<128x128xbf16>, vector<128x16xbf16>, vector<128x16xf32> -> vector<128x16xf32>
    %42 = arith.addf %40, %41 : vector<128x16xf32>
    %cst_25 = arith.constant dense<0.000000e+00> : vector<128x16xf32>
    %43 = tpu.matmul %38, %28, %cst_25 {dimension_numbers = #tpu.dot_dimension_numbers<[1], [0], [0], [1], [0, 0, 1, 1], [], []>} : vector<128x128xbf16>, vector<128x16xbf16>, vector<128x16xf32> -> vector<128x16xf32>
    %44 = arith.addf %42, %43 : vector<128x16xf32>
    %c0_26 = arith.constant 0 : index
    %c0_27 = arith.constant 0 : index
    %45 = vector.load %arg10[%c0_26, %c0_27] : memref<128x128xbf16, #tpu.memory_space<vmem>>, vector<128x128xbf16>
    %c0_28 = arith.constant 0 : index
    %c0_29 = arith.constant 0 : index
    %46 = vector.load %arg11[%c0_28, %c0_29] : memref<128x128xbf16, #tpu.memory_space<vmem>>, vector<128x128xbf16>
    %cst_30 = arith.constant dense<0.000000e+00> : vector<128x16xf32>
    %47 = tpu.matmul %45, %29, %cst_30 {dimension_numbers = #tpu.dot_dimension_numbers<[1], [0], [0], [1], [0, 0, 1, 1], [], []>} : vector<128x128xbf16>, vector<128x16xbf16>, vector<128x16xf32> -> vector<128x16xf32>
    %cst_31 = arith.constant dense<0.000000e+00> : vector<128x16xf32>
    %48 = tpu.matmul %46, %29, %cst_31 {dimension_numbers = #tpu.dot_dimension_numbers<[1], [0], [0], [1], [0, 0, 1, 1], [], []>} : vector<128x128xbf16>, vector<128x16xbf16>, vector<128x16xf32> -> vector<128x16xf32>
    %49 = arith.addf %47, %48 : vector<128x16xf32>
    %cst_32 = arith.constant dense<0.000000e+00> : vector<128x16xf32>
    %50 = tpu.matmul %45, %32, %cst_32 {dimension_numbers = #tpu.dot_dimension_numbers<[1], [0], [0], [1], [0, 0, 1, 1], [], []>} : vector<128x128xbf16>, vector<128x16xbf16>, vector<128x16xf32> -> vector<128x16xf32>
    %51 = arith.addf %49, %50 : vector<128x16xf32>
    %c0_33 = arith.constant 0 : index
    %c0_34 = arith.constant 0 : index
    %52 = vector.load %arg12[%c0_33, %c0_34] : memref<128x128xbf16, #tpu.memory_space<vmem>>, vector<128x128xbf16>
    %c0_35 = arith.constant 0 : index
    %c0_36 = arith.constant 0 : index
    %53 = vector.load %arg13[%c0_35, %c0_36] : memref<128x128xbf16, #tpu.memory_space<vmem>>, vector<128x128xbf16>
    %cst_37 = arith.constant dense<0.000000e+00> : vector<128x16xf32>
    %54 = tpu.matmul %52, %34, %cst_37 {dimension_numbers = #tpu.dot_dimension_numbers<[1], [0], [0], [1], [0, 0, 1, 1], [], []>} : vector<128x128xbf16>, vector<128x16xbf16>, vector<128x16xf32> -> vector<128x16xf32>
    %cst_38 = arith.constant dense<0.000000e+00> : vector<128x16xf32>
    %55 = tpu.matmul %53, %34, %cst_38 {dimension_numbers = #tpu.dot_dimension_numbers<[1], [0], [0], [1], [0, 0, 1, 1], [], []>} : vector<128x128xbf16>, vector<128x16xbf16>, vector<128x16xf32> -> vector<128x16xf32>
    %56 = arith.addf %54, %55 : vector<128x16xf32>
    %cst_39 = arith.constant dense<0.000000e+00> : vector<128x16xf32>
    %57 = tpu.matmul %52, %37, %cst_39 {dimension_numbers = #tpu.dot_dimension_numbers<[1], [0], [0], [1], [0, 0, 1, 1], [], []>} : vector<128x128xbf16>, vector<128x16xbf16>, vector<128x16xf32> -> vector<128x16xf32>
    %58 = arith.addf %56, %57 : vector<128x16xf32>
    %59 = arith.subf %44, %51 : vector<128x16xf32>
    %60 = arith.addf %44, %51 : vector<128x16xf32>
    %61 = arith.subf %60, %58 : vector<128x16xf32>
    %62 = arith.mulf %59, %59 : vector<128x16xf32>
    %63 = arith.mulf %61, %61 : vector<128x16xf32>
    %64 = arith.addf %62, %63 : vector<128x16xf32>
    %65 = vector.shape_cast %64 : vector<128x16xf32> to vector<8x16x16xf32>
    %66 = math.sqrt %65 : vector<8x16x16xf32>
    %cst_40 = arith.constant dense<0xFF800000> : vector<8x16xf32>
    %67 = vector.multi_reduction <maximumf>, %66, %cst_40 [2] : vector<8x16x16xf32> to vector<8x16xf32>
    %68 = vector.shape_cast %67 : vector<8x16xf32> to vector<8x16x1xf32>
    %cst_41 = arith.constant dense<0xFF800000> : vector<8x1xf32>
    %69 = vector.multi_reduction <maximumf>, %68, %cst_41 [1] : vector<8x16x1xf32> to vector<8x1xf32>
    %70 = vector.shape_cast %69 : vector<8x1xf32> to vector<8x1x1xf32>
    %cst_42 = arith.constant 1.000000e+00 : f32
    %71 = vector.broadcast %cst_42 : f32 to vector<8x1x1xf32>
    %72 = arith.divf %71, %70 : vector<8x1x1xf32>
    %73 = vector.broadcast %72 : vector<8x1x1xf32> to vector<8x16x16xf32>
    %74 = arith.mulf %66, %73 : vector<8x16x16xf32>
    %75 = arith.cmpf one, %74, %74 : vector<8x16x16xf32>
    %cst_43 = arith.constant 0.000000e+00 : f32
    %76 = vector.broadcast %cst_43 : f32 to vector<8x16x16xf32>
    %77 = arith.select %75, %76, %74 : vector<8x16x16xi1>, vector<8x16x16xf32>
    %cst_44 = arith.constant 0.000000e+00 : f32
    %cst_45 = arith.constant 1.000000e+00 : f32
    %78 = vector.broadcast %cst_44 : f32 to vector<8x16x16xf32>
    %79 = arith.maximumf %78, %77 : vector<8x16x16xf32>
    %80 = vector.broadcast %cst_45 : f32 to vector<8x16x16xf32>
    %81 = arith.minimumf %80, %79 : vector<8x16x16xf32>
    %c0_46 = arith.constant 0 : index
    %c0_47 = arith.constant 0 : index
    %c0_48 = arith.constant 0 : index
    %c0_49 = arith.constant 0 : index
    %82 = vector.load %arg14[%c0_46, %c0_47, %c0_48, %c0_49] : memref<1x8x16x16xf32, #tpu.memory_space<vmem>>, vector<1x8x16x16xf32>
    %83 = vector.shape_cast %82 : vector<1x8x16x16xf32> to vector<8x16x16xf32>
    %84 = arith.mulf %81, %65 : vector<8x16x16xf32>
    %85 = arith.addf %83, %84 : vector<8x16x16xf32>
    %c0_50 = arith.constant 0 : index
    %c0_51 = arith.constant 0 : index
    %c0_52 = arith.constant 0 : index
    %c0_53 = arith.constant 0 : index
    %86 = vector.load %arg14[%c0_50, %c0_51, %c0_52, %c0_53] : memref<1x8x16x16xf32, #tpu.memory_space<vmem>>, vector<1x8x16x16xf32>
    %87 = vector.shape_cast %86 : vector<1x8x16x16xf32> to vector<8x16x16xf32>
    %88 = vector.shape_cast %85 : vector<8x16x16xf32> to vector<1x8x16x16xf32>
    tpu.vector_store %arg14[%c0_50, %c0_51, %c0_52, %c0_53], %88 {strides = array<i32>} : memref<1x8x16x16xf32, #tpu.memory_space<vmem>>, vector<1x8x16x16xf32>,
    return
  }
  func.func @transform_0(%arg0: i32, %arg1: i32) -> (i32, i32, i32) {
    %c1_i32 = arith.constant 1 : i32
    %0 = arith.muli %arg0, %c1_i32 : i32
    %1 = arith.addi %0, %arg1 : i32
    %c0_i32 = arith.constant 0 : i32
    %c0_i32_0 = arith.constant 0 : i32
    %c0_i32_1 = arith.constant 0 : i32
    return %1, %c0_i32, %c0_i32_0 : i32, i32, i32
  }
  func.func @transform_1(%arg0: i32, %arg1: i32) -> (i32, i32, i32) {
    %c1_i32 = arith.constant 1 : i32
    %0 = arith.muli %arg0, %c1_i32 : i32
    %1 = arith.addi %0, %arg1 : i32
    %c0_i32 = arith.constant 0 : i32
    %c0_i32_0 = arith.constant 0 : i32
    %c0_i32_1 = arith.constant 0 : i32
    return %1, %c0_i32, %c0_i32_0 : i32, i32, i32
  }
  func.func @transform_2(%arg0: i32, %arg1: i32) -> (i32, i32) {
    %c0_i32 = arith.constant 0 : i32
    %c0_i32_0 = arith.constant 0 : i32
    %c0_i32_1 = arith.constant 0 : i32
    return %c0_i32, %c0_i32_0 : i32, i32
  }
  func.func @transform_3(%arg0: i32, %arg1: i32) -> (i32, i32) {
    %c0_i32 = arith.constant 0 : i32
    %c0_i32_0 = arith.constant 0 : i32
    %c0_i32_1 = arith.constant 0 : i32
    return %c0_i32, %c0_i32_0 : i32, i32
  }
  func.func @transform_4(%arg0: i32, %arg1: i32) -> (i32, i32) {
    %c0_i32 = arith.constant 0 : i32
    %c0_i32_0 = arith.constant 0 : i32
    %c0_i32_1 = arith.constant 0 : i32
    return %c0_i32, %c0_i32_0 : i32, i32
  }
  func.func @transform_5(%arg0: i32, %arg1: i32) -> (i32, i32) {
    %c0_i32 = arith.constant 0 : i32
    %c0_i32_0 = arith.constant 0 : i32
    %c0_i32_1 = arith.constant 0 : i32
    return %c0_i32, %c0_i32_0 : i32, i32
  }
  func.func @transform_6(%arg0: i32, %arg1: i32) -> (i32, i32) {
    %c0_i32 = arith.constant 0 : i32
    %c0_i32_0 = arith.constant 0 : i32
    %c0_i32_1 = arith.constant 0 : i32
    return %c0_i32, %c0_i32_0 : i32, i32
  }
  func.func @transform_7(%arg0: i32, %arg1: i32) -> (i32, i32) {
    %c0_i32 = arith.constant 0 : i32
    %c0_i32_0 = arith.constant 0 : i32
    %c0_i32_1 = arith.constant 0 : i32
    return %c0_i32, %c0_i32_0 : i32, i32
  }
  func.func @transform_8(%arg0: i32, %arg1: i32) -> (i32, i32) {
    %c0_i32 = arith.constant 0 : i32
    %c0_i32_0 = arith.constant 0 : i32
    %c0_i32_1 = arith.constant 0 : i32
    return %c0_i32, %c0_i32_0 : i32, i32
  }
  func.func @transform_9(%arg0: i32, %arg1: i32) -> (i32, i32) {
    %c0_i32 = arith.constant 0 : i32
    %c0_i32_0 = arith.constant 0 : i32
    %c0_i32_1 = arith.constant 0 : i32
    return %c0_i32, %c0_i32_0 : i32, i32
  }
  func.func @transform_10(%arg0: i32, %arg1: i32) -> (i32, i32) {
    %c0_i32 = arith.constant 0 : i32
    %c0_i32_0 = arith.constant 0 : i32
    %c0_i32_1 = arith.constant 0 : i32
    return %c0_i32, %c0_i32_0 : i32, i32
  }
  func.func @transform_11(%arg0: i32, %arg1: i32) -> (i32, i32) {
    %c0_i32 = arith.constant 0 : i32
    %c0_i32_0 = arith.constant 0 : i32
    %c0_i32_1 = arith.constant 0 : i32
    return %c0_i32, %c0_i32_0 : i32, i32
  }
  func.func @transform_12(%arg0: i32, %arg1: i32) -> (i32, i32, i32, i32) {
    %c0_i32 = arith.constant 0 : i32
    %c0_i32_0 = arith.constant 0 : i32
    %c0_i32_1 = arith.constant 0 : i32
    %c0_i32_2 = arith.constant 0 : i32
    return %arg0, %c0_i32, %c0_i32_0, %c0_i32_1 : i32, i32, i32, i32
  }
}

</mosaic_0001>

<llo_original>
// kernel: tpu_custom_call.1
$region0: #{tpu_custom_call.1}
  #allocation0 [shape = 'u32[]', space=smem, size = 0x4, offset = 0x4, fixed_abs, tag = 'smem constant byte address 0x4 - core index']
  #allocation1 [shape = 'u32[144,128]{1,0:T(1,128)}', space=vmem, size = 0x12000, scoped, tag = 'internal scratch']
  %s0 = inlined_call_operand.hbm [shape: f32[8,16,16], index: 0, kind: input, shape index: {}]
  %s1 = inlined_call_operand.hbm [shape: f32[8,16,16], index: 1, kind: input, shape index: {}]
  %s2 = inlined_call_operand.hbm [shape: bf16[16,16], index: 2, kind: input, shape index: {}]
  %s3 = inlined_call_operand.vmem [shape: bf16[16,16], index: 3, kind: input, shape index: {}]
  %s4 = inlined_call_operand.hbm [shape: bf16[16,16], index: 4, kind: input, shape index: {}]
  %s5 = inlined_call_operand.vmem [shape: bf16[16,16], index: 5, kind: input, shape index: {}]
  %s6 = inlined_call_operand.hbm [shape: bf16[128,128], index: 6, kind: input, shape index: {}]
  %s7 = inlined_call_operand.hbm [shape: bf16[128,128], index: 7, kind: input, shape index: {}]
  %s8 = inlined_call_operand.hbm [shape: bf16[128,128], index: 8, kind: input, shape index: {}]
  %s9 = inlined_call_operand.hbm [shape: bf16[128,128], index: 9, kind: input, shape index: {}]
  %s10 = inlined_call_operand.hbm [shape: bf16[128,128], index: 10, kind: input, shape index: {}]
  %s11 = inlined_call_operand.hbm [shape: bf16[128,128], index: 11, kind: input, shape index: {}]
  %s12 = inlined_call_operand.hbm [shape: f32[1,8,16,16], index: 12, kind: output, shape index: {}]
  %s13 = sld [smem:[#allocation0]]
  $region102: #{tpu_custom_call.1} parent=0
    _
  %s15 = ssub.s32 1, %s13
  %s16 = scalar_select 0, %s15, %s13
  $region1: #{tpu_custom_call.1} parent=0
    #allocation2 [shape = 'u8[65536]{0}', space=vmem, size = 0x10000, scoped, tag = 'input window, operand 0, single buffered']
    #allocation3 [shape = 's32[1]{0}', space=sflag, size = 0x4, scoped, tag = 'scoped memory for tpu_custom_call.1']
    #allocation4 [shape = 's32[1]{0}', space=sflag, size = 0x4, scoped, tag = 'scoped memory for tpu_custom_call.1']
    #allocation5 [shape = 'u8[65536]{0}', space=vmem, size = 0x10000, scoped, tag = 'input window, operand 1, single buffered']
    #allocation6 [shape = 's32[1]{0}', space=sflag, size = 0x4, scoped, tag = 'scoped memory for tpu_custom_call.1']
    #allocation7 [shape = 'u8[4096]{0}', space=vmem, size = 0x1000, scoped, tag = 'input window, operand 2, single buffered']
    #allocation8 [shape = 'u8[4096]{0}', space=vmem, size = 0x1000, scoped, tag = 'input window, operand 4, single buffered']
    #allocation9 [shape = 's32[1]{0}', space=sflag, size = 0x4, scoped, tag = 'scoped memory for tpu_custom_call.1']
    #allocation10 [shape = 'u8[32768]{0}', space=vmem, size = 0x8000, scoped, tag = 'input window, operand 6, single buffered']
    #allocation11 [shape = 'u8[32768]{0}', space=vmem, size = 0x8000, scoped, tag = 'input window, operand 7, single buffered']
    #allocation12 [shape = 's32[1]{0}', space=sflag, size = 0x4, scoped, tag = 'scoped memory for tpu_custom_call.1']
    #allocation13 [shape = 'u8[32768]{0}', space=vmem, size = 0x8000, scoped, tag = 'input window, operand 8, single buffered']
    #allocation14 [shape = 'u8[32768]{0}', space=vmem, size = 0x8000, scoped, tag = 'input window, operand 9, single buffered']
    #allocation15 [shape = 's32[1]{0}', space=sflag, size = 0x4, scoped, tag = 'scoped memory for tpu_custom_call.1']
    #allocation16 [shape = 'u8[32768]{0}', space=vmem, size = 0x8000, scoped, tag = 'input window, operand 10, single buffered']
    #allocation17 [shape = 'u8[32768]{0}', space=vmem, size = 0x8000, scoped, tag = 'input window, operand 11, single buffered']
    #allocation18 [shape = 's32[1]{0}', space=sflag, size = 0x4, scoped, tag = 'scoped memory for tpu_custom_call.1']
    #allocation19 [shape = 'u8[65536]{0}', space=vmem, size = 0x10000, scoped, tag = 'output window, operand 0, single buffered']
    %17 = vsyncpa [#allocation3], 0
    %18 = vsyncpa [#allocation6], 0
    %19 = vsyncpa [#allocation9], 0
    %20 = vsyncpa [#allocation12], 0
    %21 = vsyncpa [#allocation15], 0
    %22 = vsyncpa [#allocation18], 0
    %23 = vsyncpa [#allocation4], 0
    // Predicated region
    $region2: #{tpu_custom_call.1} parent=1 // pred_check
      _
    $region3: #{tpu_custom_call.1} parent=1 // pred_check_branch
      %25 = sbr.rel (0) target = $region5
    $region4: #{tpu_custom_call.1} parent=1 // pred_region
      %s26 = sadd.s32 0, 0
      %s27 = smul.u32 8, %s26
      %s29 = ssub.s32 2048, 2048
      %30 = vsyncadd [#allocation3], %s29
      %s31 = smul.addr %s27, 2
      %s32 = smul.addr %s31, 128
      %s33 = scalar_lea.hbm %s0, %s32
      %s34 = sshll.u32 [#allocation2], 4
      %s35 = int_to_ptr.vmem [resolvable:$true] %s34
      %40 = dma.hbm_to_vmem [thread:$0]  %s33, 2048, %s35, [#allocation3], 128, 128, 8
    $region5: #{tpu_custom_call.1} parent=1 // pred_fallthru
      _
    // Predicated region
    $region6: #{tpu_custom_call.1} parent=1 // pred_check
      _
    $region7: #{tpu_custom_call.1} parent=1 // pred_check_branch
      %42 = sbr.rel (0) target = $region9
    $region8: #{tpu_custom_call.1} parent=1 // pred_region
      %s43 = sadd.s32 0, 0
      %s44 = smul.u32 8, %s43
      %s46 = ssub.s32 2048, 2048
      %47 = vsyncadd [#allocation6], %s46
      %s48 = smul.addr %s44, 2
      %s49 = smul.addr %s48, 128
      %s50 = scalar_lea.hbm %s1, %s49
      %s51 = sshll.u32 [#allocation5], 4
      %s52 = int_to_ptr.vmem [resolvable:$true] %s51
      %57 = dma.hbm_to_vmem [thread:$0]  %s50, 2048, %s52, [#allocation6], 128, 128, 8
    $region9: #{tpu_custom_call.1} parent=1 // pred_fallthru
      _
    // Predicated region
    $region10: #{tpu_custom_call.1} parent=1 // pred_check
      _
    $region11: #{tpu_custom_call.1} parent=1 // pred_check_branch
      %59 = sbr.rel (0) target = $region13
    $region12: #{tpu_custom_call.1} parent=1 // pred_region
      %s61 = ssub.s32 128, 128
      %62 = vsyncadd [#allocation6], %s61
      %s63 = sshll.u32 [#allocation7], 4
      %s64 = int_to_ptr.vmem [resolvable:$true] %s63
      %69 = dma.hbm_to_vmem [thread:$0]  %s2, 128, %s64, [#allocation6], 64, 64, 4
    $region13: #{tpu_custom_call.1} parent=1 // pred_fallthru
      _
    // Predicated region
    $region14: #{tpu_custom_call.1} parent=1 // pred_check
      _
    $region15: #{tpu_custom_call.1} parent=1 // pred_check_branch
      %71 = sbr.rel (0) target = $region17
    $region16: #{tpu_custom_call.1} parent=1 // pred_region
      _
    $region17: #{tpu_custom_call.1} parent=1 // pred_fallthru
      _
    // Predicated region
    $region18: #{tpu_custom_call.1} parent=1 // pred_check
      _
    $region19: #{tpu_custom_call.1} parent=1 // pred_check_branch
      %73 = sbr.rel (0) target = $region21
    $region20: #{tpu_custom_call.1} parent=1 // pred_region
      %s75 = ssub.s32 128, 128
      %76 = vsyncadd [#allocation9], %s75
      %s77 = sshll.u32 [#allocation8], 4
      %s78 = int_to_ptr.vmem [resolvable:$true] %s77
      %83 = dma.hbm_to_vmem [thread:$0]  %s4, 128, %s78, [#allocation9], 64, 64, 4
    $region21: #{tpu_custom_call.1} parent=1 // pred_fallthru
      _
    // Predicated region
    $region22: #{tpu_custom_call.1} parent=1 // pred_check
      _
    $region23: #{tpu_custom_call.1} parent=1 // pred_check_branch
      %85 = sbr.rel (0) target = $region25
    $region24: #{tpu_custom_call.1} parent=1 // pred_region
      _
    $region25: #{tpu_custom_call.1} parent=1 // pred_fallthru
      _
    // Predicated region
    $region26: #{tpu_custom_call.1} parent=1 // pred_check
      _
    $region27: #{tpu_custom_call.1} parent=1 // pred_check_branch
      %87 = sbr.rel (0) target = $region29
    $region28: #{tpu_custom_call.1} parent=1 // pred_region
      %s89 = ssub.s32 1024, 1024
      %90 = vsyncadd [#allocation9], %s89
      %s91 = sshll.u32 [#allocation10], 4
      %s92 = int_to_ptr.vmem [resolvable:$true] %s91
      %97 = dma.hbm_to_vmem [thread:$0]  %s6, 1024, %s92, [#allocation9], 64, 64, 4
    $region29: #{tpu_custom_call.1} parent=1 // pred_fallthru
      _
    // Predicated region
    $region30: #{tpu_custom_call.1} parent=1 // pred_check
      _
    $region31: #{tpu_custom_call.1} parent=1 // pred_check_branch
      %99 = sbr.rel (0) target = $region33
    $region32: #{tpu_custom_call.1} parent=1 // pred_region
      %s101 = ssub.s32 1024, 1024
      %102 = vsyncadd [#allocation12], %s101
      %s103 = sshll.u32 [#allocation11], 4
      %s104 = int_to_ptr.vmem [resolvable:$true] %s103
      %109 = dma.hbm_to_vmem [thread:$0]  %s7, 1024, %s104, [#allocation12], 64, 64, 4
    $region33: #{tpu_custom_call.1} parent=1 // pred_fallthru
      _
    // Predicated region
    $region34: #{tpu_custom_call.1} parent=1 // pred_check
      _
    $region35: #{tpu_custom_call.1} parent=1 // pred_check_branch
      %111 = sbr.rel (0) target = $region37
    $region36: #{tpu_custom_call.1} parent=1 // pred_region
      %s113 = ssub.s32 1024, 1024
      %114 = vsyncadd [#allocation12], %s113
      %s115 = sshll.u32 [#allocation13], 4
      %s116 = int_to_ptr.vmem [resolvable:$true] %s115
      %121 = dma.hbm_to_vmem [thread:$0]  %s8, 1024, %s116, [#allocation12], 64, 64, 4
    $region37: #{tpu_custom_call.1} parent=1 // pred_fallthru
      _
    // Predicated region
    $region38: #{tpu_custom_call.1} parent=1 // pred_check
      _
    $region39: #{tpu_custom_call.1} parent=1 // pred_check_branch
      %123 = sbr.rel (0) target = $region41
    $region40: #{tpu_custom_call.1} parent=1 // pred_region
      %s125 = ssub.s32 1024, 1024
      %126 = vsyncadd [#allocation15], %s125
      %s127 = sshll.u32 [#allocation14], 4
      %s128 = int_to_ptr.vmem [resolvable:$true] %s127
      %133 = dma.hbm_to_vmem [thread:$0]  %s9, 1024, %s128, [#allocation15], 64, 64, 4
    $region41: #{tpu_custom_call.1} parent=1 // pred_fallthru
      _
    // Predicated region
    $region42: #{tpu_custom_call.1} parent=1 // pred_check
      _
    $region43: #{tpu_custom_call.1} parent=1 // pred_check_branch
      %135 = sbr.rel (0) target = $region45
    $region44: #{tpu_custom_call.1} parent=1 // pred_region
      %s137 = ssub.s32 1024, 1024
      %138 = vsyncadd [#allocation15], %s137
      %s139 = sshll.u32 [#allocation16], 4
      %s140 = int_to_ptr.vmem [resolvable:$true] %s139
      %145 = dma.hbm_to_vmem [thread:$0]  %s10, 1024, %s140, [#allocation15], 64, 64, 4
    $region45: #{tpu_custom_call.1} parent=1 // pred_fallthru
      _
    // Predicated region
    $region46: #{tpu_custom_call.1} parent=1 // pred_check
      _
    $region47: #{tpu_custom_call.1} parent=1 // pred_check_branch
      %147 = sbr.rel (0) target = $region49
    $region48: #{tpu_custom_call.1} parent=1 // pred_region
      %s149 = ssub.s32 1024, 1024
      %150 = vsyncadd [#allocation18], %s149
      %s151 = sshll.u32 [#allocation17], 4
      %s152 = int_to_ptr.vmem [resolvable:$true] %s151
      %157 = dma.hbm_to_vmem [thread:$0]  %s11, 1024, %s152, [#allocation18], 64, 64, 4
    $region49: #{tpu_custom_call.1} parent=1 // pred_fallthru
      _
    // Predicated region
    $region50: #{tpu_custom_call.1} parent=1 // pred_check
      _
    $region51: #{tpu_custom_call.1} parent=1 // pred_check_branch
      %159 = sbr.rel (0) target = $region53
    $region52: #{tpu_custom_call.1} parent=1 // pred_region
      %160 = dma.done [#allocation3], 2048
    $region53: #{tpu_custom_call.1} parent=1 // pred_fallthru
      _
    // Predicated region
    $region54: #{tpu_custom_call.1} parent=1 // pred_check
      _
    $region55: #{tpu_custom_call.1} parent=1 // pred_check_branch
      %162 = sbr.rel (0) target = $region57
    $region56: #{tpu_custom_call.1} parent=1 // pred_region
      %163 = dma.done [#allocation6], 2048
    $region57: #{tpu_custom_call.1} parent=1 // pred_fallthru
      _
    // Predicated region
    $region58: #{tpu_custom_call.1} parent=1 // pred_check
      _
    $region59: #{tpu_custom_call.1} parent=1 // pred_check_branch
      %165 = sbr.rel (0) target = $region61
    $region60: #{tpu_custom_call.1} parent=1 // pred_region
      %166 = dma.done [#allocation6], 128
    $region61: #{tpu_custom_call.1} parent=1 // pred_fallthru
      _
    // Predicated region
    $region62: #{tpu_custom_call.1} parent=1 // pred_check
      _
    $region63: #{tpu_custom_call.1} parent=1 // pred_check_branch
      %168 = sbr.rel (0) target = $region65
    $region64: #{tpu_custom_call.1} parent=1 // pred_region
      %169 = dma.done [#allocation9], 128
    $region65: #{tpu_custom_call.1} parent=1 // pred_fallthru
      _
    // Predicated region
    $region66: #{tpu_custom_call.1} parent=1 // pred_check
      _
    $region67: #{tpu_custom_call.1} parent=1 // pred_check_branch
      %171 = sbr.rel (0) target = $region69
    $region68: #{tpu_custom_call.1} parent=1 // pred_region
      %172 = dma.done [#allocation9], 1024
    $region69: #{tpu_custom_call.1} parent=1 // pred_fallthru
      _
    // Predicated region
    $region70: #{tpu_custom_call.1} parent=1 // pred_check
      _
    $region71: #{tpu_custom_call.1} parent=1 // pred_check_branch
      %174 = sbr.rel (0) target = $region73
    $region72: #{tpu_custom_call.1} parent=1 // pred_region
      %175 = dma.done [#allocation12], 1024
    $region73: #{tpu_custom_call.1} parent=1 // pred_fallthru
      _
    // Predicated region
    $region74: #{tpu_custom_call.1} parent=1 // pred_check
      _
    $region75: #{tpu_custom_call.1} parent=1 // pred_check_branch
      %177 = sbr.rel (0) target = $region77
    $region76: #{tpu_custom_call.1} parent=1 // pred_region
      %178 = dma.done [#allocation12], 1024
    $region77: #{tpu_custom_call.1} parent=1 // pred_fallthru
      _
    // Predicated region
    $region78: #{tpu_custom_call.1} parent=1 // pred_check
      _
    $region79: #{tpu_custom_call.1} parent=1 // pred_check_branch
      %180 = sbr.rel (0) target = $region81
    $region80: #{tpu_custom_call.1} parent=1 // pred_region
      %181 = dma.done [#allocation15], 1024
    $region81: #{tpu_custom_call.1} parent=1 // pred_fallthru
      _
    // Predicated region
    $region82: #{tpu_custom_call.1} parent=1 // pred_check
      _
    $region83: #{tpu_custom_call.1} parent=1 // pred_check_branch
      %183 = sbr.rel (0) target = $region85
    $region84: #{tpu_custom_call.1} parent=1 // pred_region
      %184 = dma.done [#allocation15], 1024
    $region85: #{tpu_custom_call.1} parent=1 // pred_fallthru
      _
    // Predicated region
    $region86: #{tpu_custom_call.1} parent=1 // pred_check
      _
    $region87: #{tpu_custom_call.1} parent=1 // pred_check_branch
      %186 = sbr.rel (0) target = $region89
    $region88: #{tpu_custom_call.1} parent=1 // pred_region
      %187 = dma.done [#allocation18], 1024
    $region89: #{tpu_custom_call.1} parent=1 // pred_fallthru
      _
    %s188 = sadd.s32 0, 0
    %s189 = smul.u32 8, %s188
    %s190 = sadd.s32 0, 0
    %s191 = smul.u32 8, %s190
    %p193 = scmp.eq.s32.totalorder 0, 0
    // Predicated region
    $region90: #{tpu_custom_call.1} parent=1 // pred_check
      %p194 = pneg %p193
    $region91: #{tpu_custom_call.1} parent=1 // pred_check_branch
      %196 = sbr.rel (%p194) target = $region93
    $region92: #{tpu_custom_call.1} parent=1 // pred_region
      %vm197 = vcmask 130048
      %198 = vst.msk [vmem:[#allocation19] sm:$0xff] %vm197, 0.0
      %199 = vst.msk [vmem:[#allocation19 + $0x8] sm:$0xff] %vm197, 0.0
      %200 = vst.msk [vmem:[#allocation19 + $0x10] sm:$0xff] %vm197, 0.0
      %201 = vst.msk [vmem:[#allocation19 + $0x18] sm:$0xff] %vm197, 0.0
      %202 = vst.msk [vmem:[#allocation19 + $0x20] sm:$0xff] %vm197, 0.0
      %203 = vst.msk [vmem:[#allocation19 + $0x28] sm:$0xff] %vm197, 0.0
      %204 = vst.msk [vmem:[#allocation19 + $0x30] sm:$0xff] %vm197, 0.0
      %205 = vst.msk [vmem:[#allocation19 + $0x38] sm:$0xff] %vm197, 0.0
      %206 = vst.msk [vmem:[#allocation19 + $0x40] sm:$0xff] %vm197, 0.0
      %207 = vst.msk [vmem:[#allocation19 + $0x48] sm:$0xff] %vm197, 0.0
      %208 = vst.msk [vmem:[#allocation19 + $0x50] sm:$0xff] %vm197, 0.0
      %209 = vst.msk [vmem:[#allocation19 + $0x58] sm:$0xff] %vm197, 0.0
      %210 = vst.msk [vmem:[#allocation19 + $0x60] sm:$0xff] %vm197, 0.0
      %211 = vst.msk [vmem:[#allocation19 + $0x68] sm:$0xff] %vm197, 0.0
      %212 = vst.msk [vmem:[#allocation19 + $0x70] sm:$0xff] %vm197, 0.0
      %213 = vst.msk [vmem:[#allocation19 + $0x78] sm:$0xff] %vm197, 0.0
    $region93: #{tpu_custom_call.1} parent=1 // pred_fallthru
      _
    %v214 = vld [vmem:[#allocation2] sm:$0xff]
    %v215 = vld [vmem:[#allocation2 + $0x8] sm:$0xff]
    %v216 = vld [vmem:[#allocation2 + $0x10] sm:$0xff]
    %v217 = vld [vmem:[#allocation2 + $0x18] sm:$0xff]
    %v218 = vld [vmem:[#allocation2 + $0x20] sm:$0xff]
    %v219 = vld [vmem:[#allocation2 + $0x28] sm:$0xff]
    %v220 = vld [vmem:[#allocation2 + $0x30] sm:$0xff]
    %v221 = vld [vmem:[#allocation2 + $0x38] sm:$0xff]
    %v222 = vld [vmem:[#allocation2 + $0x40] sm:$0xff]
    %v223 = vld [vmem:[#allocation2 + $0x48] sm:$0xff]
    %v224 = vld [vmem:[#allocation2 + $0x50] sm:$0xff]
    %v225 = vld [vmem:[#allocation2 + $0x58] sm:$0xff]
    %v226 = vld [vmem:[#allocation2 + $0x60] sm:$0xff]
    %v227 = vld [vmem:[#allocation2 + $0x68] sm:$0xff]
    %v228 = vld [vmem:[#allocation2 + $0x70] sm:$0xff]
    %v229 = vld [vmem:[#allocation2 + $0x78] sm:$0xff]
    %v230 = vld [vmem:[#allocation5] sm:$0xff]
    %v231 = vld [vmem:[#allocation5 + $0x8] sm:$0xff]
    %v232 = vld [vmem:[#allocation5 + $0x10] sm:$0xff]
    %v233 = vld [vmem:[#allocation5 + $0x18] sm:$0xff]
    %v234 = vld [vmem:[#allocation5 + $0x20] sm:$0xff]
    %v235 = vld [vmem:[#allocation5 + $0x28] sm:$0xff]
    %v236 = vld [vmem:[#allocation5 + $0x30] sm:$0xff]
    %v237 = vld [vmem:[#allocation5 + $0x38] sm:$0xff]
    %v238 = vld [vmem:[#allocation5 + $0x40] sm:$0xff]
    %v239 = vld [vmem:[#allocation5 + $0x48] sm:$0xff]
    %v240 = vld [vmem:[#allocation5 + $0x50] sm:$0xff]
    %v241 = vld [vmem:[#allocation5 + $0x58] sm:$0xff]
    %v242 = vld [vmem:[#allocation5 + $0x60] sm:$0xff]
    %v243 = vld [vmem:[#allocation5 + $0x68] sm:$0xff]
    %v244 = vld [vmem:[#allocation5 + $0x70] sm:$0xff]
    %v245 = vld [vmem:[#allocation5 + $0x78] sm:$0xff]
    %v246 = vsub.f32 %v214, %v230
    %v247 = vsub.f32 %v215, %v231
    %v248 = vsub.f32 %v216, %v232
    %v249 = vsub.f32 %v217, %v233
    %v250 = vsub.f32 %v218, %v234
    %v251 = vsub.f32 %v219, %v235
    %v252 = vsub.f32 %v220, %v236
    %v253 = vsub.f32 %v221, %v237
    %v254 = vsub.f32 %v222, %v238
    %v255 = vsub.f32 %v223, %v239
    %v256 = vsub.f32 %v224, %v240
    %v257 = vsub.f32 %v225, %v241
    %v258 = vsub.f32 %v226, %v242
    %v259 = vsub.f32 %v227, %v243
    %v260 = vsub.f32 %v228, %v244
    %v261 = vsub.f32 %v229, %v245
    %v262 = vpack.c.bf16 %v247, %v246
    %v263 = vpack.c.bf16 %v249, %v248
    %v264 = vpack.c.bf16 %v251, %v250
    %v265 = vpack.c.bf16 %v253, %v252
    %v266 = vpack.c.bf16 %v255, %v254
    %v267 = vpack.c.bf16 %v257, %v256
    %v268 = vpack.c.bf16 %v259, %v258
    %v269 = vpack.c.bf16 %v261, %v260
    %v270 = vunpack.c.l.bf16 %v262
    %v271 = vunpack.c.h.bf16 %v262
    %v272 = vunpack.c.l.bf16 %v263
    %v273 = vunpack.c.h.bf16 %v263
    %v274 = vunpack.c.l.bf16 %v264
    %v275 = vunpack.c.h.bf16 %v264
    %v276 = vunpack.c.l.bf16 %v265
    %v277 = vunpack.c.h.bf16 %v265
    %v278 = vunpack.c.l.bf16 %v266
    %v279 = vunpack.c.h.bf16 %v266
    %v280 = vunpack.c.l.bf16 %v267
    %v281 = vunpack.c.h.bf16 %v267
    %v282 = vunpack.c.l.bf16 %v268
    %v283 = vunpack.c.h.bf16 %v268
    %v284 = vunpack.c.l.bf16 %v269
    %v285 = vunpack.c.h.bf16 %v269
    %v286 = vsub.f32 %v246, %v270
    %v287 = vsub.f32 %v247, %v271
    %v288 = vsub.f32 %v248, %v272
    %v289 = vsub.f32 %v249, %v273
    %v290 = vsub.f32 %v250, %v274
    %v291 = vsub.f32 %v251, %v275
    %v292 = vsub.f32 %v252, %v276
    %v293 = vsub.f32 %v253, %v277
    %v294 = vsub.f32 %v254, %v278
    %v295 = vsub.f32 %v255, %v279
    %v296 = vsub.f32 %v256, %v280
    %v297 = vsub.f32 %v257, %v281
    %v298 = vsub.f32 %v258, %v282
    %v299 = vsub.f32 %v259, %v283
    %v300 = vsub.f32 %v260, %v284
    %v301 = vsub.f32 %v261, %v285
    %v302 = vpack.c.bf16 %v287, %v286
    %v303 = vpack.c.bf16 %v289, %v288
    %v304 = vpack.c.bf16 %v291, %v290
    %v305 = vpack.c.bf16 %v293, %v292
    %v306 = vpack.c.bf16 %v295, %v294
    %v307 = vpack.c.bf16 %v297, %v296
    %v308 = vpack.c.bf16 %v299, %v298
    %v309 = vpack.c.bf16 %v301, %v300
    %v310 = vld [vmem:[#allocation7] sm:$0xf]
    %v311 = vld [vmem:[#allocation7 + $0x4] sm:$0xf]
    %v312 = vld [vmem:[%s3] sm:$0xf]
    %v313 = vld [vmem:[%s3 + $0x4] sm:$0xf]
    %v316 = vunpack.c.l.b16 %v310
    %v317 = vunpack.c.l.b16 %v311
    %v318 = vpack.c.b16 %v317, %v316
    %vm320 = vcmask 130048
    %v322 = vsel %vm320, %v302, 0
    %v325 = vsel %vm320, %v303, 0
    %v328 = vsel %vm320, %v304, 0
    %v331 = vsel %vm320, %v305, 0
    %v334 = vsel %vm320, %v306, 0
    %v337 = vsel %vm320, %v307, 0
    %v340 = vsel %vm320, %v308, 0
    %v343 = vsel %vm320, %v309, 0
    %345 = vmatprep.subr.bf16.mxu0 0
    %346 = vmatpush1.bf16.msra.mxu0 %v318
    %347 = vmatprep.subr.bf16.mxu0 0
    %348 = vmatpush1.bf16.msra.mxu0 0
    %349 = vmatprep.subr.bf16.mxu0 0
    %350 = vmatpush1.bf16.msra.mxu0 0
    %351 = vmatprep.subr.bf16.mxu0 0
    %352 = vmatpush1.bf16.msra.mxu0 0
    %353 = vmatprep.subr.bf16.mxu0 0
    %354 = vmatpush1.bf16.msra.mxu0 0
    %355 = vmatprep.subr.bf16.mxu0 0
    %356 = vmatpush1.bf16.msra.mxu0 0
    %357 = vmatprep.subr.bf16.mxu0 0
    %358 = vmatpush1.bf16.msra.mxu0 0
    %359 = vmatprep.subr.bf16.mxu0 0
    %360 = vmatpush1.bf16.msra.mxu0 0
    %361 = vmatprep.subr.bf16.mxu0 0
    %362 = vmatpush1.bf16.msra.mxu0 0
    %363 = vmatprep.subr.bf16.mxu0 0
    %364 = vmatpush1.bf16.msra.mxu0 0
    %365 = vmatprep.subr.bf16.mxu0 0
    %366 = vmatpush1.bf16.msra.mxu0 0
    %367 = vmatprep.subr.bf16.mxu0 0
    %368 = vmatpush1.bf16.msra.mxu0 0
    %369 = vmatprep.subr.bf16.mxu0 0
    %370 = vmatpush1.bf16.msra.mxu0 0
    %371 = vmatprep.subr.bf16.mxu0 0
    %372 = vmatpush1.bf16.msra.mxu0 0
    %373 = vmatprep.subr.bf16.mxu0 0
    %374 = vmatpush1.bf16.msra.mxu0 0
    %375 = vmatprep.subr.bf16.mxu0 0
    %376 = vmatpush1.bf16.msra.mxu0 0
    %377 = vmatprep.mubr.bf16.mxu0 0
    %378 = vmatmul.mubr.bf16.gmra.mrb[0].mxu0 %v322
    %v379 = vpop.f32.mrb[0].mxu0
    %v380 = vadd.f32 0.0, %v379
    %v381 = vpop.f32.mrb[0].mxu0
    %v382 = vpop.f32.mrb[0].mxu0
    %v383 = vadd.f32 0.0, %v382
    %v384 = vpop.f32.mrb[0].mxu0
    %385 = vmatprep.mubr.bf16.mxu0 0
    %386 = vmatmul.mubr.bf16.gmra.mrb[0].mxu0 %v325
    %v387 = vpop.f32.mrb[0].mxu0
    %v388 = vadd.f32 0.0, %v387
    %v389 = vpop.f32.mrb[0].mxu0
    %v390 = vpop.f32.mrb[0].mxu0
    %v391 = vadd.f32 0.0, %v390
    %v392 = vpop.f32.mrb[0].mxu0
    %393 = vmatprep.mubr.bf16.mxu0 0
    %394 = vmatmul.mubr.bf16.gmra.mrb[0].mxu0 %v328
    %v395 = vpop.f32.mrb[0].mxu0
    %v396 = vadd.f32 0.0, %v395
    %v397 = vpop.f32.mrb[0].mxu0
    %v398 = vpop.f32.mrb[0].mxu0
    %v399 = vadd.f32 0.0, %v398
    %v400 = vpop.f32.mrb[0].mxu0
    %401 = vmatprep.mubr.bf16.mxu0 0
    %402 = vmatmul.mubr.bf16.gmra.mrb[0].mxu0 %v331
    %v403 = vpop.f32.mrb[0].mxu0
    %v404 = vadd.f32 0.0, %v403
    %v405 = vpop.f32.mrb[0].mxu0
    %v406 = vpop.f32.mrb[0].mxu0
    %v407 = vadd.f32 0.0, %v406
    %v408 = vpop.f32.mrb[0].mxu0
    %409 = vmatprep.mubr.bf16.mxu0 0
    %410 = vmatmul.mubr.bf16.gmra.mrb[0].mxu0 %v334
    %v411 = vpop.f32.mrb[0].mxu0
    %v412 = vadd.f32 0.0, %v411
    %v413 = vpop.f32.mrb[0].mxu0
    %v414 = vpop.f32.mrb[0].mxu0
    %v415 = vadd.f32 0.0, %v414
    %v416 = vpop.f32.mrb[0].mxu0
    %417 = vmatprep.mubr.bf16.mxu0 0
    %418 = vmatmul.mubr.bf16.gmra.mrb[0].mxu0 %v337
    %v419 = vpop.f32.mrb[0].mxu0
    %v420 = vadd.f32 0.0, %v419
    %v421 = vpop.f32.mrb[0].mxu0
    %v422 = vpop.f32.mrb[0].mxu0
    %v423 = vadd.f32 0.0, %v422
    %v424 = vpop.f32.mrb[0].mxu0
    %425 = vmatprep.mubr.bf16.mxu0 0
    %426 = vmatmul.mubr.bf16.gmra.mrb[0].mxu0 %v340
    %v427 = vpop.f32.mrb[0].mxu0
    %v428 = vadd.f32 0.0, %v427
    %v429 = vpop.f32.mrb[0].mxu0
    %v430 = vpop.f32.mrb[0].mxu0
    %v431 = vadd.f32 0.0, %v430
    %v432 = vpop.f32.mrb[0].mxu0
    %433 = vmatprep.mubr.bf16.mxu0 0
    %434 = vmatmul.mubr.bf16.gmra.mrb[0].mxu0 %v343
    %v435 = vpop.f32.mrb[0].mxu0
    %v436 = vadd.f32 0.0, %v435
    %v437 = vpop.f32.mrb[0].mxu0
    %v438 = vpop.f32.mrb[0].mxu0
    %v439 = vadd.f32 0.0, %v438
    %v440 = vpop.f32.mrb[0].mxu0
    %441 = vdwg.mxu0
    %v443 = vsel %vm320, %v262, 0
    %v446 = vsel %vm320, %v263, 0
    %v449 = vsel %vm320, %v264, 0
    %v452 = vsel %vm320, %v265, 0
    %v455 = vsel %vm320, %v266, 0
    %v458 = vsel %vm320, %v267, 0
    %v461 = vsel %vm320, %v268, 0
    %v464 = vsel %vm320, %v269, 0
    %466 = vmatprep.subr.bf16.mxu0 0
    %467 = vmatpush1.bf16.msra.mxu0 %v318
    %468 = vmatprep.subr.bf16.mxu0 0
    %469 = vmatpush1.bf16.msra.mxu0 0
    %470 = vmatprep.subr.bf16.mxu0 0
    %471 = vmatpush1.bf16.msra.mxu0 0
    %472 = vmatprep.subr.bf16.mxu0 0
    %473 = vmatpush1.bf16.msra.mxu0 0
    %474 = vmatprep.subr.bf16.mxu0 0
    %475 = vmatpush1.bf16.msra.mxu0 0
    %476 = vmatprep.subr.bf16.mxu0 0
    %477 = vmatpush1.bf16.msra.mxu0 0
    %478 = vmatprep.subr.bf16.mxu0 0
    %479 = vmatpush1.bf16.msra.mxu0 0
    %480 = vmatprep.subr.bf16.mxu0 0
    %481 = vmatpush1.bf16.msra.mxu0 0
    %482 = vmatprep.subr.bf16.mxu0 0
    %483 = vmatpush1.bf16.msra.mxu0 0
    %484 = vmatprep.subr.bf16.mxu0 0
    %485 = vmatpush1.bf16.msra.mxu0 0
    %486 = vmatprep.subr.bf16.mxu0 0
    %487 = vmatpush1.bf16.msra.mxu0 0
    %488 = vmatprep.subr.bf16.mxu0 0
    %489 = vmatpush1.bf16.msra.mxu0 0
    %490 = vmatprep.subr.bf16.mxu0 0
    %491 = vmatpush1.bf16.msra.mxu0 0
    %492 = vmatprep.subr.bf16.mxu0 0
    %493 = vmatpush1.bf16.msra.mxu0 0
    %494 = vmatprep.subr.bf16.mxu0 0
    %495 = vmatpush1.bf16.msra.mxu0 0
    %496 = vmatprep.subr.bf16.mxu0 0
    %497 = vmatpush1.bf16.msra.mxu0 0
    %498 = vmatprep.mubr.bf16.mxu0 0
    %499 = vmatmul.mubr.bf16.gmra.mrb[0].mxu0 %v443
    %v500 = vpop.f32.mrb[0].mxu0
    %v501 = vadd.f32 %v380, %v500
    %v502 = vpop.f32.mrb[0].mxu0
    %v503 = vpop.f32.mrb[0].mxu0
    %v504 = vadd.f32 %v383, %v503
    %v505 = vpop.f32.mrb[0].mxu0
    %506 = vmatprep.mubr.bf16.mxu0 0
    %507 = vmatmul.mubr.bf16.gmra.mrb[0].mxu0 %v446
    %v508 = vpop.f32.mrb[0].mxu0
    %v509 = vadd.f32 %v388, %v508
    %v510 = vpop.f32.mrb[0].mxu0
    %v511 = vpop.f32.mrb[0].mxu0
    %v512 = vadd.f32 %v391, %v511
    %v513 = vpop.f32.mrb[0].mxu0
    %514 = vmatprep.mubr.bf16.mxu0 0
    %515 = vmatmul.mubr.bf16.gmra.mrb[0].mxu0 %v449
    %v516 = vpop.f32.mrb[0].mxu0
    %v517 = vadd.f32 %v396, %v516
    %v518 = vpop.f32.mrb[0].mxu0
    %v519 = vpop.f32.mrb[0].mxu0
    %v520 = vadd.f32 %v399, %v519
    %v521 = vpop.f32.mrb[0].mxu0
    %522 = vmatprep.mubr.bf16.mxu0 0
    %523 = vmatmul.mubr.bf16.gmra.mrb[0].mxu0 %v452
    %v524 = vpop.f32.mrb[0].mxu0
    %v525 = vadd.f32 %v404, %v524
    %v526 = vpop.f32.mrb[0].mxu0
    %v527 = vpop.f32.mrb[0].mxu0
    %v528 = vadd.f32 %v407, %v527
    %v529 = vpop.f32.mrb[0].mxu0
    %530 = vmatprep.mubr.bf16.mxu0 0
    %531 = vmatmul.mubr.bf16.gmra.mrb[0].mxu0 %v455
    %v532 = vpop.f32.mrb[0].mxu0
    %v533 = vadd.f32 %v412, %v532
    %v534 = vpop.f32.mrb[0].mxu0
    %v535 = vpop.f32.mrb[0].mxu0
    %v536 = vadd.f32 %v415, %v535
    %v537 = vpop.f32.mrb[0].mxu0
    %538 = vmatprep.mubr.bf16.mxu0 0
    %539 = vmatmul.mubr.bf16.gmra.mrb[0].mxu0 %v458
    %v540 = vpop.f32.mrb[0].mxu0
    %v541 = vadd.f32 %v420, %v540
    %v542 = vpop.f32.mrb[0].mxu0
    %v543 = vpop.f32.mrb[0].mxu0
    %v544 = vadd.f32 %v423, %v543
    %v545 = vpop.f32.mrb[0].mxu0
    %546 = vmatprep.mubr.bf16.mxu0 0
    %547 = vmatmul.mubr.bf16.gmra.mrb[0].mxu0 %v461
    %v548 = vpop.f32.mrb[0].mxu0
    %v549 = vadd.f32 %v428, %v548
    %v550 = vpop.f32.mrb[0].mxu0
    %v551 = vpop.f32.mrb[0].mxu0
    %v552 = vadd.f32 %v431, %v551
    %v553 = vpop.f32.mrb[0].mxu0
    %554 = vmatprep.mubr.bf16.mxu0 0
    %555 = vmatmul.mubr.bf16.gmra.mrb[0].mxu0 %v464
    %v556 = vpop.f32.mrb[0].mxu0
    %v557 = vadd.f32 %v436, %v556
    %v558 = vpop.f32.mrb[0].mxu0
    %v559 = vpop.f32.mrb[0].mxu0
    %v560 = vadd.f32 %v439, %v559
    %v561 = vpop.f32.mrb[0].mxu0
    %562 = vdwg.mxu0
    %v565 = vunpack.c.l.b16 %v312
    %v566 = vunpack.c.l.b16 %v313
    %v567 = vpack.c.b16 %v566, %v565
    %569 = vmatprep.subr.bf16.mxu0 0
    %570 = vmatpush1.bf16.msra.mxu0 %v567
    %571 = vmatprep.subr.bf16.mxu0 0
    %572 = vmatpush1.bf16.msra.mxu0 0
    %573 = vmatprep.subr.bf16.mxu0 0
    %574 = vmatpush1.bf16.msra.mxu0 0
    %575 = vmatprep.subr.bf16.mxu0 0
    %576 = vmatpush1.bf16.msra.mxu0 0
    %577 = vmatprep.subr.bf16.mxu0 0
    %578 = vmatpush1.bf16.msra.mxu0 0
    %579 = vmatprep.subr.bf16.mxu0 0
    %580 = vmatpush1.bf16.msra.mxu0 0
    %581 = vmatprep.subr.bf16.mxu0 0
    %582 = vmatpush1.bf16.msra.mxu0 0
    %583 = vmatprep.subr.bf16.mxu0 0
    %584 = vmatpush1.bf16.msra.mxu0 0
    %585 = vmatprep.subr.bf16.mxu0 0
    %586 = vmatpush1.bf16.msra.mxu0 0
    %587 = vmatprep.subr.bf16.mxu0 0
    %588 = vmatpush1.bf16.msra.mxu0 0
    %589 = vmatprep.subr.bf16.mxu0 0
    %590 = vmatpush1.bf16.msra.mxu0 0
    %591 = vmatprep.subr.bf16.mxu0 0
    %592 = vmatpush1.bf16.msra.mxu0 0
    %593 = vmatprep.subr.bf16.mxu0 0
    %594 = vmatpush1.bf16.msra.mxu0 0
    %595 = vmatprep.subr.bf16.mxu0 0
    %596 = vmatpush1.bf16.msra.mxu0 0
    %597 = vmatprep.subr.bf16.mxu0 0
    %598 = vmatpush1.bf16.msra.mxu0 0
    %599 = vmatprep.subr.bf16.mxu0 0
    %600 = vmatpush1.bf16.msra.mxu0 0
    %601 = vmatprep.mubr.bf16.mxu0 0
    %602 = vmatmul.mubr.bf16.gmra.mrb[0].mxu0 %v443
    %v603 = vpop.f32.mrb[0].mxu0
    %v604 = vadd.f32 0.0, %v603
    %v605 = vpop.f32.mrb[0].mxu0
    %v606 = vpop.f32.mrb[0].mxu0
    %v607 = vadd.f32 0.0, %v606
    %v608 = vpop.f32.mrb[0].mxu0
    %609 = vmatprep.mubr.bf16.mxu0 0
    %610 = vmatmul.mubr.bf16.gmra.mrb[0].mxu0 %v446
    %v611 = vpop.f32.mrb[0].mxu0
    %v612 = vadd.f32 0.0, %v611
    %v613 = vpop.f32.mrb[0].mxu0
    %v614 = vpop.f32.mrb[0].mxu0
    %v615 = vadd.f32 0.0, %v614
    %v616 = vpop.f32.mrb[0].mxu0
    %617 = vmatprep.mubr.bf16.mxu0 0
    %618 = vmatmul.mubr.bf16.gmra.mrb[0].mxu0 %v449
    %v619 = vpop.f32.mrb[0].mxu0
    %v620 = vadd.f32 0.0, %v619
    %v621 = vpop.f32.mrb[0].mxu0
    %v622 = vpop.f32.mrb[0].mxu0
    %v623 = vadd.f32 0.0, %v622
    %v624 = vpop.f32.mrb[0].mxu0
    %625 = vmatprep.mubr.bf16.mxu0 0
    %626 = vmatmul.mubr.bf16.gmra.mrb[0].mxu0 %v452
    %v627 = vpop.f32.mrb[0].mxu0
    %v628 = vadd.f32 0.0, %v627
    %v629 = vpop.f32.mrb[0].mxu0
    %v630 = vpop.f32.mrb[0].mxu0
    %v631 = vadd.f32 0.0, %v630
    %v632 = vpop.f32.mrb[0].mxu0
    %633 = vmatprep.mubr.bf16.mxu0 0
    %634 = vmatmul.mubr.bf16.gmra.mrb[0].mxu0 %v455
    %v635 = vpop.f32.mrb[0].mxu0
    %v636 = vadd.f32 0.0, %v635
    %v637 = vpop.f32.mrb[0].mxu0
    %v638 = vpop.f32.mrb[0].mxu0
    %v639 = vadd.f32 0.0, %v638
    %v640 = vpop.f32.mrb[0].mxu0
    %641 = vmatprep.mubr.bf16.mxu0 0
    %642 = vmatmul.mubr.bf16.gmra.mrb[0].mxu0 %v458
    %v643 = vpop.f32.mrb[0].mxu0
    %v644 = vadd.f32 0.0, %v643
    %v645 = vpop.f32.mrb[0].mxu0
    %v646 = vpop.f32.mrb[0].mxu0
    %v647 = vadd.f32 0.0, %v646
    %v648 = vpop.f32.mrb[0].mxu0
    %649 = vmatprep.mubr.bf16.mxu0 0
    %650 = vmatmul.mubr.bf16.gmra.mrb[0].mxu0 %v461
    %v651 = vpop.f32.mrb[0].mxu0
    %v652 = vadd.f32 0.0, %v651
    %v653 = vpop.f32.mrb[0].mxu0
    %v654 = vpop.f32.mrb[0].mxu0
    %v655 = vadd.f32 0.0, %v654
    %v656 = vpop.f32.mrb[0].mxu0
    %657 = vmatprep.mubr.bf16.mxu0 0
    %658 = vmatmul.mubr.bf16.gmra.mrb[0].mxu0 %v464
    %v659 = vpop.f32.mrb[0].mxu0
    %v660 = vadd.f32 0.0, %v659
    %v661 = vpop.f32.mrb[0].mxu0
    %v662 = vpop.f32.mrb[0].mxu0
    %v663 = vadd.f32 0.0, %v662
    %v664 = vpop.f32.mrb[0].mxu0
    %665 = vdwg.mxu0
    %v666 = vadd.f32 %v501, %v604
    %v667 = vadd.f32 %v504, %v607
    %v668 = vadd.f32 %v509, %v612
    %v669 = vadd.f32 %v512, %v615
    %v670 = vadd.f32 %v517, %v620
    %v671 = vadd.f32 %v520, %v623
    %v672 = vadd.f32 %v525, %v628
    %v673 = vadd.f32 %v528, %v631
    %v674 = vadd.f32 %v533, %v636
    %v675 = vadd.f32 %v536, %v639
    %v676 = vadd.f32 %v541, %v644
    %v677 = vadd.f32 %v544, %v647
    %v678 = vadd.f32 %v549, %v652
    %v679 = vadd.f32 %v552, %v655
    %v680 = vadd.f32 %v557, %v660
    %v681 = vadd.f32 %v560, %v663
    %v682 = vld [vmem:[#allocation8] sm:$0xf]
    %v683 = vld [vmem:[#allocation8 + $0x4] sm:$0xf]
    %v684 = vld [vmem:[%s5] sm:$0xf]
    %v685 = vld [vmem:[%s5 + $0x4] sm:$0xf]
    %v688 = vunpack.c.l.b16 %v682
    %v689 = vunpack.c.l.b16 %v683
    %v690 = vpack.c.b16 %v689, %v688
    %692 = vmatprep.subr.bf16.mxu0 0
    %693 = vmatpush1.bf16.msra.mxu0 %v690
    %694 = vmatprep.subr.bf16.mxu0 0
    %695 = vmatpush1.bf16.msra.mxu0 0
    %696 = vmatprep.subr.bf16.mxu0 0
    %697 = vmatpush1.bf16.msra.mxu0 0
    %698 = vmatprep.subr.bf16.mxu0 0
    %699 = vmatpush1.bf16.msra.mxu0 0
    %700 = vmatprep.subr.bf16.mxu0 0
    %701 = vmatpush1.bf16.msra.mxu0 0
    %702 = vmatprep.subr.bf16.mxu0 0
    %703 = vmatpush1.bf16.msra.mxu0 0
    %704 = vmatprep.subr.bf16.mxu0 0
    %705 = vmatpush1.bf16.msra.mxu0 0
    %706 = vmatprep.subr.bf16.mxu0 0
    %707 = vmatpush1.bf16.msra.mxu0 0
    %708 = vmatprep.subr.bf16.mxu0 0
    %709 = vmatpush1.bf16.msra.mxu0 0
    %710 = vmatprep.subr.bf16.mxu0 0
    %711 = vmatpush1.bf16.msra.mxu0 0
    %712 = vmatprep.subr.bf16.mxu0 0
    %713 = vmatpush1.bf16.msra.mxu0 0
    %714 = vmatprep.subr.bf16.mxu0 0
    %715 = vmatpush1.bf16.msra.mxu0 0
    %716 = vmatprep.subr.bf16.mxu0 0
    %717 = vmatpush1.bf16.msra.mxu0 0
    %718 = vmatprep.subr.bf16.mxu0 0
    %719 = vmatpush1.bf16.msra.mxu0 0
    %720 = vmatprep.subr.bf16.mxu0 0
    %721 = vmatpush1.bf16.msra.mxu0 0
    %722 = vmatprep.subr.bf16.mxu0 0
    %723 = vmatpush1.bf16.msra.mxu0 0
    %724 = vmatprep.mubr.bf16.mxu0 0
    %725 = vmatmul.mubr.bf16.gmra.mrb[0].mxu0 %v322
    %v726 = vpop.f32.mrb[0].mxu0
    %v727 = vadd.f32 0.0, %v726
    %v728 = vpop.f32.mrb[0].mxu0
    %v729 = vpop.f32.mrb[0].mxu0
    %v730 = vadd.f32 0.0, %v729
    %v731 = vpop.f32.mrb[0].mxu0
    %732 = vmatprep.mubr.bf16.mxu0 0
    %733 = vmatmul.mubr.bf16.gmra.mrb[0].mxu0 %v325
    %v734 = vpop.f32.mrb[0].mxu0
    %v735 = vadd.f32 0.0, %v734
    %v736 = vpop.f32.mrb[0].mxu0
    %v737 = vpop.f32.mrb[0].mxu0
    %v738 = vadd.f32 0.0, %v737
    %v739 = vpop.f32.mrb[0].mxu0
    %740 = vmatprep.mubr.bf16.mxu0 0
    %741 = vmatmul.mubr.bf16.gmra.mrb[0].mxu0 %v328
    %v742 = vpop.f32.mrb[0].mxu0
    %v743 = vadd.f32 0.0, %v742
    %v744 = vpop.f32.mrb[0].mxu0
    %v745 = vpop.f32.mrb[0].mxu0
    %v746 = vadd.f32 0.0, %v745
    %v747 = vpop.f32.mrb[0].mxu0
    %748 = vmatprep.mubr.bf16.mxu0 0
    %749 = vmatmul.mubr.bf16.gmra.mrb[0].mxu0 %v331
    %v750 = vpop.f32.mrb[0].mxu0
    %v751 = vadd.f32 0.0, %v750
    %v752 = vpop.f32.mrb[0].mxu0
    %v753 = vpop.f32.mrb[0].mxu0
    %v754 = vadd.f32 0.0, %v753
    %v755 = vpop.f32.mrb[0].mxu0
    %756 = vmatprep.mubr.bf16.mxu0 0
    %757 = vmatmul.mubr.bf16.gmra.mrb[0].mxu0 %v334
    %v758 = vpop.f32.mrb[0].mxu0
    %v759 = vadd.f32 0.0, %v758
    %v760 = vpop.f32.mrb[0].mxu0
    %v761 = vpop.f32.mrb[0].mxu0
    %v762 = vadd.f32 0.0, %v761
    %v763 = vpop.f32.mrb[0].mxu0
    %764 = vmatprep.mubr.bf16.mxu0 0
    %765 = vmatmul.mubr.bf16.gmra.mrb[0].mxu0 %v337
    %v766 = vpop.f32.mrb[0].mxu0
    %v767 = vadd.f32 0.0, %v766
    %v768 = vpop.f32.mrb[0].mxu0
    %v769 = vpop.f32.mrb[0].mxu0
    %v770 = vadd.f32 0.0, %v769
    %v771 = vpop.f32.mrb[0].mxu0
    %772 = vmatprep.mubr.bf16.mxu0 0
    %773 = vmatmul.mubr.bf16.gmra.mrb[0].mxu0 %v340
    %v774 = vpop.f32.mrb[0].mxu0
    %v775 = vadd.f32 0.0, %v774
    %v776 = vpop.f32.mrb[0].mxu0
    %v777 = vpop.f32.mrb[0].mxu0
    %v778 = vadd.f32 0.0, %v777
    %v779 = vpop.f32.mrb[0].mxu0
    %780 = vmatprep.mubr.bf16.mxu0 0
    %781 = vmatmul.mubr.bf16.gmra.mrb[0].mxu0 %v343
    %v782 = vpop.f32.mrb[0].mxu0
    %v783 = vadd.f32 0.0, %v782
    %v784 = vpop.f32.mrb[0].mxu0
    %v785 = vpop.f32.mrb[0].mxu0
    %v786 = vadd.f32 0.0, %v785
    %v787 = vpop.f32.mrb[0].mxu0
    %788 = vdwg.mxu0
    %789 = vmatprep.subr.bf16.mxu0 0
    %790 = vmatpush1.bf16.msra.mxu0 %v690
    %791 = vmatprep.subr.bf16.mxu0 0
    %792 = vmatpush1.bf16.msra.mxu0 0
    %793 = vmatprep.subr.bf16.mxu0 0
    %794 = vmatpush1.bf16.msra.mxu0 0
    %795 = vmatprep.subr.bf16.mxu0 0
    %796 = vmatpush1.bf16.msra.mxu0 0
    %797 = vmatprep.subr.bf16.mxu0 0
    %798 = vmatpush1.bf16.msra.mxu0 0
    %799 = vmatprep.subr.bf16.mxu0 0
    %800 = vmatpush1.bf16.msra.mxu0 0
    %801 = vmatprep.subr.bf16.mxu0 0
    %802 = vmatpush1.bf16.msra.mxu0 0
    %803 = vmatprep.subr.bf16.mxu0 0
    %804 = vmatpush1.bf16.msra.mxu0 0
    %805 = vmatprep.subr.bf16.mxu0 0
    %806 = vmatpush1.bf16.msra.mxu0 0
    %807 = vmatprep.subr.bf16.mxu0 0
    %808 = vmatpush1.bf16.msra.mxu0 0
    %809 = vmatprep.subr.bf16.mxu0 0
    %810 = vmatpush1.bf16.msra.mxu0 0
    %811 = vmatprep.subr.bf16.mxu0 0
    %812 = vmatpush1.bf16.msra.mxu0 0
    %813 = vmatprep.subr.bf16.mxu0 0
    %814 = vmatpush1.bf16.msra.mxu0 0
    %815 = vmatprep.subr.bf16.mxu0 0
    %816 = vmatpush1.bf16.msra.mxu0 0
    %817 = vmatprep.subr.bf16.mxu0 0
    %818 = vmatpush1.bf16.msra.mxu0 0
    %819 = vmatprep.subr.bf16.mxu0 0
    %820 = vmatpush1.bf16.msra.mxu0 0
    %821 = vmatprep.mubr.bf16.mxu0 0
    %822 = vmatmul.mubr.bf16.gmra.mrb[0].mxu0 %v443
    %v823 = vpop.f32.mrb[0].mxu0
    %v824 = vadd.f32 %v727, %v823
    %v825 = vpop.f32.mrb[0].mxu0
    %v826 = vpop.f32.mrb[0].mxu0
    %v827 = vadd.f32 %v730, %v826
    %v828 = vpop.f32.mrb[0].mxu0
    %829 = vmatprep.mubr.bf16.mxu0 0
    %830 = vmatmul.mubr.bf16.gmra.mrb[0].mxu0 %v446
    %v831 = vpop.f32.mrb[0].mxu0
    %v832 = vadd.f32 %v735, %v831
    %v833 = vpop.f32.mrb[0].mxu0
    %v834 = vpop.f32.mrb[0].mxu0
    %v835 = vadd.f32 %v738, %v834
    %v836 = vpop.f32.mrb[0].mxu0
    %837 = vmatprep.mubr.bf16.mxu0 0
    %838 = vmatmul.mubr.bf16.gmra.mrb[0].mxu0 %v449
    %v839 = vpop.f32.mrb[0].mxu0
    %v840 = vadd.f32 %v743, %v839
    %v841 = vpop.f32.mrb[0].mxu0
    %v842 = vpop.f32.mrb[0].mxu0
    %v843 = vadd.f32 %v746, %v842
    %v844 = vpop.f32.mrb[0].mxu0
    %845 = vmatprep.mubr.bf16.mxu0 0
    %846 = vmatmul.mubr.bf16.gmra.mrb[0].mxu0 %v452
    %v847 = vpop.f32.mrb[0].mxu0
    %v848 = vadd.f32 %v751, %v847
    %v849 = vpop.f32.mrb[0].mxu0
    %v850 = vpop.f32.mrb[0].mxu0
    %v851 = vadd.f32 %v754, %v850
    %v852 = vpop.f32.mrb[0].mxu0
    %853 = vmatprep.mubr.bf16.mxu0 0
    %854 = vmatmul.mubr.bf16.gmra.mrb[0].mxu0 %v455
    %v855 = vpop.f32.mrb[0].mxu0
    %v856 = vadd.f32 %v759, %v855
    %v857 = vpop.f32.mrb[0].mxu0
    %v858 = vpop.f32.mrb[0].mxu0
    %v859 = vadd.f32 %v762, %v858
    %v860 = vpop.f32.mrb[0].mxu0
    %861 = vmatprep.mubr.bf16.mxu0 0
    %862 = vmatmul.mubr.bf16.gmra.mrb[0].mxu0 %v458
    %v863 = vpop.f32.mrb[0].mxu0
    %v864 = vadd.f32 %v767, %v863
    %v865 = vpop.f32.mrb[0].mxu0
    %v866 = vpop.f32.mrb[0].mxu0
    %v867 = vadd.f32 %v770, %v866
    %v868 = vpop.f32.mrb[0].mxu0
    %869 = vmatprep.mubr.bf16.mxu0 0
    %870 = vmatmul.mubr.bf16.gmra.mrb[0].mxu0 %v461
    %v871 = vpop.f32.mrb[0].mxu0
    %v872 = vadd.f32 %v775, %v871
    %v873 = vpop.f32.mrb[0].mxu0
    %v874 = vpop.f32.mrb[0].mxu0
    %v875 = vadd.f32 %v778, %v874
    %v876 = vpop.f32.mrb[0].mxu0
    %877 = vmatprep.mubr.bf16.mxu0 0
    %878 = vmatmul.mubr.bf16.gmra.mrb[0].mxu0 %v464
    %v879 = vpop.f32.mrb[0].mxu0
    %v880 = vadd.f32 %v783, %v879
    %v881 = vpop.f32.mrb[0].mxu0
    %v882 = vpop.f32.mrb[0].mxu0
    %v883 = vadd.f32 %v786, %v882
    %v884 = vpop.f32.mrb[0].mxu0
    %885 = vdwg.mxu0
    %v888 = vunpack.c.l.b16 %v684
    %v889 = vunpack.c.l.b16 %v685
    %v890 = vpack.c.b16 %v889, %v888
    %892 = vmatprep.subr.bf16.mxu0 0
    %893 = vmatpush1.bf16.msra.mxu0 %v890
    %894 = vmatprep.subr.bf16.mxu0 0
    %895 = vmatpush1.bf16.msra.mxu0 0
    %896 = vmatprep.subr.bf16.mxu0 0
    %897 = vmatpush1.bf16.msra.mxu0 0
    %898 = vmatprep.subr.bf16.mxu0 0
    %899 = vmatpush1.bf16.msra.mxu0 0
    %900 = vmatprep.subr.bf16.mxu0 0
    %901 = vmatpush1.bf16.msra.mxu0 0
    %902 = vmatprep.subr.bf16.mxu0 0
    %903 = vmatpush1.bf16.msra.mxu0 0
    %904 = vmatprep.subr.bf16.mxu0 0
    %905 = vmatpush1.bf16.msra.mxu0 0
    %906 = vmatprep.subr.bf16.mxu0 0
    %907 = vmatpush1.bf16.msra.mxu0 0
    %908 = vmatprep.subr.bf16.mxu0 0
    %909 = vmatpush1.bf16.msra.mxu0 0
    %910 = vmatprep.subr.bf16.mxu0 0
    %911 = vmatpush1.bf16.msra.mxu0 0
    %912 = vmatprep.subr.bf16.mxu0 0
    %913 = vmatpush1.bf16.msra.mxu0 0
    %914 = vmatprep.subr.bf16.mxu0 0
    %915 = vmatpush1.bf16.msra.mxu0 0
    %916 = vmatprep.subr.bf16.mxu0 0
    %917 = vmatpush1.bf16.msra.mxu0 0
    %918 = vmatprep.subr.bf16.mxu0 0
    %919 = vmatpush1.bf16.msra.mxu0 0
    %920 = vmatprep.subr.bf16.mxu0 0
    %921 = vmatpush1.bf16.msra.mxu0 0
    %922 = vmatprep.subr.bf16.mxu0 0
    %923 = vmatpush1.bf16.msra.mxu0 0
    %924 = vmatprep.mubr.bf16.mxu0 0
    %925 = vmatmul.mubr.bf16.gmra.mrb[0].mxu0 %v443
    %v926 = vpop.f32.mrb[0].mxu0
    %v927 = vadd.f32 0.0, %v926
    %v928 = vpop.f32.mrb[0].mxu0
    %v929 = vpop.f32.mrb[0].mxu0
    %v930 = vadd.f32 0.0, %v929
    %v931 = vpop.f32.mrb[0].mxu0
    %932 = vmatprep.mubr.bf16.mxu0 0
    %933 = vmatmul.mubr.bf16.gmra.mrb[0].mxu0 %v446
    %v934 = vpop.f32.mrb[0].mxu0
    %v935 = vadd.f32 0.0, %v934
    %v936 = vpop.f32.mrb[0].mxu0
    %v937 = vpop.f32.mrb[0].mxu0
    %v938 = vadd.f32 0.0, %v937
    %v939 = vpop.f32.mrb[0].mxu0
    %940 = vmatprep.mubr.bf16.mxu0 0
    %941 = vmatmul.mubr.bf16.gmra.mrb[0].mxu0 %v449
    %v942 = vpop.f32.mrb[0].mxu0
    %v943 = vadd.f32 0.0, %v942
    %v944 = vpop.f32.mrb[0].mxu0
    %v945 = vpop.f32.mrb[0].mxu0
    %v946 = vadd.f32 0.0, %v945
    %v947 = vpop.f32.mrb[0].mxu0
    %948 = vmatprep.mubr.bf16.mxu0 0
    %949 = vmatmul.mubr.bf16.gmra.mrb[0].mxu0 %v452
    %v950 = vpop.f32.mrb[0].mxu0
    %v951 = vadd.f32 0.0, %v950
    %v952 = vpop.f32.mrb[0].mxu0
    %v953 = vpop.f32.mrb[0].mxu0
    %v954 = vadd.f32 0.0, %v953
    %v955 = vpop.f32.mrb[0].mxu0
    %956 = vmatprep.mubr.bf16.mxu0 0
    %957 = vmatmul.mubr.bf16.gmra.mrb[0].mxu0 %v455
    %v958 = vpop.f32.mrb[0].mxu0
    %v959 = vadd.f32 0.0, %v958
    %v960 = vpop.f32.mrb[0].mxu0
    %v961 = vpop.f32.mrb[0].mxu0
    %v962 = vadd.f32 0.0, %v961
    %v963 = vpop.f32.mrb[0].mxu0
    %964 = vmatprep.mubr.bf16.mxu0 0
    %965 = vmatmul.mubr.bf16.gmra.mrb[0].mxu0 %v458
    %v966 = vpop.f32.mrb[0].mxu0
    %v967 = vadd.f32 0.0, %v966
    %v968 = vpop.f32.mrb[0].mxu0
    %v969 = vpop.f32.mrb[0].mxu0
    %v970 = vadd.f32 0.0, %v969
    %v971 = vpop.f32.mrb[0].mxu0
    %972 = vmatprep.mubr.bf16.mxu0 0
    %973 = vmatmul.mubr.bf16.gmra.mrb[0].mxu0 %v461
    %v974 = vpop.f32.mrb[0].mxu0
    %v975 = vadd.f32 0.0, %v974
    %v976 = vpop.f32.mrb[0].mxu0
    %v977 = vpop.f32.mrb[0].mxu0
    %v978 = vadd.f32 0.0, %v977
    %v979 = vpop.f32.mrb[0].mxu0
    %980 = vmatprep.mubr.bf16.mxu0 0
    %981 = vmatmul.mubr.bf16.gmra.mrb[0].mxu0 %v464
    %v982 = vpop.f32.mrb[0].mxu0
    %v983 = vadd.f32 0.0, %v982
    %v984 = vpop.f32.mrb[0].mxu0
    %v985 = vpop.f32.mrb[0].mxu0
    %v986 = vadd.f32 0.0, %v985
    %v987 = vpop.f32.mrb[0].mxu0
    %988 = vdwg.mxu0
    %v989 = vadd.f32 %v824, %v927
    %v990 = vadd.f32 %v827, %v930
    %v991 = vadd.f32 %v832, %v935
    %v992 = vadd.f32 %v835, %v938
    %v993 = vadd.f32 %v840, %v943
    %v994 = vadd.f32 %v843, %v946
    %v995 = vadd.f32 %v848, %v951
    %v996 = vadd.f32 %v851, %v954
    %v997 = vadd.f32 %v856, %v959
    %v998 = vadd.f32 %v859, %v962
    %v999 = vadd.f32 %v864, %v967
    %v1000 = vadd.f32 %v867, %v970
    %v1001 = vadd.f32 %v872, %v975
    %v1002 = vadd.f32 %v875, %v978
    %v1003 = vadd.f32 %v880, %v983
    %v1004 = vadd.f32 %v883, %v986
    %v1005 = vpack.c.bf16 %v667, %v666
    %v1006 = vpack.c.bf16 %v669, %v668
    %v1007 = vpack.c.bf16 %v671, %v670
    %v1008 = vpack.c.bf16 %v673, %v672
    %v1009 = vpack.c.bf16 %v675, %v674
    %v1010 = vpack.c.bf16 %v677, %v676
    %v1011 = vpack.c.bf16 %v679, %v678
    %v1012 = vpack.c.bf16 %v681, %v680
    %v1013 = vunpack.c.l.bf16 %v1005
    %v1014 = vunpack.c.h.bf16 %v1005
    %v1015 = vunpack.c.l.bf16 %v1006
    %v1016 = vunpack.c.h.bf16 %v1006
    %v1017 = vunpack.c.l.bf16 %v1007
    %v1018 = vunpack.c.h.bf16 %v1007
    %v1019 = vunpack.c.l.bf16 %v1008
    %v1020 = vunpack.c.h.bf16 %v1008
    %v1021 = vunpack.c.l.bf16 %v1009
    %v1022 = vunpack.c.h.bf16 %v1009
    %v1023 = vunpack.c.l.bf16 %v1010
    %v1024 = vunpack.c.h.bf16 %v1010
    %v1025 = vunpack.c.l.bf16 %v1011
    %v1026 = vunpack.c.h.bf16 %v1011
    %v1027 = vunpack.c.l.bf16 %v1012
    %v1028 = vunpack.c.h.bf16 %v1012
    %v1029 = vsub.f32 %v666, %v1013
    %v1030 = vsub.f32 %v667, %v1014
    %v1031 = vsub.f32 %v668, %v1015
    %v1032 = vsub.f32 %v669, %v1016
    %v1033 = vsub.f32 %v670, %v1017
    %v1034 = vsub.f32 %v671, %v1018
    %v1035 = vsub.f32 %v672, %v1019
    %v1036 = vsub.f32 %v673, %v1020
    %v1037 = vsub.f32 %v674, %v1021
    %v1038 = vsub.f32 %v675, %v1022
    %v1039 = vsub.f32 %v676, %v1023
    %v1040 = vsub.f32 %v677, %v1024
    %v1041 = vsub.f32 %v678, %v1025
    %v1042 = vsub.f32 %v679, %v1026
    %v1043 = vsub.f32 %v680, %v1027
    %v1044 = vsub.f32 %v681, %v1028
    %v1045 = vpack.c.bf16 %v1030, %v1029
    %v1046 = vpack.c.bf16 %v1032, %v1031
    %v1047 = vpack.c.bf16 %v1034, %v1033
    %v1048 = vpack.c.bf16 %v1036, %v1035
    %v1049 = vpack.c.bf16 %v1038, %v1037
    %v1050 = vpack.c.bf16 %v1040, %v1039
    %v1051 = vpack.c.bf16 %v1042, %v1041
    %v1052 = vpack.c.bf16 %v1044, %v1043
    %v1053 = vpack.c.bf16 %v990, %v989
    %v1054 = vpack.c.bf16 %v992, %v991
    %v1055 = vpack.c.bf16 %v994, %v993
    %v1056 = vpack.c.bf16 %v996, %v995
    %v1057 = vpack.c.bf16 %v998, %v997
    %v1058 = vpack.c.bf16 %v1000, %v999
    %v1059 = vpack.c.bf16 %v1002, %v1001
    %v1060 = vpack.c.bf16 %v1004, %v1003
    %v1061 = vunpack.c.l.bf16 %v1053
    %v1062 = vunpack.c.h.bf16 %v1053
    %v1063 = vunpack.c.l.bf16 %v1054
    %v1064 = vunpack.c.h.bf16 %v1054
    %v1065 = vunpack.c.l.bf16 %v1055
    %v1066 = vunpack.c.h.bf16 %v1055
    %v1067 = vunpack.c.l.bf16 %v1056
    %v1068 = vunpack.c.h.bf16 %v1056
    %v1069 = vunpack.c.l.bf16 %v1057
    %v1070 = vunpack.c.h.bf16 %v1057
    %v1071 = vunpack.c.l.bf16 %v1058
    %v1072 = vunpack.c.h.bf16 %v1058
    %v1073 = vunpack.c.l.bf16 %v1059
    %v1074 = vunpack.c.h.bf16 %v1059
    %v1075 = vunpack.c.l.bf16 %v1060
    %v1076 = vunpack.c.h.bf16 %v1060
    %v1077 = vsub.f32 %v989, %v1061
    %v1078 = vsub.f32 %v990, %v1062
    %v1079 = vsub.f32 %v991, %v1063
    %v1080 = vsub.f32 %v992, %v1064
    %v1081 = vsub.f32 %v993, %v1065
    %v1082 = vsub.f32 %v994, %v1066
    %v1083 = vsub.f32 %v995, %v1067
    %v1084 = vsub.f32 %v996, %v1068
    %v1085 = vsub.f32 %v997, %v1069
    %v1086 = vsub.f32 %v998, %v1070
    %v1087 = vsub.f32 %v999, %v1071
    %v1088 = vsub.f32 %v1000, %v1072
    %v1089 = vsub.f32 %v1001, %v1073
    %v1090 = vsub.f32 %v1002, %v1074
    %v1091 = vsub.f32 %v1003, %v1075
    %v1092 = vsub.f32 %v1004, %v1076
    %v1093 = vpack.c.bf16 %v1078, %v1077
    %v1094 = vpack.c.bf16 %v1080, %v1079
    %v1095 = vpack.c.bf16 %v1082, %v1081
    %v1096 = vpack.c.bf16 %v1084, %v1083
    %v1097 = vpack.c.bf16 %v1086, %v1085
    %v1098 = vpack.c.bf16 %v1088, %v1087
    %v1099 = vpack.c.bf16 %v1090, %v1089
    %v1100 = vpack.c.bf16 %v1092, %v1091
    %v1101 = vadd.f32 %v666, %v989
    %v1102 = vadd.f32 %v667, %v990
    %v1103 = vadd.f32 %v668, %v991
    %v1104 = vadd.f32 %v669, %v992
    %v1105 = vadd.f32 %v670, %v993
    %v1106 = vadd.f32 %v671, %v994
    %v1107 = vadd.f32 %v672, %v995
    %v1108 = vadd.f32 %v673, %v996
    %v1109 = vadd.f32 %v674, %v997
    %v1110 = vadd.f32 %v675, %v998
    %v1111 = vadd.f32 %v676, %v999
    %v1112 = vadd.f32 %v677, %v1000
    %v1113 = vadd.f32 %v678, %v1001
    %v1114 = vadd.f32 %v679, %v1002
    %v1115 = vadd.f32 %v680, %v1003
    %v1116 = vadd.f32 %v681, %v1004
    %v1117 = vpack.c.bf16 %v1102, %v1101
    %v1118 = vpack.c.bf16 %v1104, %v1103
    %v1119 = vpack.c.bf16 %v1106, %v1105
    %v1120 = vpack.c.bf16 %v1108, %v1107
    %v1121 = vpack.c.bf16 %v1110, %v1109
    %v1122 = vpack.c.bf16 %v1112, %v1111
    %v1123 = vpack.c.bf16 %v1114, %v1113
    %v1124 = vpack.c.bf16 %v1116, %v1115
    %v1125 = vunpack.c.l.bf16 %v1117
    %v1126 = vunpack.c.h.bf16 %v1117
    %v1127 = vunpack.c.l.bf16 %v1118
    %v1128 = vunpack.c.h.bf16 %v1118
    %v1129 = vunpack.c.l.bf16 %v1119
    %v1130 = vunpack.c.h.bf16 %v1119
    %v1131 = vunpack.c.l.bf16 %v1120
    %v1132 = vunpack.c.h.bf16 %v1120
    %v1133 = vunpack.c.l.bf16 %v1121
    %v1134 = vunpack.c.h.bf16 %v1121
    %v1135 = vunpack.c.l.bf16 %v1122
    %v1136 = vunpack.c.h.bf16 %v1122
    %v1137 = vunpack.c.l.bf16 %v1123
    %v1138 = vunpack.c.h.bf16 %v1123
    %v1139 = vunpack.c.l.bf16 %v1124
    %v1140 = vunpack.c.h.bf16 %v1124
    %v1141 = vsub.f32 %v1101, %v1125
    %v1142 = vsub.f32 %v1102, %v1126
    %v1143 = vsub.f32 %v1103, %v1127
    %v1144 = vsub.f32 %v1104, %v1128
    %v1145 = vsub.f32 %v1105, %v1129
    %v1146 = vsub.f32 %v1106, %v1130
    %v1147 = vsub.f32 %v1107, %v1131
    %v1148 = vsub.f32 %v1108, %v1132
    %v1149 = vsub.f32 %v1109, %v1133
    %v1150 = vsub.f32 %v1110, %v1134
    %v1151 = vsub.f32 %v1111, %v1135
    %v1152 = vsub.f32 %v1112, %v1136
    %v1153 = vsub.f32 %v1113, %v1137
    %v1154 = vsub.f32 %v1114, %v1138
    %v1155 = vsub.f32 %v1115, %v1139
    %v1156 = vsub.f32 %v1116, %v1140
    %v1157 = vpack.c.bf16 %v1142, %v1141
    %v1158 = vpack.c.bf16 %v1144, %v1143
    %v1159 = vpack.c.bf16 %v1146, %v1145
    %v1160 = vpack.c.bf16 %v1148, %v1147
    %v1161 = vpack.c.bf16 %v1150, %v1149
    %v1162 = vpack.c.bf16 %v1152, %v1151
    %v1163 = vpack.c.bf16 %v1154, %v1153
    %v1164 = vpack.c.bf16 %v1156, %v1155
    %v1165 = vld [vmem:[#allocation10] sm:$0xf]
    %v1166 = vld [vmem:[#allocation10 + $0x4] sm:$0xf]
    %v1167 = vld [vmem:[#allocation10 + $0x8] sm:$0xf]
    %v1168 = vld [vmem:[#allocation10 + $0xc] sm:$0xf]
    %v1169 = vld [vmem:[#allocation10 + $0x10] sm:$0xf]
    %v1170 = vld [vmem:[#allocation10 + $0x14] sm:$0xf]
    %v1171 = vld [vmem:[#allocation10 + $0x18] sm:$0xf]
    %v1172 = vld [vmem:[#allocation10 + $0x1c] sm:$0xf]
    %v1173 = vld [vmem:[#allocation10 + $0x20] sm:$0xf]
    %v1174 = vld [vmem:[#allocation10 + $0x24] sm:$0xf]
    %v1175 = vld [vmem:[#allocation10 + $0x28] sm:$0xf]
    %v1176 = vld [vmem:[#allocation10 + $0x2c] sm:$0xf]
    %v1177 = vld [vmem:[#allocation10 + $0x30] sm:$0xf]
    %v1178 = vld [vmem:[#allocation10 + $0x34] sm:$0xf]
    %v1179 = vld [vmem:[#allocation10 + $0x38] sm:$0xf]
    %v1180 = vld [vmem:[#allocation10 + $0x3c] sm:$0xf]
    %v1181 = vld [vmem:[#allocation11] sm:$0xf]
    %v1182 = vld [vmem:[#allocation11 + $0x4] sm:$0xf]
    %v1183 = vld [vmem:[#allocation11 + $0x8] sm:$0xf]
    %v1184 = vld [vmem:[#allocation11 + $0xc] sm:$0xf]
    %v1185 = vld [vmem:[#allocation11 + $0x10] sm:$0xf]
    %v1186 = vld [vmem:[#allocation11 + $0x14] sm:$0xf]
    %v1187 = vld [vmem:[#allocation11 + $0x18] sm:$0xf]
    %v1188 = vld [vmem:[#allocation11 + $0x1c] sm:$0xf]
    %v1189 = vld [vmem:[#allocation11 + $0x20] sm:$0xf]
    %v1190 = vld [vmem:[#allocation11 + $0x24] sm:$0xf]
    %v1191 = vld [vmem:[#allocation11 + $0x28] sm:$0xf]
    %v1192 = vld [vmem:[#allocation11 + $0x2c] sm:$0xf]
    %v1193 = vld [vmem:[#allocation11 + $0x30] sm:$0xf]
    %v1194 = vld [vmem:[#allocation11 + $0x34] sm:$0xf]
    %v1195 = vld [vmem:[#allocation11 + $0x38] sm:$0xf]
    %v1196 = vld [vmem:[#allocation11 + $0x3c] sm:$0xf]
    %v1213 = vunpack.c.l.b16 %v1181
    %v1214 = vunpack.c.l.b16 %v1182
    %v1215 = vunpack.c.l.b16 %v1183
    %v1216 = vunpack.c.l.b16 %v1184
    %v1217 = vunpack.c.l.b16 %v1185
    %v1218 = vunpack.c.l.b16 %v1186
    %v1219 = vunpack.c.l.b16 %v1187
    %v1220 = vunpack.c.l.b16 %v1188
    %v1221 = vunpack.c.l.b16 %v1189
    %v1222 = vunpack.c.l.b16 %v1190
    %v1223 = vunpack.c.l.b16 %v1191
    %v1224 = vunpack.c.l.b16 %v1192
    %v1225 = vunpack.c.l.b16 %v1193
    %v1226 = vunpack.c.l.b16 %v1194
    %v1227 = vunpack.c.l.b16 %v1195
    %v1228 = vunpack.c.l.b16 %v1196
    %v1229 = vpack.c.b16 %v1214, %v1213
    %v1230 = vpack.c.b16 %v1216, %v1215
    %v1231 = vpack.c.b16 %v1218, %v1217
    %v1232 = vpack.c.b16 %v1220, %v1219
    %v1233 = vpack.c.b16 %v1222, %v1221
    %v1234 = vpack.c.b16 %v1224, %v1223
    %v1235 = vpack.c.b16 %v1226, %v1225
    %v1236 = vpack.c.b16 %v1228, %v1227
    %1245 = vmatprep.subr.bf16.mxu0 0
    %1246 = vmatpush1.bf16.msra.mxu0 %v1005
    %1247 = vmatprep.subr.bf16.mxu0 0
    %1248 = vmatpush1.bf16.msra.mxu0 %v1006
    %1249 = vmatprep.subr.bf16.mxu0 0
    %1250 = vmatpush1.bf16.msra.mxu0 %v1007
    %1251 = vmatprep.subr.bf16.mxu0 0
    %1252 = vmatpush1.bf16.msra.mxu0 %v1008
    %1253 = vmatprep.subr.bf16.mxu0 0
    %1254 = vmatpush1.bf16.msra.mxu0 %v1009
    %1255 = vmatprep.subr.bf16.mxu0 0
    %1256 = vmatpush1.bf16.msra.mxu0 %v1010
    %1257 = vmatprep.subr.bf16.mxu0 0
    %1258 = vmatpush1.bf16.msra.mxu0 %v1011
    %1259 = vmatprep.subr.bf16.mxu0 0
    %1260 = vmatpush1.bf16.msra.mxu0 %v1012
    %1261 = vmatprep.subr.bf16.mxu0 0
    %1262 = vmatpush1.bf16.msra.mxu0 0
    %1263 = vmatprep.subr.bf16.mxu0 0
    %1264 = vmatpush1.bf16.msra.mxu0 0
    %1265 = vmatprep.subr.bf16.mxu0 0
    %1266 = vmatpush1.bf16.msra.mxu0 0
    %1267 = vmatprep.subr.bf16.mxu0 0
    %1268 = vmatpush1.bf16.msra.mxu0 0
    %1269 = vmatprep.subr.bf16.mxu0 0
    %1270 = vmatpush1.bf16.msra.mxu0 0
    %1271 = vmatprep.subr.bf16.mxu0 0
    %1272 = vmatpush1.bf16.msra.mxu0 0
    %1273 = vmatprep.subr.bf16.mxu0 0
    %1274 = vmatpush1.bf16.msra.mxu0 0
    %1275 = vmatprep.subr.bf16.mxu0 0
    %1276 = vmatpush1.bf16.msra.mxu0 0
    %1277 = vmatprep.mubr.bf16.mxu0 0
    %1278 = vmatmul.mubr.bf16.gmra.mrb[0].mxu0 %v1229
    %v1279 = vpop.f32.mrb[0].mxu0
    %v1280 = vadd.f32 0.0, %v1279
    %v1281 = vpop.f32.mrb[0].mxu0
    %v1282 = vpop.f32.mrb[0].mxu0
    %v1283 = vadd.f32 0.0, %v1282
    %v1284 = vpop.f32.mrb[0].mxu0
    %1285 = vmatprep.mubr.bf16.mxu0 0
    %1286 = vmatmul.mubr.bf16.gmra.mrb[0].mxu0 %v1230
    %v1287 = vpop.f32.mrb[0].mxu0
    %v1288 = vadd.f32 0.0, %v1287
    %v1289 = vpop.f32.mrb[0].mxu0
    %v1290 = vpop.f32.mrb[0].mxu0
    %v1291 = vadd.f32 0.0, %v1290
    %v1292 = vpop.f32.mrb[0].mxu0
    %1293 = vmatprep.mubr.bf16.mxu0 0
    %1294 = vmatmul.mubr.bf16.gmra.mrb[0].mxu0 %v1231
    %v1295 = vpop.f32.mrb[0].mxu0
    %v1296 = vadd.f32 0.0, %v1295
    %v1297 = vpop.f32.mrb[0].mxu0
    %v1298 = vpop.f32.mrb[0].mxu0
    %v1299 = vadd.f32 0.0, %v1298
    %v1300 = vpop.f32.mrb[0].mxu0
    %1301 = vmatprep.mubr.bf16.mxu0 0
    %1302 = vmatmul.mubr.bf16.gmra.mrb[0].mxu0 %v1232
    %v1303 = vpop.f32.mrb[0].mxu0
    %v1304 = vadd.f32 0.0, %v1303
    %v1305 = vpop.f32.mrb[0].mxu0
    %v1306 = vpop.f32.mrb[0].mxu0
    %v1307 = vadd.f32 0.0, %v1306
    %v1308 = vpop.f32.mrb[0].mxu0
    %1309 = vmatprep.mubr.bf16.mxu0 0
    %1310 = vmatmul.mubr.bf16.gmra.mrb[0].mxu0 %v1233
    %v1311 = vpop.f32.mrb[0].mxu0
    %v1312 = vadd.f32 0.0, %v1311
    %v1313 = vpop.f32.mrb[0].mxu0
    %v1314 = vpop.f32.mrb[0].mxu0
    %v1315 = vadd.f32 0.0, %v1314
    %v1316 = vpop.f32.mrb[0].mxu0
    %1317 = vmatprep.mubr.bf16.mxu0 0
    %1318 = vmatmul.mubr.bf16.gmra.mrb[0].mxu0 %v1234
    %v1319 = vpop.f32.mrb[0].mxu0
    %v1320 = vadd.f32 0.0, %v1319
    %v1321 = vpop.f32.mrb[0].mxu0
    %v1322 = vpop.f32.mrb[0].mxu0
    %v1323 = vadd.f32 0.0, %v1322
    %v1324 = vpop.f32.mrb[0].mxu0
    %1325 = vmatprep.mubr.bf16.mxu0 0
    %1326 = vmatmul.mubr.bf16.gmra.mrb[0].mxu0 %v1235
    %v1327 = vpop.f32.mrb[0].mxu0
    %v1328 = vadd.f32 0.0, %v1327
    %v1329 = vpop.f32.mrb[0].mxu0
    %v1330 = vpop.f32.mrb[0].mxu0
    %v1331 = vadd.f32 0.0, %v1330
    %v1332 = vpop.f32.mrb[0].mxu0
    %1333 = vmatprep.mubr.bf16.mxu0 0
    %1334 = vmatmul.mubr.bf16.gmra.mrb[0].mxu0 %v1236
    %v1335 = vpop.f32.mrb[0].mxu0
    %v1336 = vadd.f32 0.0, %v1335
    %v1337 = vpop.f32.mrb[0].mxu0
    %v1338 = vpop.f32.mrb[0].mxu0
    %v1339 = vadd.f32 0.0, %v1338
    %v1340 = vpop.f32.mrb[0].mxu0
    %1341 = vdwg.mxu0
    %v1358 = vunpack.c.l.b16 %v1165
    %v1359 = vunpack.c.l.b16 %v1166
    %v1360 = vunpack.c.l.b16 %v1167
    %v1361 = vunpack.c.l.b16 %v1168
    %v1362 = vunpack.c.l.b16 %v1169
    %v1363 = vunpack.c.l.b16 %v1170
    %v1364 = vunpack.c.l.b16 %v1171
    %v1365 = vunpack.c.l.b16 %v1172
    %v1366 = vunpack.c.l.b16 %v1173
    %v1367 = vunpack.c.l.b16 %v1174
    %v1368 = vunpack.c.l.b16 %v1175
    %v1369 = vunpack.c.l.b16 %v1176
    %v1370 = vunpack.c.l.b16 %v1177
    %v1371 = vunpack.c.l.b16 %v1178
    %v1372 = vunpack.c.l.b16 %v1179
    %v1373 = vunpack.c.l.b16 %v1180
    %v1374 = vpack.c.b16 %v1359, %v1358
    %v1375 = vpack.c.b16 %v1361, %v1360
    %v1376 = vpack.c.b16 %v1363, %v1362
    %v1377 = vpack.c.b16 %v1365, %v1364
    %v1378 = vpack.c.b16 %v1367, %v1366
    %v1379 = vpack.c.b16 %v1369, %v1368
    %v1380 = vpack.c.b16 %v1371, %v1370
    %v1381 = vpack.c.b16 %v1373, %v1372
    %1390 = vmatprep.subr.bf16.mxu0 0
    %1391 = vmatpush1.bf16.msra.mxu0 %v1005
    %1392 = vmatprep.subr.bf16.mxu0 0
    %1393 = vmatpush1.bf16.msra.mxu0 %v1006
    %1394 = vmatprep.subr.bf16.mxu0 0
    %1395 = vmatpush1.bf16.msra.mxu0 %v1007
    %1396 = vmatprep.subr.bf16.mxu0 0
    %1397 = vmatpush1.bf16.msra.mxu0 %v1008
    %1398 = vmatprep.subr.bf16.mxu0 0
    %1399 = vmatpush1.bf16.msra.mxu0 %v1009
    %1400 = vmatprep.subr.bf16.mxu0 0
    %1401 = vmatpush1.bf16.msra.mxu0 %v1010
    %1402 = vmatprep.subr.bf16.mxu0 0
    %1403 = vmatpush1.bf16.msra.mxu0 %v1011
    %1404 = vmatprep.subr.bf16.mxu0 0
    %1405 = vmatpush1.bf16.msra.mxu0 %v1012
    %1406 = vmatprep.subr.bf16.mxu0 0
    %1407 = vmatpush1.bf16.msra.mxu0 0
    %1408 = vmatprep.subr.bf16.mxu0 0
    %1409 = vmatpush1.bf16.msra.mxu0 0
    %1410 = vmatprep.subr.bf16.mxu0 0
    %1411 = vmatpush1.bf16.msra.mxu0 0
    %1412 = vmatprep.subr.bf16.mxu0 0
    %1413 = vmatpush1.bf16.msra.mxu0 0
    %1414 = vmatprep.subr.bf16.mxu0 0
    %1415 = vmatpush1.bf16.msra.mxu0 0
    %1416 = vmatprep.subr.bf16.mxu0 0
    %1417 = vmatpush1.bf16.msra.mxu0 0
    %1418 = vmatprep.subr.bf16.mxu0 0
    %1419 = vmatpush1.bf16.msra.mxu0 0
    %1420 = vmatprep.subr.bf16.mxu0 0
    %1421 = vmatpush1.bf16.msra.mxu0 0
    %1422 = vmatprep.mubr.bf16.mxu0 0
    %1423 = vmatmul.mubr.bf16.gmra.mrb[0].mxu0 %v1374
    %v1424 = vpop.f32.mrb[0].mxu0
    %v1425 = vadd.f32 %v1280, %v1424
    %v1426 = vpop.f32.mrb[0].mxu0
    %v1427 = vpop.f32.mrb[0].mxu0
    %v1428 = vadd.f32 %v1283, %v1427
    %v1429 = vpop.f32.mrb[0].mxu0
    %1430 = vmatprep.mubr.bf16.mxu0 0
    %1431 = vmatmul.mubr.bf16.gmra.mrb[0].mxu0 %v1375
    %v1432 = vpop.f32.mrb[0].mxu0
    %v1433 = vadd.f32 %v1288, %v1432
    %v1434 = vpop.f32.mrb[0].mxu0
    %v1435 = vpop.f32.mrb[0].mxu0
    %v1436 = vadd.f32 %v1291, %v1435
    %v1437 = vpop.f32.mrb[0].mxu0
    %1438 = vmatprep.mubr.bf16.mxu0 0
    %1439 = vmatmul.mubr.bf16.gmra.mrb[0].mxu0 %v1376
    %v1440 = vpop.f32.mrb[0].mxu0
    %v1441 = vadd.f32 %v1296, %v1440
    %v1442 = vpop.f32.mrb[0].mxu0
    %v1443 = vpop.f32.mrb[0].mxu0
    %v1444 = vadd.f32 %v1299, %v1443
    %v1445 = vpop.f32.mrb[0].mxu0
    %1446 = vmatprep.mubr.bf16.mxu0 0
    %1447 = vmatmul.mubr.bf16.gmra.mrb[0].mxu0 %v1377
    %v1448 = vpop.f32.mrb[0].mxu0
    %v1449 = vadd.f32 %v1304, %v1448
    %v1450 = vpop.f32.mrb[0].mxu0
    %v1451 = vpop.f32.mrb[0].mxu0
    %v1452 = vadd.f32 %v1307, %v1451
    %v1453 = vpop.f32.mrb[0].mxu0
    %1454 = vmatprep.mubr.bf16.mxu0 0
    %1455 = vmatmul.mubr.bf16.gmra.mrb[0].mxu0 %v1378
    %v1456 = vpop.f32.mrb[0].mxu0
    %v1457 = vadd.f32 %v1312, %v1456
    %v1458 = vpop.f32.mrb[0].mxu0
    %v1459 = vpop.f32.mrb[0].mxu0
    %v1460 = vadd.f32 %v1315, %v1459
    %v1461 = vpop.f32.mrb[0].mxu0
    %1462 = vmatprep.mubr.bf16.mxu0 0
    %1463 = vmatmul.mubr.bf16.gmra.mrb[0].mxu0 %v1379
    %v1464 = vpop.f32.mrb[0].mxu0
    %v1465 = vadd.f32 %v1320, %v1464
    %v1466 = vpop.f32.mrb[0].mxu0
    %v1467 = vpop.f32.mrb[0].mxu0
    %v1468 = vadd.f32 %v1323, %v1467
    %v1469 = vpop.f32.mrb[0].mxu0
    %1470 = vmatprep.mubr.bf16.mxu0 0
    %1471 = vmatmul.mubr.bf16.gmra.mrb[0].mxu0 %v1380
    %v1472 = vpop.f32.mrb[0].mxu0
    %v1473 = vadd.f32 %v1328, %v1472
    %v1474 = vpop.f32.mrb[0].mxu0
    %v1475 = vpop.f32.mrb[0].mxu0
    %v1476 = vadd.f32 %v1331, %v1475
    %v1477 = vpop.f32.mrb[0].mxu0
    %1478 = vmatprep.mubr.bf16.mxu0 0
    %1479 = vmatmul.mubr.bf16.gmra.mrb[0].mxu0 %v1381
    %v1480 = vpop.f32.mrb[0].mxu0
    %v1481 = vadd.f32 %v1336, %v1480
    %v1482 = vpop.f32.mrb[0].mxu0
    %v1483 = vpop.f32.mrb[0].mxu0
    %v1484 = vadd.f32 %v1339, %v1483
    %v1485 = vpop.f32.mrb[0].mxu0
    %1486 = vdwg.mxu0
    %1487 = vmatprep.subr.bf16.mxu0 0
    %1488 = vmatpush1.bf16.msra.mxu0 %v1045
    %1489 = vmatprep.subr.bf16.mxu0 0
    %1490 = vmatpush1.bf16.msra.mxu0 %v1046
    %1491 = vmatprep.subr.bf16.mxu0 0
    %1492 = vmatpush1.bf16.msra.mxu0 %v1047
    %1493 = vmatprep.subr.bf16.mxu0 0
    %1494 = vmatpush1.bf16.msra.mxu0 %v1048
    %1495 = vmatprep.subr.bf16.mxu0 0
    %1496 = vmatpush1.bf16.msra.mxu0 %v1049
    %1497 = vmatprep.subr.bf16.mxu0 0
    %1498 = vmatpush1.bf16.msra.mxu0 %v1050
    %1499 = vmatprep.subr.bf16.mxu0 0
    %1500 = vmatpush1.bf16.msra.mxu0 %v1051
    %1501 = vmatprep.subr.bf16.mxu0 0
    %1502 = vmatpush1.bf16.msra.mxu0 %v1052
    %1503 = vmatprep.subr.bf16.mxu0 0
    %1504 = vmatpush1.bf16.msra.mxu0 0
    %1505 = vmatprep.subr.bf16.mxu0 0
    %1506 = vmatpush1.bf16.msra.mxu0 0
    %1507 = vmatprep.subr.bf16.mxu0 0
    %1508 = vmatpush1.bf16.msra.mxu0 0
    %1509 = vmatprep.subr.bf16.mxu0 0
    %1510 = vmatpush1.bf16.msra.mxu0 0
    %1511 = vmatprep.subr.bf16.mxu0 0
    %1512 = vmatpush1.bf16.msra.mxu0 0
    %1513 = vmatprep.subr.bf16.mxu0 0
    %1514 = vmatpush1.bf16.msra.mxu0 0
    %1515 = vmatprep.subr.bf16.mxu0 0
    %1516 = vmatpush1.bf16.msra.mxu0 0
    %1517 = vmatprep.subr.bf16.mxu0 0
    %1518 = vmatpush1.bf16.msra.mxu0 0
    %1519 = vmatprep.mubr.bf16.mxu0 0
    %1520 = vmatmul.mubr.bf16.gmra.mrb[0].mxu0 %v1374
    %v1521 = vpop.f32.mrb[0].mxu0
    %v1522 = vadd.f32 0.0, %v1521
    %v1523 = vpop.f32.mrb[0].mxu0
    %v1524 = vpop.f32.mrb[0].mxu0
    %v1525 = vadd.f32 0.0, %v1524
    %v1526 = vpop.f32.mrb[0].mxu0
    %1527 = vmatprep.mubr.bf16.mxu0 0
    %1528 = vmatmul.mubr.bf16.gmra.mrb[0].mxu0 %v1375
    %v1529 = vpop.f32.mrb[0].mxu0
    %v1530 = vadd.f32 0.0, %v1529
    %v1531 = vpop.f32.mrb[0].mxu0
    %v1532 = vpop.f32.mrb[0].mxu0
    %v1533 = vadd.f32 0.0, %v1532
    %v1534 = vpop.f32.mrb[0].mxu0
    %1535 = vmatprep.mubr.bf16.mxu0 0
    %1536 = vmatmul.mubr.bf16.gmra.mrb[0].mxu0 %v1376
    %v1537 = vpop.f32.mrb[0].mxu0
    %v1538 = vadd.f32 0.0, %v1537
    %v1539 = vpop.f32.mrb[0].mxu0
    %v1540 = vpop.f32.mrb[0].mxu0
    %v1541 = vadd.f32 0.0, %v1540
    %v1542 = vpop.f32.mrb[0].mxu0
    %1543 = vmatprep.mubr.bf16.mxu0 0
    %1544 = vmatmul.mubr.bf16.gmra.mrb[0].mxu0 %v1377
    %v1545 = vpop.f32.mrb[0].mxu0
    %v1546 = vadd.f32 0.0, %v1545
    %v1547 = vpop.f32.mrb[0].mxu0
    %v1548 = vpop.f32.mrb[0].mxu0
    %v1549 = vadd.f32 0.0, %v1548
    %v1550 = vpop.f32.mrb[0].mxu0
    %1551 = vmatprep.mubr.bf16.mxu0 0
    %1552 = vmatmul.mubr.bf16.gmra.mrb[0].mxu0 %v1378
    %v1553 = vpop.f32.mrb[0].mxu0
    %v1554 = vadd.f32 0.0, %v1553
    %v1555 = vpop.f32.mrb[0].mxu0
    %v1556 = vpop.f32.mrb[0].mxu0
    %v1557 = vadd.f32 0.0, %v1556
    %v1558 = vpop.f32.mrb[0].mxu0
    %1559 = vmatprep.mubr.bf16.mxu0 0
    %1560 = vmatmul.mubr.bf16.gmra.mrb[0].mxu0 %v1379
    %v1561 = vpop.f32.mrb[0].mxu0
    %v1562 = vadd.f32 0.0, %v1561
    %v1563 = vpop.f32.mrb[0].mxu0
    %v1564 = vpop.f32.mrb[0].mxu0
    %v1565 = vadd.f32 0.0, %v1564
    %v1566 = vpop.f32.mrb[0].mxu0
    %1567 = vmatprep.mubr.bf16.mxu0 0
    %1568 = vmatmul.mubr.bf16.gmra.mrb[0].mxu0 %v1380
    %v1569 = vpop.f32.mrb[0].mxu0
    %v1570 = vadd.f32 0.0, %v1569
    %v1571 = vpop.f32.mrb[0].mxu0
    %v1572 = vpop.f32.mrb[0].mxu0
    %v1573 = vadd.f32 0.0, %v1572
    %v1574 = vpop.f32.mrb[0].mxu0
    %1575 = vmatprep.mubr.bf16.mxu0 0
    %1576 = vmatmul.mubr.bf16.gmra.mrb[0].mxu0 %v1381
    %v1577 = vpop.f32.mrb[0].mxu0
    %v1578 = vadd.f32 0.0, %v1577
    %v1579 = vpop.f32.mrb[0].mxu0
    %v1580 = vpop.f32.mrb[0].mxu0
    %v1581 = vadd.f32 0.0, %v1580
    %v1582 = vpop.f32.mrb[0].mxu0
    %1583 = vdwg.mxu0
    %v1584 = vadd.f32 %v1425, %v1522
    %v1585 = vadd.f32 %v1428, %v1525
    %v1586 = vadd.f32 %v1433, %v1530
    %v1587 = vadd.f32 %v1436, %v1533
    %v1588 = vadd.f32 %v1441, %v1538
    %v1589 = vadd.f32 %v1444, %v1541
    %v1590 = vadd.f32 %v1449, %v1546
    %v1591 = vadd.f32 %v1452, %v1549
    %v1592 = vadd.f32 %v1457, %v1554
    %v1593 = vadd.f32 %v1460, %v1557
    %v1594 = vadd.f32 %v1465, %v1562
    %v1595 = vadd.f32 %v1468, %v1565
    %v1596 = vadd.f32 %v1473, %v1570
    %v1597 = vadd.f32 %v1476, %v1573
    %v1598 = vadd.f32 %v1481, %v1578
    %v1599 = vadd.f32 %v1484, %v1581
    %v1600 = vld [vmem:[#allocation13] sm:$0xf]
    %v1601 = vld [vmem:[#allocation13 + $0x4] sm:$0xf]
    %v1602 = vld [vmem:[#allocation13 + $0x8] sm:$0xf]
    %v1603 = vld [vmem:[#allocation13 + $0xc] sm:$0xf]
    %v1604 = vld [vmem:[#allocation13 + $0x10] sm:$0xf]
    %v1605 = vld [vmem:[#allocation13 + $0x14] sm:$0xf]
    %v1606 = vld [vmem:[#allocation13 + $0x18] sm:$0xf]
    %v1607 = vld [vmem:[#allocation13 + $0x1c] sm:$0xf]
    %v1608 = vld [vmem:[#allocation13 + $0x20] sm:$0xf]
    %v1609 = vld [vmem:[#allocation13 + $0x24] sm:$0xf]
    %v1610 = vld [vmem:[#allocation13 + $0x28] sm:$0xf]
    %v1611 = vld [vmem:[#allocation13 + $0x2c] sm:$0xf]
    %v1612 = vld [vmem:[#allocation13 + $0x30] sm:$0xf]
    %v1613 = vld [vmem:[#allocation13 + $0x34] sm:$0xf]
    %v1614 = vld [vmem:[#allocation13 + $0x38] sm:$0xf]
    %v1615 = vld [vmem:[#allocation13 + $0x3c] sm:$0xf]
    %v1616 = vld [vmem:[#allocation14] sm:$0xf]
    %v1617 = vld [vmem:[#allocation14 + $0x4] sm:$0xf]
    %v1618 = vld [vmem:[#allocation14 + $0x8] sm:$0xf]
    %v1619 = vld [vmem:[#allocation14 + $0xc] sm:$0xf]
    %v1620 = vld [vmem:[#allocation14 + $0x10] sm:$0xf]
    %v1621 = vld [vmem:[#allocation14 + $0x14] sm:$0xf]
    %v1622 = vld [vmem:[#allocation14 + $0x18] sm:$0xf]
    %v1623 = vld [vmem:[#allocation14 + $0x1c] sm:$0xf]
    %v1624 = vld [vmem:[#allocation14 + $0x20] sm:$0xf]
    %v1625 = vld [vmem:[#allocation14 + $0x24] sm:$0xf]
    %v1626 = vld [vmem:[#allocation14 + $0x28] sm:$0xf]
    %v1627 = vld [vmem:[#allocation14 + $0x2c] sm:$0xf]
    %v1628 = vld [vmem:[#allocation14 + $0x30] sm:$0xf]
    %v1629 = vld [vmem:[#allocation14 + $0x34] sm:$0xf]
    %v1630 = vld [vmem:[#allocation14 + $0x38] sm:$0xf]
    %v1631 = vld [vmem:[#allocation14 + $0x3c] sm:$0xf]
    %v1648 = vunpack.c.l.b16 %v1616
    %v1649 = vunpack.c.l.b16 %v1617
    %v1650 = vunpack.c.l.b16 %v1618
    %v1651 = vunpack.c.l.b16 %v1619
    %v1652 = vunpack.c.l.b16 %v1620
    %v1653 = vunpack.c.l.b16 %v1621
    %v1654 = vunpack.c.l.b16 %v1622
    %v1655 = vunpack.c.l.b16 %v1623
    %v1656 = vunpack.c.l.b16 %v1624
    %v1657 = vunpack.c.l.b16 %v1625
    %v1658 = vunpack.c.l.b16 %v1626
    %v1659 = vunpack.c.l.b16 %v1627
    %v1660 = vunpack.c.l.b16 %v1628
    %v1661 = vunpack.c.l.b16 %v1629
    %v1662 = vunpack.c.l.b16 %v1630
    %v1663 = vunpack.c.l.b16 %v1631
    %v1664 = vpack.c.b16 %v1649, %v1648
    %v1665 = vpack.c.b16 %v1651, %v1650
    %v1666 = vpack.c.b16 %v1653, %v1652
    %v1667 = vpack.c.b16 %v1655, %v1654
    %v1668 = vpack.c.b16 %v1657, %v1656
    %v1669 = vpack.c.b16 %v1659, %v1658
    %v1670 = vpack.c.b16 %v1661, %v1660
    %v1671 = vpack.c.b16 %v1663, %v1662
    %1680 = vmatprep.subr.bf16.mxu0 0
    %1681 = vmatpush1.bf16.msra.mxu0 %v1053
    %1682 = vmatprep.subr.bf16.mxu0 0
    %1683 = vmatpush1.bf16.msra.mxu0 %v1054
    %1684 = vmatprep.subr.bf16.mxu0 0
    %1685 = vmatpush1.bf16.msra.mxu0 %v1055
    %1686 = vmatprep.subr.bf16.mxu0 0
    %1687 = vmatpush1.bf16.msra.mxu0 %v1056
    %1688 = vmatprep.subr.bf16.mxu0 0
    %1689 = vmatpush1.bf16.msra.mxu0 %v1057
    %1690 = vmatprep.subr.bf16.mxu0 0
    %1691 = vmatpush1.bf16.msra.mxu0 %v1058
    %1692 = vmatprep.subr.bf16.mxu0 0
    %1693 = vmatpush1.bf16.msra.mxu0 %v1059
    %1694 = vmatprep.subr.bf16.mxu0 0
    %1695 = vmatpush1.bf16.msra.mxu0 %v1060
    %1696 = vmatprep.subr.bf16.mxu0 0
    %1697 = vmatpush1.bf16.msra.mxu0 0
    %1698 = vmatprep.subr.bf16.mxu0 0
    %1699 = vmatpush1.bf16.msra.mxu0 0
    %1700 = vmatprep.subr.bf16.mxu0 0
    %1701 = vmatpush1.bf16.msra.mxu0 0
    %1702 = vmatprep.subr.bf16.mxu0 0
    %1703 = vmatpush1.bf16.msra.mxu0 0
    %1704 = vmatprep.subr.bf16.mxu0 0
    %1705 = vmatpush1.bf16.msra.mxu0 0
    %1706 = vmatprep.subr.bf16.mxu0 0
    %1707 = vmatpush1.bf16.msra.mxu0 0
    %1708 = vmatprep.subr.bf16.mxu0 0
    %1709 = vmatpush1.bf16.msra.mxu0 0
    %1710 = vmatprep.subr.bf16.mxu0 0
    %1711 = vmatpush1.bf16.msra.mxu0 0
    %1712 = vmatprep.mubr.bf16.mxu0 0
    %1713 = vmatmul.mubr.bf16.gmra.mrb[0].mxu0 %v1664
    %v1714 = vpop.f32.mrb[0].mxu0
    %v1715 = vadd.f32 0.0, %v1714
    %v1716 = vpop.f32.mrb[0].mxu0
    %v1717 = vpop.f32.mrb[0].mxu0
    %v1718 = vadd.f32 0.0, %v1717
    %v1719 = vpop.f32.mrb[0].mxu0
    %1720 = vmatprep.mubr.bf16.mxu0 0
    %1721 = vmatmul.mubr.bf16.gmra.mrb[0].mxu0 %v1665
    %v1722 = vpop.f32.mrb[0].mxu0
    %v1723 = vadd.f32 0.0, %v1722
    %v1724 = vpop.f32.mrb[0].mxu0
    %v1725 = vpop.f32.mrb[0].mxu0
    %v1726 = vadd.f32 0.0, %v1725
    %v1727 = vpop.f32.mrb[0].mxu0
    %1728 = vmatprep.mubr.bf16.mxu0 0
    %1729 = vmatmul.mubr.bf16.gmra.mrb[0].mxu0 %v1666
    %v1730 = vpop.f32.mrb[0].mxu0
    %v1731 = vadd.f32 0.0, %v1730
    %v1732 = vpop.f32.mrb[0].mxu0
    %v1733 = vpop.f32.mrb[0].mxu0
    %v1734 = vadd.f32 0.0, %v1733
    %v1735 = vpop.f32.mrb[0].mxu0
    %1736 = vmatprep.mubr.bf16.mxu0 0
    %1737 = vmatmul.mubr.bf16.gmra.mrb[0].mxu0 %v1667
    %v1738 = vpop.f32.mrb[0].mxu0
    %v1739 = vadd.f32 0.0, %v1738
    %v1740 = vpop.f32.mrb[0].mxu0
    %v1741 = vpop.f32.mrb[0].mxu0
    %v1742 = vadd.f32 0.0, %v1741
    %v1743 = vpop.f32.mrb[0].mxu0
    %1744 = vmatprep.mubr.bf16.mxu0 0
    %1745 = vmatmul.mubr.bf16.gmra.mrb[0].mxu0 %v1668
    %v1746 = vpop.f32.mrb[0].mxu0
    %v1747 = vadd.f32 0.0, %v1746
    %v1748 = vpop.f32.mrb[0].mxu0
    %v1749 = vpop.f32.mrb[0].mxu0
    %v1750 = vadd.f32 0.0, %v1749
    %v1751 = vpop.f32.mrb[0].mxu0
    %1752 = vmatprep.mubr.bf16.mxu0 0
    %1753 = vmatmul.mubr.bf16.gmra.mrb[0].mxu0 %v1669
    %v1754 = vpop.f32.mrb[0].mxu0
    %v1755 = vadd.f32 0.0, %v1754
    %v1756 = vpop.f32.mrb[0].mxu0
    %v1757 = vpop.f32.mrb[0].mxu0
    %v1758 = vadd.f32 0.0, %v1757
    %v1759 = vpop.f32.mrb[0].mxu0
    %1760 = vmatprep.mubr.bf16.mxu0 0
    %1761 = vmatmul.mubr.bf16.gmra.mrb[0].mxu0 %v1670
    %v1762 = vpop.f32.mrb[0].mxu0
    %v1763 = vadd.f32 0.0, %v1762
    %v1764 = vpop.f32.mrb[0].mxu0
    %v1765 = vpop.f32.mrb[0].mxu0
    %v1766 = vadd.f32 0.0, %v1765
    %v1767 = vpop.f32.mrb[0].mxu0
    %1768 = vmatprep.mubr.bf16.mxu0 0
    %1769 = vmatmul.mubr.bf16.gmra.mrb[0].mxu0 %v1671
    %v1770 = vpop.f32.mrb[0].mxu0
    %v1771 = vadd.f32 0.0, %v1770
    %v1772 = vpop.f32.mrb[0].mxu0
    %v1773 = vpop.f32.mrb[0].mxu0
    %v1774 = vadd.f32 0.0, %v1773
    %v1775 = vpop.f32.mrb[0].mxu0
    %1776 = vdwg.mxu0
    %v1793 = vunpack.c.l.b16 %v1600
    %v1794 = vunpack.c.l.b16 %v1601
    %v1795 = vunpack.c.l.b16 %v1602
    %v1796 = vunpack.c.l.b16 %v1603
    %v1797 = vunpack.c.l.b16 %v1604
    %v1798 = vunpack.c.l.b16 %v1605
    %v1799 = vunpack.c.l.b16 %v1606
    %v1800 = vunpack.c.l.b16 %v1607
    %v1801 = vunpack.c.l.b16 %v1608
    %v1802 = vunpack.c.l.b16 %v1609
    %v1803 = vunpack.c.l.b16 %v1610
    %v1804 = vunpack.c.l.b16 %v1611
    %v1805 = vunpack.c.l.b16 %v1612
    %v1806 = vunpack.c.l.b16 %v1613
    %v1807 = vunpack.c.l.b16 %v1614
    %v1808 = vunpack.c.l.b16 %v1615
    %v1809 = vpack.c.b16 %v1794, %v1793
    %v1810 = vpack.c.b16 %v1796, %v1795
    %v1811 = vpack.c.b16 %v1798, %v1797
    %v1812 = vpack.c.b16 %v1800, %v1799
    %v1813 = vpack.c.b16 %v1802, %v1801
    %v1814 = vpack.c.b16 %v1804, %v1803
    %v1815 = vpack.c.b16 %v1806, %v1805
    %v1816 = vpack.c.b16 %v1808, %v1807
    %1825 = vmatprep.subr.bf16.mxu0 0
    %1826 = vmatpush1.bf16.msra.mxu0 %v1053
    %1827 = vmatprep.subr.bf16.mxu0 0
    %1828 = vmatpush1.bf16.msra.mxu0 %v1054
    %1829 = vmatprep.subr.bf16.mxu0 0
    %1830 = vmatpush1.bf16.msra.mxu0 %v1055
    %1831 = vmatprep.subr.bf16.mxu0 0
    %1832 = vmatpush1.bf16.msra.mxu0 %v1056
    %1833 = vmatprep.subr.bf16.mxu0 0
    %1834 = vmatpush1.bf16.msra.mxu0 %v1057
    %1835 = vmatprep.subr.bf16.mxu0 0
    %1836 = vmatpush1.bf16.msra.mxu0 %v1058
    %1837 = vmatprep.subr.bf16.mxu0 0
    %1838 = vmatpush1.bf16.msra.mxu0 %v1059
    %1839 = vmatprep.subr.bf16.mxu0 0
    %1840 = vmatpush1.bf16.msra.mxu0 %v1060
    %1841 = vmatprep.subr.bf16.mxu0 0
    %1842 = vmatpush1.bf16.msra.mxu0 0
    %1843 = vmatprep.subr.bf16.mxu0 0
    %1844 = vmatpush1.bf16.msra.mxu0 0
    %1845 = vmatprep.subr.bf16.mxu0 0
    %1846 = vmatpush1.bf16.msra.mxu0 0
    %1847 = vmatprep.subr.bf16.mxu0 0
    %1848 = vmatpush1.bf16.msra.mxu0 0
    %1849 = vmatprep.subr.bf16.mxu0 0
    %1850 = vmatpush1.bf16.msra.mxu0 0
    %1851 = vmatprep.subr.bf16.mxu0 0
    %1852 = vmatpush1.bf16.msra.mxu0 0
    %1853 = vmatprep.subr.bf16.mxu0 0
    %1854 = vmatpush1.bf16.msra.mxu0 0
    %1855 = vmatprep.subr.bf16.mxu0 0
    %1856 = vmatpush1.bf16.msra.mxu0 0
    %1857 = vmatprep.mubr.bf16.mxu0 0
    %1858 = vmatmul.mubr.bf16.gmra.mrb[0].mxu0 %v1809
    %v1859 = vpop.f32.mrb[0].mxu0
    %v1860 = vadd.f32 %v1715, %v1859
    %v1861 = vpop.f32.mrb[0].mxu0
    %v1862 = vpop.f32.mrb[0].mxu0
    %v1863 = vadd.f32 %v1718, %v1862
    %v1864 = vpop.f32.mrb[0].mxu0
    %1865 = vmatprep.mubr.bf16.mxu0 0
    %1866 = vmatmul.mubr.bf16.gmra.mrb[0].mxu0 %v1810
    %v1867 = vpop.f32.mrb[0].mxu0
    %v1868 = vadd.f32 %v1723, %v1867
    %v1869 = vpop.f32.mrb[0].mxu0
    %v1870 = vpop.f32.mrb[0].mxu0
    %v1871 = vadd.f32 %v1726, %v1870
    %v1872 = vpop.f32.mrb[0].mxu0
    %1873 = vmatprep.mubr.bf16.mxu0 0
    %1874 = vmatmul.mubr.bf16.gmra.mrb[0].mxu0 %v1811
    %v1875 = vpop.f32.mrb[0].mxu0
    %v1876 = vadd.f32 %v1731, %v1875
    %v1877 = vpop.f32.mrb[0].mxu0
    %v1878 = vpop.f32.mrb[0].mxu0
    %v1879 = vadd.f32 %v1734, %v1878
    %v1880 = vpop.f32.mrb[0].mxu0
    %1881 = vmatprep.mubr.bf16.mxu0 0
    %1882 = vmatmul.mubr.bf16.gmra.mrb[0].mxu0 %v1812
    %v1883 = vpop.f32.mrb[0].mxu0
    %v1884 = vadd.f32 %v1739, %v1883
    %v1885 = vpop.f32.mrb[0].mxu0
    %v1886 = vpop.f32.mrb[0].mxu0
    %v1887 = vadd.f32 %v1742, %v1886
    %v1888 = vpop.f32.mrb[0].mxu0
    %1889 = vmatprep.mubr.bf16.mxu0 0
    %1890 = vmatmul.mubr.bf16.gmra.mrb[0].mxu0 %v1813
    %v1891 = vpop.f32.mrb[0].mxu0
    %v1892 = vadd.f32 %v1747, %v1891
    %v1893 = vpop.f32.mrb[0].mxu0
    %v1894 = vpop.f32.mrb[0].mxu0
    %v1895 = vadd.f32 %v1750, %v1894
    %v1896 = vpop.f32.mrb[0].mxu0
    %1897 = vmatprep.mubr.bf16.mxu0 0
    %1898 = vmatmul.mubr.bf16.gmra.mrb[0].mxu0 %v1814
    %v1899 = vpop.f32.mrb[0].mxu0
    %v1900 = vadd.f32 %v1755, %v1899
    %v1901 = vpop.f32.mrb[0].mxu0
    %v1902 = vpop.f32.mrb[0].mxu0
    %v1903 = vadd.f32 %v1758, %v1902
    %v1904 = vpop.f32.mrb[0].mxu0
    %1905 = vmatprep.mubr.bf16.mxu0 0
    %1906 = vmatmul.mubr.bf16.gmra.mrb[0].mxu0 %v1815
    %v1907 = vpop.f32.mrb[0].mxu0
    %v1908 = vadd.f32 %v1763, %v1907
    %v1909 = vpop.f32.mrb[0].mxu0
    %v1910 = vpop.f32.mrb[0].mxu0
    %v1911 = vadd.f32 %v1766, %v1910
    %v1912 = vpop.f32.mrb[0].mxu0
    %1913 = vmatprep.mubr.bf16.mxu0 0
    %1914 = vmatmul.mubr.bf16.gmra.mrb[0].mxu0 %v1816
    %v1915 = vpop.f32.mrb[0].mxu0
    %v1916 = vadd.f32 %v1771, %v1915
    %v1917 = vpop.f32.mrb[0].mxu0
    %v1918 = vpop.f32.mrb[0].mxu0
    %v1919 = vadd.f32 %v1774, %v1918
    %v1920 = vpop.f32.mrb[0].mxu0
    %1921 = vdwg.mxu0
    %1922 = vmatprep.subr.bf16.mxu0 0
    %1923 = vmatpush1.bf16.msra.mxu0 %v1093
    %1924 = vmatprep.subr.bf16.mxu0 0
    %1925 = vmatpush1.bf16.msra.mxu0 %v1094
    %1926 = vmatprep.subr.bf16.mxu0 0
    %1927 = vmatpush1.bf16.msra.mxu0 %v1095
    %1928 = vmatprep.subr.bf16.mxu0 0
    %1929 = vmatpush1.bf16.msra.mxu0 %v1096
    %1930 = vmatprep.subr.bf16.mxu0 0
    %1931 = vmatpush1.bf16.msra.mxu0 %v1097
    %1932 = vmatprep.subr.bf16.mxu0 0
    %1933 = vmatpush1.bf16.msra.mxu0 %v1098
    %1934 = vmatprep.subr.bf16.mxu0 0
    %1935 = vmatpush1.bf16.msra.mxu0 %v1099
    %1936 = vmatprep.subr.bf16.mxu0 0
    %1937 = vmatpush1.bf16.msra.mxu0 %v1100
    %1938 = vmatprep.subr.bf16.mxu0 0
    %1939 = vmatpush1.bf16.msra.mxu0 0
    %1940 = vmatprep.subr.bf16.mxu0 0
    %1941 = vmatpush1.bf16.msra.mxu0 0
    %1942 = vmatprep.subr.bf16.mxu0 0
    %1943 = vmatpush1.bf16.msra.mxu0 0
    %1944 = vmatprep.subr.bf16.mxu0 0
    %1945 = vmatpush1.bf16.msra.mxu0 0
    %1946 = vmatprep.subr.bf16.mxu0 0
    %1947 = vmatpush1.bf16.msra.mxu0 0
    %1948 = vmatprep.subr.bf16.mxu0 0
    %1949 = vmatpush1.bf16.msra.mxu0 0
    %1950 = vmatprep.subr.bf16.mxu0 0
    %1951 = vmatpush1.bf16.msra.mxu0 0
    %1952 = vmatprep.subr.bf16.mxu0 0
    %1953 = vmatpush1.bf16.msra.mxu0 0
    %1954 = vmatprep.mubr.bf16.mxu0 0
    %1955 = vmatmul.mubr.bf16.gmra.mrb[0].mxu0 %v1809
    %v1956 = vpop.f32.mrb[0].mxu0
    %v1957 = vadd.f32 0.0, %v1956
    %v1958 = vpop.f32.mrb[0].mxu0
    %v1959 = vpop.f32.mrb[0].mxu0
    %v1960 = vadd.f32 0.0, %v1959
    %v1961 = vpop.f32.mrb[0].mxu0
    %1962 = vmatprep.mubr.bf16.mxu0 0
    %1963 = vmatmul.mubr.bf16.gmra.mrb[0].mxu0 %v1810
    %v1964 = vpop.f32.mrb[0].mxu0
    %v1965 = vadd.f32 0.0, %v1964
    %v1966 = vpop.f32.mrb[0].mxu0
    %v1967 = vpop.f32.mrb[0].mxu0
    %v1968 = vadd.f32 0.0, %v1967
    %v1969 = vpop.f32.mrb[0].mxu0
    %1970 = vmatprep.mubr.bf16.mxu0 0
    %1971 = vmatmul.mubr.bf16.gmra.mrb[0].mxu0 %v1811
    %v1972 = vpop.f32.mrb[0].mxu0
    %v1973 = vadd.f32 0.0, %v1972
    %v1974 = vpop.f32.mrb[0].mxu0
    %v1975 = vpop.f32.mrb[0].mxu0
    %v1976 = vadd.f32 0.0, %v1975
    %v1977 = vpop.f32.mrb[0].mxu0
    %1978 = vmatprep.mubr.bf16.mxu0 0
    %1979 = vmatmul.mubr.bf16.gmra.mrb[0].mxu0 %v1812
    %v1980 = vpop.f32.mrb[0].mxu0
    %v1981 = vadd.f32 0.0, %v1980
    %v1982 = vpop.f32.mrb[0].mxu0
    %v1983 = vpop.f32.mrb[0].mxu0
    %v1984 = vadd.f32 0.0, %v1983
    %v1985 = vpop.f32.mrb[0].mxu0
    %1986 = vmatprep.mubr.bf16.mxu0 0
    %1987 = vmatmul.mubr.bf16.gmra.mrb[0].mxu0 %v1813
    %v1988 = vpop.f32.mrb[0].mxu0
    %v1989 = vadd.f32 0.0, %v1988
    %v1990 = vpop.f32.mrb[0].mxu0
    %v1991 = vpop.f32.mrb[0].mxu0
    %v1992 = vadd.f32 0.0, %v1991
    %v1993 = vpop.f32.mrb[0].mxu0
    %1994 = vmatprep.mubr.bf16.mxu0 0
    %1995 = vmatmul.mubr.bf16.gmra.mrb[0].mxu0 %v1814
    %v1996 = vpop.f32.mrb[0].mxu0
    %v1997 = vadd.f32 0.0, %v1996
    %v1998 = vpop.f32.mrb[0].mxu0
    %v1999 = vpop.f32.mrb[0].mxu0
    %v2000 = vadd.f32 0.0, %v1999
    %v2001 = vpop.f32.mrb[0].mxu0
    %2002 = vmatprep.mubr.bf16.mxu0 0
    %2003 = vmatmul.mubr.bf16.gmra.mrb[0].mxu0 %v1815
    %v2004 = vpop.f32.mrb[0].mxu0
    %v2005 = vadd.f32 0.0, %v2004
    %v2006 = vpop.f32.mrb[0].mxu0
    %v2007 = vpop.f32.mrb[0].mxu0
    %v2008 = vadd.f32 0.0, %v2007
    %v2009 = vpop.f32.mrb[0].mxu0
    %2010 = vmatprep.mubr.bf16.mxu0 0
    %2011 = vmatmul.mubr.bf16.gmra.mrb[0].mxu0 %v1816
    %v2012 = vpop.f32.mrb[0].mxu0
    %v2013 = vadd.f32 0.0, %v2012
    %v2014 = vpop.f32.mrb[0].mxu0
    %v2015 = vpop.f32.mrb[0].mxu0
    %v2016 = vadd.f32 0.0, %v2015
    %v2017 = vpop.f32.mrb[0].mxu0
    %2018 = vdwg.mxu0
    %v2019 = vadd.f32 %v1860, %v1957
    %v2020 = vadd.f32 %v1863, %v1960
    %v2021 = vadd.f32 %v1868, %v1965
    %v2022 = vadd.f32 %v1871, %v1968
    %v2023 = vadd.f32 %v1876, %v1973
    %v2024 = vadd.f32 %v1879, %v1976
    %v2025 = vadd.f32 %v1884, %v1981
    %v2026 = vadd.f32 %v1887, %v1984
    %v2027 = vadd.f32 %v1892, %v1989
    %v2028 = vadd.f32 %v1895, %v1992
    %v2029 = vadd.f32 %v1900, %v1997
    %v2030 = vadd.f32 %v1903, %v2000
    %v2031 = vadd.f32 %v1908, %v2005
    %v2032 = vadd.f32 %v1911, %v2008
    %v2033 = vadd.f32 %v1916, %v2013
    %v2034 = vadd.f32 %v1919, %v2016
    %v2035 = vld [vmem:[#allocation16] sm:$0xf]
    %v2036 = vld [vmem:[#allocation16 + $0x4] sm:$0xf]
    %v2037 = vld [vmem:[#allocation16 + $0x8] sm:$0xf]
    %v2038 = vld [vmem:[#allocation16 + $0xc] sm:$0xf]
    %v2039 = vld [vmem:[#allocation16 + $0x10] sm:$0xf]
    %v2040 = vld [vmem:[#allocation16 + $0x14] sm:$0xf]
    %v2041 = vld [vmem:[#allocation16 + $0x18] sm:$0xf]
    %v2042 = vld [vmem:[#allocation16 + $0x1c] sm:$0xf]
    %v2043 = vld [vmem:[#allocation16 + $0x20] sm:$0xf]
    %v2044 = vld [vmem:[#allocation16 + $0x24] sm:$0xf]
    %v2045 = vld [vmem:[#allocation16 + $0x28] sm:$0xf]
    %v2046 = vld [vmem:[#allocation16 + $0x2c] sm:$0xf]
    %v2047 = vld [vmem:[#allocation16 + $0x30] sm:$0xf]
    %v2048 = vld [vmem:[#allocation16 + $0x34] sm:$0xf]
    %v2049 = vld [vmem:[#allocation16 + $0x38] sm:$0xf]
    %v2050 = vld [vmem:[#allocation16 + $0x3c] sm:$0xf]
    %v2051 = vld [vmem:[#allocation17] sm:$0xf]
    %v2052 = vld [vmem:[#allocation17 + $0x4] sm:$0xf]
    %v2053 = vld [vmem:[#allocation17 + $0x8] sm:$0xf]
    %v2054 = vld [vmem:[#allocation17 + $0xc] sm:$0xf]
    %v2055 = vld [vmem:[#allocation17 + $0x10] sm:$0xf]
    %v2056 = vld [vmem:[#allocation17 + $0x14] sm:$0xf]
    %v2057 = vld [vmem:[#allocation17 + $0x18] sm:$0xf]
    %v2058 = vld [vmem:[#allocation17 + $0x1c] sm:$0xf]
    %v2059 = vld [vmem:[#allocation17 + $0x20] sm:$0xf]
    %v2060 = vld [vmem:[#allocation17 + $0x24] sm:$0xf]
    %v2061 = vld [vmem:[#allocation17 + $0x28] sm:$0xf]
    %v2062 = vld [vmem:[#allocation17 + $0x2c] sm:$0xf]
    %v2063 = vld [vmem:[#allocation17 + $0x30] sm:$0xf]
    %v2064 = vld [vmem:[#allocation17 + $0x34] sm:$0xf]
    %v2065 = vld [vmem:[#allocation17 + $0x38] sm:$0xf]
    %v2066 = vld [vmem:[#allocation17 + $0x3c] sm:$0xf]
    %v2083 = vunpack.c.l.b16 %v2051
    %v2084 = vunpack.c.l.b16 %v2052
    %v2085 = vunpack.c.l.b16 %v2053
    %v2086 = vunpack.c.l.b16 %v2054
    %v2087 = vunpack.c.l.b16 %v2055
    %v2088 = vunpack.c.l.b16 %v2056
    %v2089 = vunpack.c.l.b16 %v2057
    %v2090 = vunpack.c.l.b16 %v2058
    %v2091 = vunpack.c.l.b16 %v2059
    %v2092 = vunpack.c.l.b16 %v2060
    %v2093 = vunpack.c.l.b16 %v2061
    %v2094 = vunpack.c.l.b16 %v2062
    %v2095 = vunpack.c.l.b16 %v2063
    %v2096 = vunpack.c.l.b16 %v2064
    %v2097 = vunpack.c.l.b16 %v2065
    %v2098 = vunpack.c.l.b16 %v2066
    %v2099 = vpack.c.b16 %v2084, %v2083
    %v2100 = vpack.c.b16 %v2086, %v2085
    %v2101 = vpack.c.b16 %v2088, %v2087
    %v2102 = vpack.c.b16 %v2090, %v2089
    %v2103 = vpack.c.b16 %v2092, %v2091
    %v2104 = vpack.c.b16 %v2094, %v2093
    %v2105 = vpack.c.b16 %v2096, %v2095
    %v2106 = vpack.c.b16 %v2098, %v2097
    %2115 = vmatprep.subr.bf16.mxu0 0
    %2116 = vmatpush1.bf16.msra.mxu0 %v1117
    %2117 = vmatprep.subr.bf16.mxu0 0
    %2118 = vmatpush1.bf16.msra.mxu0 %v1118
    %2119 = vmatprep.subr.bf16.mxu0 0
    %2120 = vmatpush1.bf16.msra.mxu0 %v1119
    %2121 = vmatprep.subr.bf16.mxu0 0
    %2122 = vmatpush1.bf16.msra.mxu0 %v1120
    %2123 = vmatprep.subr.bf16.mxu0 0
    %2124 = vmatpush1.bf16.msra.mxu0 %v1121
    %2125 = vmatprep.subr.bf16.mxu0 0
    %2126 = vmatpush1.bf16.msra.mxu0 %v1122
    %2127 = vmatprep.subr.bf16.mxu0 0
    %2128 = vmatpush1.bf16.msra.mxu0 %v1123
    %2129 = vmatprep.subr.bf16.mxu0 0
    %2130 = vmatpush1.bf16.msra.mxu0 %v1124
    %2131 = vmatprep.subr.bf16.mxu0 0
    %2132 = vmatpush1.bf16.msra.mxu0 0
    %2133 = vmatprep.subr.bf16.mxu0 0
    %2134 = vmatpush1.bf16.msra.mxu0 0
    %2135 = vmatprep.subr.bf16.mxu0 0
    %2136 = vmatpush1.bf16.msra.mxu0 0
    %2137 = vmatprep.subr.bf16.mxu0 0
    %2138 = vmatpush1.bf16.msra.mxu0 0
    %2139 = vmatprep.subr.bf16.mxu0 0
    %2140 = vmatpush1.bf16.msra.mxu0 0
    %2141 = vmatprep.subr.bf16.mxu0 0
    %2142 = vmatpush1.bf16.msra.mxu0 0
    %2143 = vmatprep.subr.bf16.mxu0 0
    %2144 = vmatpush1.bf16.msra.mxu0 0
    %2145 = vmatprep.subr.bf16.mxu0 0
    %2146 = vmatpush1.bf16.msra.mxu0 0
    %2147 = vmatprep.mubr.bf16.mxu0 0
    %2148 = vmatmul.mubr.bf16.gmra.mrb[0].mxu0 %v2099
    %v2149 = vpop.f32.mrb[0].mxu0
    %v2150 = vadd.f32 0.0, %v2149
    %v2151 = vpop.f32.mrb[0].mxu0
    %v2152 = vpop.f32.mrb[0].mxu0
    %v2153 = vadd.f32 0.0, %v2152
    %v2154 = vpop.f32.mrb[0].mxu0
    %2155 = vmatprep.mubr.bf16.mxu0 0
    %2156 = vmatmul.mubr.bf16.gmra.mrb[0].mxu0 %v2100
    %v2157 = vpop.f32.mrb[0].mxu0
    %v2158 = vadd.f32 0.0, %v2157
    %v2159 = vpop.f32.mrb[0].mxu0
    %v2160 = vpop.f32.mrb[0].mxu0
    %v2161 = vadd.f32 0.0, %v2160
    %v2162 = vpop.f32.mrb[0].mxu0
    %2163 = vmatprep.mubr.bf16.mxu0 0
    %2164 = vmatmul.mubr.bf16.gmra.mrb[0].mxu0 %v2101
    %v2165 = vpop.f32.mrb[0].mxu0
    %v2166 = vadd.f32 0.0, %v2165
    %v2167 = vpop.f32.mrb[0].mxu0
    %v2168 = vpop.f32.mrb[0].mxu0
    %v2169 = vadd.f32 0.0, %v2168
    %v2170 = vpop.f32.mrb[0].mxu0
    %2171 = vmatprep.mubr.bf16.mxu0 0
    %2172 = vmatmul.mubr.bf16.gmra.mrb[0].mxu0 %v2102
    %v2173 = vpop.f32.mrb[0].mxu0
    %v2174 = vadd.f32 0.0, %v2173
    %v2175 = vpop.f32.mrb[0].mxu0
    %v2176 = vpop.f32.mrb[0].mxu0
    %v2177 = vadd.f32 0.0, %v2176
    %v2178 = vpop.f32.mrb[0].mxu0
    %2179 = vmatprep.mubr.bf16.mxu0 0
    %2180 = vmatmul.mubr.bf16.gmra.mrb[0].mxu0 %v2103
    %v2181 = vpop.f32.mrb[0].mxu0
    %v2182 = vadd.f32 0.0, %v2181
    %v2183 = vpop.f32.mrb[0].mxu0
    %v2184 = vpop.f32.mrb[0].mxu0
    %v2185 = vadd.f32 0.0, %v2184
    %v2186 = vpop.f32.mrb[0].mxu0
    %2187 = vmatprep.mubr.bf16.mxu0 0
    %2188 = vmatmul.mubr.bf16.gmra.mrb[0].mxu0 %v2104
    %v2189 = vpop.f32.mrb[0].mxu0
    %v2190 = vadd.f32 0.0, %v2189
    %v2191 = vpop.f32.mrb[0].mxu0
    %v2192 = vpop.f32.mrb[0].mxu0
    %v2193 = vadd.f32 0.0, %v2192
    %v2194 = vpop.f32.mrb[0].mxu0
    %2195 = vmatprep.mubr.bf16.mxu0 0
    %2196 = vmatmul.mubr.bf16.gmra.mrb[0].mxu0 %v2105
    %v2197 = vpop.f32.mrb[0].mxu0
    %v2198 = vadd.f32 0.0, %v2197
    %v2199 = vpop.f32.mrb[0].mxu0
    %v2200 = vpop.f32.mrb[0].mxu0
    %v2201 = vadd.f32 0.0, %v2200
    %v2202 = vpop.f32.mrb[0].mxu0
    %2203 = vmatprep.mubr.bf16.mxu0 0
    %2204 = vmatmul.mubr.bf16.gmra.mrb[0].mxu0 %v2106
    %v2205 = vpop.f32.mrb[0].mxu0
    %v2206 = vadd.f32 0.0, %v2205
    %v2207 = vpop.f32.mrb[0].mxu0
    %v2208 = vpop.f32.mrb[0].mxu0
    %v2209 = vadd.f32 0.0, %v2208
    %v2210 = vpop.f32.mrb[0].mxu0
    %2211 = vdwg.mxu0
    %v2228 = vunpack.c.l.b16 %v2035
    %v2229 = vunpack.c.l.b16 %v2036
    %v2230 = vunpack.c.l.b16 %v2037
    %v2231 = vunpack.c.l.b16 %v2038
    %v2232 = vunpack.c.l.b16 %v2039
    %v2233 = vunpack.c.l.b16 %v2040
    %v2234 = vunpack.c.l.b16 %v2041
    %v2235 = vunpack.c.l.b16 %v2042
    %v2236 = vunpack.c.l.b16 %v2043
    %v2237 = vunpack.c.l.b16 %v2044
    %v2238 = vunpack.c.l.b16 %v2045
    %v2239 = vunpack.c.l.b16 %v2046
    %v2240 = vunpack.c.l.b16 %v2047
    %v2241 = vunpack.c.l.b16 %v2048
    %v2242 = vunpack.c.l.b16 %v2049
    %v2243 = vunpack.c.l.b16 %v2050
    %v2244 = vpack.c.b16 %v2229, %v2228
    %v2245 = vpack.c.b16 %v2231, %v2230
    %v2246 = vpack.c.b16 %v2233, %v2232
    %v2247 = vpack.c.b16 %v2235, %v2234
    %v2248 = vpack.c.b16 %v2237, %v2236
    %v2249 = vpack.c.b16 %v2239, %v2238
    %v2250 = vpack.c.b16 %v2241, %v2240
    %v2251 = vpack.c.b16 %v2243, %v2242
    %2260 = vmatprep.subr.bf16.mxu0 0
    %2261 = vmatpush1.bf16.msra.mxu0 %v1117
    %2262 = vmatprep.subr.bf16.mxu0 0
    %2263 = vmatpush1.bf16.msra.mxu0 %v1118
    %2264 = vmatprep.subr.bf16.mxu0 0
    %2265 = vmatpush1.bf16.msra.mxu0 %v1119
    %2266 = vmatprep.subr.bf16.mxu0 0
    %2267 = vmatpush1.bf16.msra.mxu0 %v1120
    %2268 = vmatprep.subr.bf16.mxu0 0
    %2269 = vmatpush1.bf16.msra.mxu0 %v1121
    %2270 = vmatprep.subr.bf16.mxu0 0
    %2271 = vmatpush1.bf16.msra.mxu0 %v1122
    %2272 = vmatprep.subr.bf16.mxu0 0
    %2273 = vmatpush1.bf16.msra.mxu0 %v1123
    %2274 = vmatprep.subr.bf16.mxu0 0
    %2275 = vmatpush1.bf16.msra.mxu0 %v1124
    %2276 = vmatprep.subr.bf16.mxu0 0
    %2277 = vmatpush1.bf16.msra.mxu0 0
    %2278 = vmatprep.subr.bf16.mxu0 0
    %2279 = vmatpush1.bf16.msra.mxu0 0
    %2280 = vmatprep.subr.bf16.mxu0 0
    %2281 = vmatpush1.bf16.msra.mxu0 0
    %2282 = vmatprep.subr.bf16.mxu0 0
    %2283 = vmatpush1.bf16.msra.mxu0 0
    %2284 = vmatprep.subr.bf16.mxu0 0
    %2285 = vmatpush1.bf16.msra.mxu0 0
    %2286 = vmatprep.subr.bf16.mxu0 0
    %2287 = vmatpush1.bf16.msra.mxu0 0
    %2288 = vmatprep.subr.bf16.mxu0 0
    %2289 = vmatpush1.bf16.msra.mxu0 0
    %2290 = vmatprep.subr.bf16.mxu0 0
    %2291 = vmatpush1.bf16.msra.mxu0 0
    %2292 = vmatprep.mubr.bf16.mxu0 0
    %2293 = vmatmul.mubr.bf16.gmra.mrb[0].mxu0 %v2244
    %v2294 = vpop.f32.mrb[0].mxu0
    %v2295 = vadd.f32 %v2150, %v2294
    %v2296 = vpop.f32.mrb[0].mxu0
    %v2297 = vpop.f32.mrb[0].mxu0
    %v2298 = vadd.f32 %v2153, %v2297
    %v2299 = vpop.f32.mrb[0].mxu0
    %2300 = vmatprep.mubr.bf16.mxu0 0
    %2301 = vmatmul.mubr.bf16.gmra.mrb[0].mxu0 %v2245
    %v2302 = vpop.f32.mrb[0].mxu0
    %v2303 = vadd.f32 %v2158, %v2302
    %v2304 = vpop.f32.mrb[0].mxu0
    %v2305 = vpop.f32.mrb[0].mxu0
    %v2306 = vadd.f32 %v2161, %v2305
    %v2307 = vpop.f32.mrb[0].mxu0
    %2308 = vmatprep.mubr.bf16.mxu0 0
    %2309 = vmatmul.mubr.bf16.gmra.mrb[0].mxu0 %v2246
    %v2310 = vpop.f32.mrb[0].mxu0
    %v2311 = vadd.f32 %v2166, %v2310
    %v2312 = vpop.f32.mrb[0].mxu0
    %v2313 = vpop.f32.mrb[0].mxu0
    %v2314 = vadd.f32 %v2169, %v2313
    %v2315 = vpop.f32.mrb[0].mxu0
    %2316 = vmatprep.mubr.bf16.mxu0 0
    %2317 = vmatmul.mubr.bf16.gmra.mrb[0].mxu0 %v2247
    %v2318 = vpop.f32.mrb[0].mxu0
    %v2319 = vadd.f32 %v2174, %v2318
    %v2320 = vpop.f32.mrb[0].mxu0
    %v2321 = vpop.f32.mrb[0].mxu0
    %v2322 = vadd.f32 %v2177, %v2321
    %v2323 = vpop.f32.mrb[0].mxu0
    %2324 = vmatprep.mubr.bf16.mxu0 0
    %2325 = vmatmul.mubr.bf16.gmra.mrb[0].mxu0 %v2248
    %v2326 = vpop.f32.mrb[0].mxu0
    %v2327 = vadd.f32 %v2182, %v2326
    %v2328 = vpop.f32.mrb[0].mxu0
    %v2329 = vpop.f32.mrb[0].mxu0
    %v2330 = vadd.f32 %v2185, %v2329
    %v2331 = vpop.f32.mrb[0].mxu0
    %2332 = vmatprep.mubr.bf16.mxu0 0
    %2333 = vmatmul.mubr.bf16.gmra.mrb[0].mxu0 %v2249
    %v2334 = vpop.f32.mrb[0].mxu0
    %v2335 = vadd.f32 %v2190, %v2334
    %v2336 = vpop.f32.mrb[0].mxu0
    %v2337 = vpop.f32.mrb[0].mxu0
    %v2338 = vadd.f32 %v2193, %v2337
    %v2339 = vpop.f32.mrb[0].mxu0
    %2340 = vmatprep.mubr.bf16.mxu0 0
    %2341 = vmatmul.mubr.bf16.gmra.mrb[0].mxu0 %v2250
    %v2342 = vpop.f32.mrb[0].mxu0
    %v2343 = vadd.f32 %v2198, %v2342
    %v2344 = vpop.f32.mrb[0].mxu0
    %v2345 = vpop.f32.mrb[0].mxu0
    %v2346 = vadd.f32 %v2201, %v2345
    %v2347 = vpop.f32.mrb[0].mxu0
    %2348 = vmatprep.mubr.bf16.mxu0 0
    %2349 = vmatmul.mubr.bf16.gmra.mrb[0].mxu0 %v2251
    %v2350 = vpop.f32.mrb[0].mxu0
    %v2351 = vadd.f32 %v2206, %v2350
    %v2352 = vpop.f32.mrb[0].mxu0
    %v2353 = vpop.f32.mrb[0].mxu0
    %v2354 = vadd.f32 %v2209, %v2353
    %v2355 = vpop.f32.mrb[0].mxu0
    %2356 = vdwg.mxu0
    %2357 = vmatprep.subr.bf16.mxu0 0
    %2358 = vmatpush1.bf16.msra.mxu0 %v1157
    %2359 = vmatprep.subr.bf16.mxu0 0
    %2360 = vmatpush1.bf16.msra.mxu0 %v1158
    %2361 = vmatprep.subr.bf16.mxu0 0
    %2362 = vmatpush1.bf16.msra.mxu0 %v1159
    %2363 = vmatprep.subr.bf16.mxu0 0
    %2364 = vmatpush1.bf16.msra.mxu0 %v1160
    %2365 = vmatprep.subr.bf16.mxu0 0
    %2366 = vmatpush1.bf16.msra.mxu0 %v1161
    %2367 = vmatprep.subr.bf16.mxu0 0
    %2368 = vmatpush1.bf16.msra.mxu0 %v1162
    %2369 = vmatprep.subr.bf16.mxu0 0
    %2370 = vmatpush1.bf16.msra.mxu0 %v1163
    %2371 = vmatprep.subr.bf16.mxu0 0
    %2372 = vmatpush1.bf16.msra.mxu0 %v1164
    %2373 = vmatprep.subr.bf16.mxu0 0
    %2374 = vmatpush1.bf16.msra.mxu0 0
    %2375 = vmatprep.subr.bf16.mxu0 0
    %2376 = vmatpush1.bf16.msra.mxu0 0
    %2377 = vmatprep.subr.bf16.mxu0 0
    %2378 = vmatpush1.bf16.msra.mxu0 0
    %2379 = vmatprep.subr.bf16.mxu0 0
    %2380 = vmatpush1.bf16.msra.mxu0 0
    %2381 = vmatprep.subr.bf16.mxu0 0
    %2382 = vmatpush1.bf16.msra.mxu0 0
    %2383 = vmatprep.subr.bf16.mxu0 0
    %2384 = vmatpush1.bf16.msra.mxu0 0
    %2385 = vmatprep.subr.bf16.mxu0 0
    %2386 = vmatpush1.bf16.msra.mxu0 0
    %2387 = vmatprep.subr.bf16.mxu0 0
    %2388 = vmatpush1.bf16.msra.mxu0 0
    %2389 = vmatprep.mubr.bf16.mxu0 0
    %2390 = vmatmul.mubr.bf16.gmra.mrb[0].mxu0 %v2244
    %v2391 = vpop.f32.mrb[0].mxu0
    %v2392 = vadd.f32 0.0, %v2391
    %v2393 = vpop.f32.mrb[0].mxu0
    %v2394 = vpop.f32.mrb[0].mxu0
    %v2395 = vadd.f32 0.0, %v2394
    %v2396 = vpop.f32.mrb[0].mxu0
    %2397 = vmatprep.mubr.bf16.mxu0 0
    %2398 = vmatmul.mubr.bf16.gmra.mrb[0].mxu0 %v2245
    %v2399 = vpop.f32.mrb[0].mxu0
    %v2400 = vadd.f32 0.0, %v2399
    %v2401 = vpop.f32.mrb[0].mxu0
    %v2402 = vpop.f32.mrb[0].mxu0
    %v2403 = vadd.f32 0.0, %v2402
    %v2404 = vpop.f32.mrb[0].mxu0
    %2405 = vmatprep.mubr.bf16.mxu0 0
    %2406 = vmatmul.mubr.bf16.gmra.mrb[0].mxu0 %v2246
    %v2407 = vpop.f32.mrb[0].mxu0
    %v2408 = vadd.f32 0.0, %v2407
    %v2409 = vpop.f32.mrb[0].mxu0
    %v2410 = vpop.f32.mrb[0].mxu0
    %v2411 = vadd.f32 0.0, %v2410
    %v2412 = vpop.f32.mrb[0].mxu0
    %2413 = vmatprep.mubr.bf16.mxu0 0
    %2414 = vmatmul.mubr.bf16.gmra.mrb[0].mxu0 %v2247
    %v2415 = vpop.f32.mrb[0].mxu0
    %v2416 = vadd.f32 0.0, %v2415
    %v2417 = vpop.f32.mrb[0].mxu0
    %v2418 = vpop.f32.mrb[0].mxu0
    %v2419 = vadd.f32 0.0, %v2418
    %v2420 = vpop.f32.mrb[0].mxu0
    %2421 = vmatprep.mubr.bf16.mxu0 0
    %2422 = vmatmul.mubr.bf16.gmra.mrb[0].mxu0 %v2248
    %v2423 = vpop.f32.mrb[0].mxu0
    %v2424 = vadd.f32 0.0, %v2423
    %v2425 = vpop.f32.mrb[0].mxu0
    %v2426 = vpop.f32.mrb[0].mxu0
    %v2427 = vadd.f32 0.0, %v2426
    %v2428 = vpop.f32.mrb[0].mxu0
    %2429 = vmatprep.mubr.bf16.mxu0 0
    %2430 = vmatmul.mubr.bf16.gmra.mrb[0].mxu0 %v2249
    %v2431 = vpop.f32.mrb[0].mxu0
    %v2432 = vadd.f32 0.0, %v2431
    %v2433 = vpop.f32.mrb[0].mxu0
    %v2434 = vpop.f32.mrb[0].mxu0
    %v2435 = vadd.f32 0.0, %v2434
    %v2436 = vpop.f32.mrb[0].mxu0
    %2437 = vmatprep.mubr.bf16.mxu0 0
    %2438 = vmatmul.mubr.bf16.gmra.mrb[0].mxu0 %v2250
    %v2439 = vpop.f32.mrb[0].mxu0
    %v2440 = vadd.f32 0.0, %v2439
    %v2441 = vpop.f32.mrb[0].mxu0
    %v2442 = vpop.f32.mrb[0].mxu0
    %v2443 = vadd.f32 0.0, %v2442
    %v2444 = vpop.f32.mrb[0].mxu0
    %2445 = vmatprep.mubr.bf16.mxu0 0
    %2446 = vmatmul.mubr.bf16.gmra.mrb[0].mxu0 %v2251
    %v2447 = vpop.f32.mrb[0].mxu0
    %v2448 = vadd.f32 0.0, %v2447
    %v2449 = vpop.f32.mrb[0].mxu0
    %v2450 = vpop.f32.mrb[0].mxu0
    %v2451 = vadd.f32 0.0, %v2450
    %v2452 = vpop.f32.mrb[0].mxu0
    %2453 = vdwg.mxu0
    %v2454 = vadd.f32 %v2295, %v2392
    %v2455 = vadd.f32 %v2298, %v2395
    %v2456 = vadd.f32 %v2303, %v2400
    %v2457 = vadd.f32 %v2306, %v2403
    %v2458 = vadd.f32 %v2311, %v2408
    %v2459 = vadd.f32 %v2314, %v2411
    %v2460 = vadd.f32 %v2319, %v2416
    %v2461 = vadd.f32 %v2322, %v2419
    %v2462 = vadd.f32 %v2327, %v2424
    %v2463 = vadd.f32 %v2330, %v2427
    %v2464 = vadd.f32 %v2335, %v2432
    %v2465 = vadd.f32 %v2338, %v2435
    %v2466 = vadd.f32 %v2343, %v2440
    %v2467 = vadd.f32 %v2346, %v2443
    %v2468 = vadd.f32 %v2351, %v2448
    %v2469 = vadd.f32 %v2354, %v2451
    %v2470 = vsub.f32 %v1584, %v2019
    %v2471 = vsub.f32 %v1585, %v2020
    %v2472 = vsub.f32 %v1586, %v2021
    %v2473 = vsub.f32 %v1587, %v2022
    %v2474 = vsub.f32 %v1588, %v2023
    %v2475 = vsub.f32 %v1589, %v2024
    %v2476 = vsub.f32 %v1590, %v2025
    %v2477 = vsub.f32 %v1591, %v2026
    %v2478 = vsub.f32 %v1592, %v2027
    %v2479 = vsub.f32 %v1593, %v2028
    %v2480 = vsub.f32 %v1594, %v2029
    %v2481 = vsub.f32 %v1595, %v2030
    %v2482 = vsub.f32 %v1596, %v2031
    %v2483 = vsub.f32 %v1597, %v2032
    %v2484 = vsub.f32 %v1598, %v2033
    %v2485 = vsub.f32 %v1599, %v2034
    %v2486 = vadd.f32 %v1584, %v2019
    %v2487 = vadd.f32 %v1585, %v2020
    %v2488 = vadd.f32 %v1586, %v2021
    %v2489 = vadd.f32 %v1587, %v2022
    %v2490 = vadd.f32 %v1588, %v2023
    %v2491 = vadd.f32 %v1589, %v2024
    %v2492 = vadd.f32 %v1590, %v2025
    %v2493 = vadd.f32 %v1591, %v2026
    %v2494 = vadd.f32 %v1592, %v2027
    %v2495 = vadd.f32 %v1593, %v2028
    %v2496 = vadd.f32 %v1594, %v2029
    %v2497 = vadd.f32 %v1595, %v2030
    %v2498 = vadd.f32 %v1596, %v2031
    %v2499 = vadd.f32 %v1597, %v2032
    %v2500 = vadd.f32 %v1598, %v2033
    %v2501 = vadd.f32 %v1599, %v2034
    %v2502 = vsub.f32 %v2486, %v2454
    %v2503 = vsub.f32 %v2487, %v2455
    %v2504 = vsub.f32 %v2488, %v2456
    %v2505 = vsub.f32 %v2489, %v2457
    %v2506 = vsub.f32 %v2490, %v2458
    %v2507 = vsub.f32 %v2491, %v2459
    %v2508 = vsub.f32 %v2492, %v2460
    %v2509 = vsub.f32 %v2493, %v2461
    %v2510 = vsub.f32 %v2494, %v2462
    %v2511 = vsub.f32 %v2495, %v2463
    %v2512 = vsub.f32 %v2496, %v2464
    %v2513 = vsub.f32 %v2497, %v2465
    %v2514 = vsub.f32 %v2498, %v2466
    %v2515 = vsub.f32 %v2499, %v2467
    %v2516 = vsub.f32 %v2500, %v2468
    %v2517 = vsub.f32 %v2501, %v2469
    %v2518 = vmul.f32 %v2470, %v2470
    %v2519 = vmul.f32 %v2471, %v2471
    %v2520 = vmul.f32 %v2472, %v2472
    %v2521 = vmul.f32 %v2473, %v2473
    %v2522 = vmul.f32 %v2474, %v2474
    %v2523 = vmul.f32 %v2475, %v2475
    %v2524 = vmul.f32 %v2476, %v2476
    %v2525 = vmul.f32 %v2477, %v2477
    %v2526 = vmul.f32 %v2478, %v2478
    %v2527 = vmul.f32 %v2479, %v2479
    %v2528 = vmul.f32 %v2480, %v2480
    %v2529 = vmul.f32 %v2481, %v2481
    %v2530 = vmul.f32 %v2482, %v2482
    %v2531 = vmul.f32 %v2483, %v2483
    %v2532 = vmul.f32 %v2484, %v2484
    %v2533 = vmul.f32 %v2485, %v2485
    %v2534 = vmul.f32 %v2502, %v2502
    %v2535 = vmul.f32 %v2503, %v2503
    %v2536 = vmul.f32 %v2504, %v2504
    %v2537 = vmul.f32 %v2505, %v2505
    %v2538 = vmul.f32 %v2506, %v2506
    %v2539 = vmul.f32 %v2507, %v2507
    %v2540 = vmul.f32 %v2508, %v2508
    %v2541 = vmul.f32 %v2509, %v2509
    %v2542 = vmul.f32 %v2510, %v2510
    %v2543 = vmul.f32 %v2511, %v2511
    %v2544 = vmul.f32 %v2512, %v2512
    %v2545 = vmul.f32 %v2513, %v2513
    %v2546 = vmul.f32 %v2514, %v2514
    %v2547 = vmul.f32 %v2515, %v2515
    %v2548 = vmul.f32 %v2516, %v2516
    %v2549 = vmul.f32 %v2517, %v2517
    %v2550 = vadd.f32 %v2518, %v2534
    %v2551 = vadd.f32 %v2519, %v2535
    %v2552 = vadd.f32 %v2520, %v2536
    %v2553 = vadd.f32 %v2521, %v2537
    %v2554 = vadd.f32 %v2522, %v2538
    %v2555 = vadd.f32 %v2523, %v2539
    %v2556 = vadd.f32 %v2524, %v2540
    %v2557 = vadd.f32 %v2525, %v2541
    %v2558 = vadd.f32 %v2526, %v2542
    %v2559 = vadd.f32 %v2527, %v2543
    %v2560 = vadd.f32 %v2528, %v2544
    %v2561 = vadd.f32 %v2529, %v2545
    %v2562 = vadd.f32 %v2530, %v2546
    %v2563 = vadd.f32 %v2531, %v2547
    %v2564 = vadd.f32 %v2532, %v2548
    %v2565 = vadd.f32 %v2533, %v2549
    %v2566 = vrsqrt.pop %v2550
    %v2567 = vmul.f32 %v2550, %v2566
    %vm2568 = vcmp.eq.f32.partialorder %v2550, inf
    %v2569 = vsel %vm2568, %v2550, %v2567
    %vm2570 = vcmp.eq.f32.partialorder %v2550, 0.0
    %v2571 = vand.u32 %v2550, 2147483648
    %v2572 = vsel %vm2570, %v2571, %v2569
    %v2573 = vrsqrt.pop %v2551
    %v2574 = vmul.f32 %v2551, %v2573
    %vm2575 = vcmp.eq.f32.partialorder %v2551, inf
    %v2576 = vsel %vm2575, %v2551, %v2574
    %vm2577 = vcmp.eq.f32.partialorder %v2551, 0.0
    %v2578 = vand.u32 %v2551, 2147483648
    %v2579 = vsel %vm2577, %v2578, %v2576
    %v2580 = vrsqrt.pop %v2552
    %v2581 = vmul.f32 %v2552, %v2580
    %vm2582 = vcmp.eq.f32.partialorder %v2552, inf
    %v2583 = vsel %vm2582, %v2552, %v2581
    %vm2584 = vcmp.eq.f32.partialorder %v2552, 0.0
    %v2585 = vand.u32 %v2552, 2147483648
    %v2586 = vsel %vm2584, %v2585, %v2583
    %v2587 = vrsqrt.pop %v2553
    %v2588 = vmul.f32 %v2553, %v2587
    %vm2589 = vcmp.eq.f32.partialorder %v2553, inf
    %v2590 = vsel %vm2589, %v2553, %v2588
    %vm2591 = vcmp.eq.f32.partialorder %v2553, 0.0
    %v2592 = vand.u32 %v2553, 2147483648
    %v2593 = vsel %vm2591, %v2592, %v2590
    %v2594 = vrsqrt.pop %v2554
    %v2595 = vmul.f32 %v2554, %v2594
    %vm2596 = vcmp.eq.f32.partialorder %v2554, inf
    %v2597 = vsel %vm2596, %v2554, %v2595
    %vm2598 = vcmp.eq.f32.partialorder %v2554, 0.0
    %v2599 = vand.u32 %v2554, 2147483648
    %v2600 = vsel %vm2598, %v2599, %v2597
    %v2601 = vrsqrt.pop %v2555
    %v2602 = vmul.f32 %v2555, %v2601
    %vm2603 = vcmp.eq.f32.partialorder %v2555, inf
    %v2604 = vsel %vm2603, %v2555, %v2602
    %vm2605 = vcmp.eq.f32.partialorder %v2555, 0.0
    %v2606 = vand.u32 %v2555, 2147483648
    %v2607 = vsel %vm2605, %v2606, %v2604
    %v2608 = vrsqrt.pop %v2556
    %v2609 = vmul.f32 %v2556, %v2608
    %vm2610 = vcmp.eq.f32.partialorder %v2556, inf
    %v2611 = vsel %vm2610, %v2556, %v2609
    %vm2612 = vcmp.eq.f32.partialorder %v2556, 0.0
    %v2613 = vand.u32 %v2556, 2147483648
    %v2614 = vsel %vm2612, %v2613, %v2611
    %v2615 = vrsqrt.pop %v2557
    %v2616 = vmul.f32 %v2557, %v2615
    %vm2617 = vcmp.eq.f32.partialorder %v2557, inf
    %v2618 = vsel %vm2617, %v2557, %v2616
    %vm2619 = vcmp.eq.f32.partialorder %v2557, 0.0
    %v2620 = vand.u32 %v2557, 2147483648
    %v2621 = vsel %vm2619, %v2620, %v2618
    %v2622 = vrsqrt.pop %v2558
    %v2623 = vmul.f32 %v2558, %v2622
    %vm2624 = vcmp.eq.f32.partialorder %v2558, inf
    %v2625 = vsel %vm2624, %v2558, %v2623
    %vm2626 = vcmp.eq.f32.partialorder %v2558, 0.0
    %v2627 = vand.u32 %v2558, 2147483648
    %v2628 = vsel %vm2626, %v2627, %v2625
    %v2629 = vrsqrt.pop %v2559
    %v2630 = vmul.f32 %v2559, %v2629
    %vm2631 = vcmp.eq.f32.partialorder %v2559, inf
    %v2632 = vsel %vm2631, %v2559, %v2630
    %vm2633 = vcmp.eq.f32.partialorder %v2559, 0.0
    %v2634 = vand.u32 %v2559, 2147483648
    %v2635 = vsel %vm2633, %v2634, %v2632
    %v2636 = vrsqrt.pop %v2560
    %v2637 = vmul.f32 %v2560, %v2636
    %vm2638 = vcmp.eq.f32.partialorder %v2560, inf
    %v2639 = vsel %vm2638, %v2560, %v2637
    %vm2640 = vcmp.eq.f32.partialorder %v2560, 0.0
    %v2641 = vand.u32 %v2560, 2147483648
    %v2642 = vsel %vm2640, %v2641, %v2639
    %v2643 = vrsqrt.pop %v2561
    %v2644 = vmul.f32 %v2561, %v2643
    %vm2645 = vcmp.eq.f32.partialorder %v2561, inf
    %v2646 = vsel %vm2645, %v2561, %v2644
    %vm2647 = vcmp.eq.f32.partialorder %v2561, 0.0
    %v2648 = vand.u32 %v2561, 2147483648
    %v2649 = vsel %vm2647, %v2648, %v2646
    %v2650 = vrsqrt.pop %v2562
    %v2651 = vmul.f32 %v2562, %v2650
    %vm2652 = vcmp.eq.f32.partialorder %v2562, inf
    %v2653 = vsel %vm2652, %v2562, %v2651
    %vm2654 = vcmp.eq.f32.partialorder %v2562, 0.0
    %v2655 = vand.u32 %v2562, 2147483648
    %v2656 = vsel %vm2654, %v2655, %v2653
    %v2657 = vrsqrt.pop %v2563
    %v2658 = vmul.f32 %v2563, %v2657
    %vm2659 = vcmp.eq.f32.partialorder %v2563, inf
    %v2660 = vsel %vm2659, %v2563, %v2658
    %vm2661 = vcmp.eq.f32.partialorder %v2563, 0.0
    %v2662 = vand.u32 %v2563, 2147483648
    %v2663 = vsel %vm2661, %v2662, %v2660
    %v2664 = vrsqrt.pop %v2564
    %v2665 = vmul.f32 %v2564, %v2664
    %vm2666 = vcmp.eq.f32.partialorder %v2564, inf
    %v2667 = vsel %vm2666, %v2564, %v2665
    %vm2668 = vcmp.eq.f32.partialorder %v2564, 0.0
    %v2669 = vand.u32 %v2564, 2147483648
    %v2670 = vsel %vm2668, %v2669, %v2667
    %v2671 = vrsqrt.pop %v2565
    %v2672 = vmul.f32 %v2565, %v2671
    %vm2673 = vcmp.eq.f32.partialorder %v2565, inf
    %v2674 = vsel %vm2673, %v2565, %v2672
    %vm2675 = vcmp.eq.f32.partialorder %v2565, 0.0
    %v2676 = vand.u32 %v2565, 2147483648
    %v2677 = vsel %vm2675, %v2676, %v2674
    %v2678 = vsel %vm320, %v2572, -inf
    %2679 = vmax.xlane.f32.xlu0 %v2678
    %v2680 = vpop.xlane.xlu0 %2679
    %v2681 = vsel %vm320, %v2579, -inf
    %2682 = vmax.xlane.f32.xlu0 %v2681
    %v2683 = vpop.xlane.xlu0 %2682
    %v2684 = vsel %vm320, %v2586, -inf
    %2685 = vmax.xlane.f32.xlu0 %v2684
    %v2686 = vpop.xlane.xlu0 %2685
    %v2687 = vsel %vm320, %v2593, -inf
    %2688 = vmax.xlane.f32.xlu0 %v2687
    %v2689 = vpop.xlane.xlu0 %2688
    %v2690 = vsel %vm320, %v2600, -inf
    %2691 = vmax.xlane.f32.xlu0 %v2690
    %v2692 = vpop.xlane.xlu0 %2691
    %v2693 = vsel %vm320, %v2607, -inf
    %2694 = vmax.xlane.f32.xlu0 %v2693
    %v2695 = vpop.xlane.xlu0 %2694
    %v2696 = vsel %vm320, %v2614, -inf
    %2697 = vmax.xlane.f32.xlu0 %v2696
    %v2698 = vpop.xlane.xlu0 %2697
    %v2699 = vsel %vm320, %v2621, -inf
    %2700 = vmax.xlane.f32.xlu0 %v2699
    %v2701 = vpop.xlane.xlu0 %2700
    %v2702 = vsel %vm320, %v2628, -inf
    %2703 = vmax.xlane.f32.xlu0 %v2702
    %v2704 = vpop.xlane.xlu0 %2703
    %v2705 = vsel %vm320, %v2635, -inf
    %2706 = vmax.xlane.f32.xlu0 %v2705
    %v2707 = vpop.xlane.xlu0 %2706
    %v2708 = vsel %vm320, %v2642, -inf
    %2709 = vmax.xlane.f32.xlu0 %v2708
    %v2710 = vpop.xlane.xlu0 %2709
    %v2711 = vsel %vm320, %v2649, -inf
    %2712 = vmax.xlane.f32.xlu0 %v2711
    %v2713 = vpop.xlane.xlu0 %2712
    %v2714 = vsel %vm320, %v2656, -inf
    %2715 = vmax.xlane.f32.xlu0 %v2714
    %v2716 = vpop.xlane.xlu0 %2715
    %v2717 = vsel %vm320, %v2663, -inf
    %2718 = vmax.xlane.f32.xlu0 %v2717
    %v2719 = vpop.xlane.xlu0 %2718
    %v2720 = vsel %vm320, %v2670, -inf
    %2721 = vmax.xlane.f32.xlu0 %v2720
    %v2722 = vpop.xlane.xlu0 %2721
    %v2723 = vsel %vm320, %v2677, -inf
    %2724 = vmax.xlane.f32.xlu0 %v2723
    %v2725 = vpop.xlane.xlu0 %2724
    %v2726 = vmax.f32 %v2680, %v2683
    %v2727 = vrot.slane %v2726, 4
    %v2728 = vmax.f32 %v2726, %v2727
    %v2729 = vrot.slane %v2728, 2
    %v2730 = vmax.f32 %v2728, %v2729
    %v2731 = vrot.slane %v2730, 1
    %v2732 = vmax.f32 %v2730, %v2731
    %v2733 = vmax.f32 %v2686, %v2689
    %v2734 = vrot.slane %v2733, 4
    %v2735 = vmax.f32 %v2733, %v2734
    %v2736 = vrot.slane %v2735, 2
    %v2737 = vmax.f32 %v2735, %v2736
    %v2738 = vrot.slane %v2737, 1
    %v2739 = vmax.f32 %v2737, %v2738
    %v2740 = vmax.f32 %v2692, %v2695
    %v2741 = vrot.slane %v2740, 4
    %v2742 = vmax.f32 %v2740, %v2741
    %v2743 = vrot.slane %v2742, 2
    %v2744 = vmax.f32 %v2742, %v2743
    %v2745 = vrot.slane %v2744, 1
    %v2746 = vmax.f32 %v2744, %v2745
    %v2747 = vmax.f32 %v2698, %v2701
    %v2748 = vrot.slane %v2747, 4
    %v2749 = vmax.f32 %v2747, %v2748
    %v2750 = vrot.slane %v2749, 2
    %v2751 = vmax.f32 %v2749, %v2750
    %v2752 = vrot.slane %v2751, 1
    %v2753 = vmax.f32 %v2751, %v2752
    %v2754 = vmax.f32 %v2704, %v2707
    %v2755 = vrot.slane %v2754, 4
    %v2756 = vmax.f32 %v2754, %v2755
    %v2757 = vrot.slane %v2756, 2
    %v2758 = vmax.f32 %v2756, %v2757
    %v2759 = vrot.slane %v2758, 1
    %v2760 = vmax.f32 %v2758, %v2759
    %v2761 = vmax.f32 %v2710, %v2713
    %v2762 = vrot.slane %v2761, 4
    %v2763 = vmax.f32 %v2761, %v2762
    %v2764 = vrot.slane %v2763, 2
    %v2765 = vmax.f32 %v2763, %v2764
    %v2766 = vrot.slane %v2765, 1
    %v2767 = vmax.f32 %v2765, %v2766
    %v2768 = vmax.f32 %v2716, %v2719
    %v2769 = vrot.slane %v2768, 4
    %v2770 = vmax.f32 %v2768, %v2769
    %v2771 = vrot.slane %v2770, 2
    %v2772 = vmax.f32 %v2770, %v2771
    %v2773 = vrot.slane %v2772, 1
    %v2774 = vmax.f32 %v2772, %v2773
    %v2775 = vmax.f32 %v2722, %v2725
    %v2776 = vrot.slane %v2775, 4
    %v2777 = vmax.f32 %v2775, %v2776
    %v2778 = vrot.slane %v2777, 2
    %v2779 = vmax.f32 %v2777, %v2778
    %v2780 = vrot.slane %v2779, 1
    %v2781 = vmax.f32 %v2779, %v2780
    %v2782 = vrcp.pop %v2732
    %v2783 = vmul.f32 1.0, %v2782
    %v2784 = vrcp.pop %v2739
    %v2785 = vmul.f32 1.0, %v2784
    %v2786 = vrcp.pop %v2746
    %v2787 = vmul.f32 1.0, %v2786
    %v2788 = vrcp.pop %v2753
    %v2789 = vmul.f32 1.0, %v2788
    %v2790 = vrcp.pop %v2760
    %v2791 = vmul.f32 1.0, %v2790
    %v2792 = vrcp.pop %v2767
    %v2793 = vmul.f32 1.0, %v2792
    %v2794 = vrcp.pop %v2774
    %v2795 = vmul.f32 1.0, %v2794
    %v2796 = vrcp.pop %v2781
    %v2797 = vmul.f32 1.0, %v2796
    %v2798 = vmul.f32 %v2572, %v2783
    %v2799 = vmul.f32 %v2579, %v2783
    %v2800 = vmul.f32 %v2586, %v2785
    %v2801 = vmul.f32 %v2593, %v2785
    %v2802 = vmul.f32 %v2600, %v2787
    %v2803 = vmul.f32 %v2607, %v2787
    %v2804 = vmul.f32 %v2614, %v2789
    %v2805 = vmul.f32 %v2621, %v2789
    %v2806 = vmul.f32 %v2628, %v2791
    %v2807 = vmul.f32 %v2635, %v2791
    %v2808 = vmul.f32 %v2642, %v2793
    %v2809 = vmul.f32 %v2649, %v2793
    %v2810 = vmul.f32 %v2656, %v2795
    %v2811 = vmul.f32 %v2663, %v2795
    %v2812 = vmul.f32 %v2670, %v2797
    %v2813 = vmul.f32 %v2677, %v2797
    %vm2814 = vcmp.ne.f32.partialorder %v2798, %v2798
    %vm2815 = vcmp.ne.f32.partialorder %v2799, %v2799
    %vm2816 = vcmp.ne.f32.partialorder %v2800, %v2800
    %vm2817 = vcmp.ne.f32.partialorder %v2801, %v2801
    %vm2818 = vcmp.ne.f32.partialorder %v2802, %v2802
    %vm2819 = vcmp.ne.f32.partialorder %v2803, %v2803
    %vm2820 = vcmp.ne.f32.partialorder %v2804, %v2804
    %vm2821 = vcmp.ne.f32.partialorder %v2805, %v2805
    %vm2822 = vcmp.ne.f32.partialorder %v2806, %v2806
    %vm2823 = vcmp.ne.f32.partialorder %v2807, %v2807
    %vm2824 = vcmp.ne.f32.partialorder %v2808, %v2808
    %vm2825 = vcmp.ne.f32.partialorder %v2809, %v2809
    %vm2826 = vcmp.ne.f32.partialorder %v2810, %v2810
    %vm2827 = vcmp.ne.f32.partialorder %v2811, %v2811
    %vm2828 = vcmp.ne.f32.partialorder %v2812, %v2812
    %vm2829 = vcmp.ne.f32.partialorder %v2813, %v2813
    %v2830 = vsel %vm2814, 0.0, %v2798
    %v2831 = vsel %vm2815, 0.0, %v2799
    %v2832 = vsel %vm2816, 0.0, %v2800
    %v2833 = vsel %vm2817, 0.0, %v2801
    %v2834 = vsel %vm2818, 0.0, %v2802
    %v2835 = vsel %vm2819, 0.0, %v2803
    %v2836 = vsel %vm2820, 0.0, %v2804
    %v2837 = vsel %vm2821, 0.0, %v2805
    %v2838 = vsel %vm2822, 0.0, %v2806
    %v2839 = vsel %vm2823, 0.0, %v2807
    %v2840 = vsel %vm2824, 0.0, %v2808
    %v2841 = vsel %vm2825, 0.0, %v2809
    %v2842 = vsel %vm2826, 0.0, %v2810
    %v2843 = vsel %vm2827, 0.0, %v2811
    %v2844 = vsel %vm2828, 0.0, %v2812
    %v2845 = vsel %vm2829, 0.0, %v2813
    %v2846 = vmax.f32 %v2830, 0.0
    %v2847 = vmax.f32 %v2831, 0.0
    %v2848 = vmax.f32 %v2832, 0.0
    %v2849 = vmax.f32 %v2833, 0.0
    %v2850 = vmax.f32 %v2834, 0.0
    %v2851 = vmax.f32 %v2835, 0.0
    %v2852 = vmax.f32 %v2836, 0.0
    %v2853 = vmax.f32 %v2837, 0.0
    %v2854 = vmax.f32 %v2838, 0.0
    %v2855 = vmax.f32 %v2839, 0.0
    %v2856 = vmax.f32 %v2840, 0.0
    %v2857 = vmax.f32 %v2841, 0.0
    %v2858 = vmax.f32 %v2842, 0.0
    %v2859 = vmax.f32 %v2843, 0.0
    %v2860 = vmax.f32 %v2844, 0.0
    %v2861 = vmax.f32 %v2845, 0.0
    %v2862 = vmin.f32 %v2846, 1.0
    %v2863 = vmin.f32 %v2847, 1.0
    %v2864 = vmin.f32 %v2848, 1.0
    %v2865 = vmin.f32 %v2849, 1.0
    %v2866 = vmin.f32 %v2850, 1.0
    %v2867 = vmin.f32 %v2851, 1.0
    %v2868 = vmin.f32 %v2852, 1.0
    %v2869 = vmin.f32 %v2853, 1.0
    %v2870 = vmin.f32 %v2854, 1.0
    %v2871 = vmin.f32 %v2855, 1.0
    %v2872 = vmin.f32 %v2856, 1.0
    %v2873 = vmin.f32 %v2857, 1.0
    %v2874 = vmin.f32 %v2858, 1.0
    %v2875 = vmin.f32 %v2859, 1.0
    %v2876 = vmin.f32 %v2860, 1.0
    %v2877 = vmin.f32 %v2861, 1.0
    %v2878 = vld [vmem:[#allocation19] sm:$0xff]
    %v2879 = vld [vmem:[#allocation19 + $0x8] sm:$0xff]
    %v2880 = vld [vmem:[#allocation19 + $0x10] sm:$0xff]
    %v2881 = vld [vmem:[#allocation19 + $0x18] sm:$0xff]
    %v2882 = vld [vmem:[#allocation19 + $0x20] sm:$0xff]
    %v2883 = vld [vmem:[#allocation19 + $0x28] sm:$0xff]
    %v2884 = vld [vmem:[#allocation19 + $0x30] sm:$0xff]
    %v2885 = vld [vmem:[#allocation19 + $0x38] sm:$0xff]
    %v2886 = vld [vmem:[#allocation19 + $0x40] sm:$0xff]
    %v2887 = vld [vmem:[#allocation19 + $0x48] sm:$0xff]
    %v2888 = vld [vmem:[#allocation19 + $0x50] sm:$0xff]
    %v2889 = vld [vmem:[#allocation19 + $0x58] sm:$0xff]
    %v2890 = vld [vmem:[#allocation19 + $0x60] sm:$0xff]
    %v2891 = vld [vmem:[#allocation19 + $0x68] sm:$0xff]
    %v2892 = vld [vmem:[#allocation19 + $0x70] sm:$0xff]
    %v2893 = vld [vmem:[#allocation19 + $0x78] sm:$0xff]
    %v2894 = vmul.f32 %v2862, %v2550
    %v2895 = vmul.f32 %v2863, %v2551
    %v2896 = vmul.f32 %v2864, %v2552
    %v2897 = vmul.f32 %v2865, %v2553
    %v2898 = vmul.f32 %v2866, %v2554
    %v2899 = vmul.f32 %v2867, %v2555
    %v2900 = vmul.f32 %v2868, %v2556
    %v2901 = vmul.f32 %v2869, %v2557
    %v2902 = vmul.f32 %v2870, %v2558
    %v2903 = vmul.f32 %v2871, %v2559
    %v2904 = vmul.f32 %v2872, %v2560
    %v2905 = vmul.f32 %v2873, %v2561
    %v2906 = vmul.f32 %v2874, %v2562
    %v2907 = vmul.f32 %v2875, %v2563
    %v2908 = vmul.f32 %v2876, %v2564
    %v2909 = vmul.f32 %v2877, %v2565
    %v2910 = vadd.f32 %v2878, %v2894
    %v2911 = vadd.f32 %v2879, %v2895
    %v2912 = vadd.f32 %v2880, %v2896
    %v2913 = vadd.f32 %v2881, %v2897
    %v2914 = vadd.f32 %v2882, %v2898
    %v2915 = vadd.f32 %v2883, %v2899
    %v2916 = vadd.f32 %v2884, %v2900
    %v2917 = vadd.f32 %v2885, %v2901
    %v2918 = vadd.f32 %v2886, %v2902
    %v2919 = vadd.f32 %v2887, %v2903
    %v2920 = vadd.f32 %v2888, %v2904
    %v2921 = vadd.f32 %v2889, %v2905
    %v2922 = vadd.f32 %v2890, %v2906
    %v2923 = vadd.f32 %v2891, %v2907
    %v2924 = vadd.f32 %v2892, %v2908
    %v2925 = vadd.f32 %v2893, %v2909
    %2926 = vst.msk [vmem:[#allocation19] sm:$0xff] %vm320, %v2910
    %2927 = vst.msk [vmem:[#allocation19 + $0x8] sm:$0xff] %vm320, %v2911
    %2928 = vst.msk [vmem:[#allocation19 + $0x10] sm:$0xff] %vm320, %v2912
    %2929 = vst.msk [vmem:[#allocation19 + $0x18] sm:$0xff] %vm320, %v2913
    %2930 = vst.msk [vmem:[#allocation19 + $0x20] sm:$0xff] %vm320, %v2914
    %2931 = vst.msk [vmem:[#allocation19 + $0x28] sm:$0xff] %vm320, %v2915
    %2932 = vst.msk [vmem:[#allocation19 + $0x30] sm:$0xff] %vm320, %v2916
    %2933 = vst.msk [vmem:[#allocation19 + $0x38] sm:$0xff] %vm320, %v2917
    %2934 = vst.msk [vmem:[#allocation19 + $0x40] sm:$0xff] %vm320, %v2918
    %2935 = vst.msk [vmem:[#allocation19 + $0x48] sm:$0xff] %vm320, %v2919
    %2936 = vst.msk [vmem:[#allocation19 + $0x50] sm:$0xff] %vm320, %v2920
    %2937 = vst.msk [vmem:[#allocation19 + $0x58] sm:$0xff] %vm320, %v2921
    %2938 = vst.msk [vmem:[#allocation19 + $0x60] sm:$0xff] %vm320, %v2922
    %2939 = vst.msk [vmem:[#allocation19 + $0x68] sm:$0xff] %vm320, %v2923
    %2940 = vst.msk [vmem:[#allocation19 + $0x70] sm:$0xff] %vm320, %v2924
    %2941 = vst.msk [vmem:[#allocation19 + $0x78] sm:$0xff] %vm320, %v2925
    // Predicated region
    $region94: #{tpu_custom_call.1} parent=1 // pred_check
      _
    $region95: #{tpu_custom_call.1} parent=1 // pred_check_branch
      %2943 = sbr.rel (0) target = $region97
    $region96: #{tpu_custom_call.1} parent=1 // pred_region
      %s2945 = ssub.s32 2048, 2048
      %2946 = vsyncadd [#allocation4], %s2945
      %s2947 = sshll.u32 [#allocation19], 4
      %s2948 = int_to_ptr.vmem [resolvable:$true] %s2947
      %2953 = dma.vmem_to_hbm [thread:$0]  %s2948, 2048, %s12, [#allocation4], 128, 128, 8
    $region97: #{tpu_custom_call.1} parent=1 // pred_fallthru
      _
    // Predicated region
    $region98: #{tpu_custom_call.1} parent=1 // pred_check
      _
    $region99: #{tpu_custom_call.1} parent=1 // pred_check_branch
      %2955 = sbr.rel (0) target = $region101
    $region100: #{tpu_custom_call.1} parent=1 // pred_region
      %2956 = dma.done [#allocation4], 2048
    $region101: #{tpu_custom_call.1} parent=1 // pred_fallthru
      _
    %2957 = vsyncpa [#allocation3], 1
    %2958 = vsyncpa [#allocation6], 1
    %2959 = vsyncpa [#allocation9], 1
    %2960 = vsyncpa [#allocation12], 1
    %2961 = vsyncpa [#allocation15], 1
    %2962 = vsyncpa [#allocation18], 1
    %2963 = vsyncpa [#allocation4], 1

</llo_original>
